<compile_context>
chip_gen: v7x
topology: tpu7x:2x2x1
jax: 0.10.0
libtpu: 0.0.40
codegen_flags: <defaults>
</compile_context>

<pallas_src>
import numpy as np
import jax
import jax.numpy as jnp
from jax.experimental import pallas as pl
from jax.experimental.pallas import tpu as pltpu


# ---------------------------------------------------------------------------
# Path A: small-vocab fast path — whole table resident, one-hot gather on MXU.
# ---------------------------------------------------------------------------
def _onehot_kernel(x_ref, w_ref, o_ref):
    # x_ref: (1, 1, TC)   int32 token ids for (batch row b, ctx tile t)
    # w_ref: (S, V, E)    whole embedding table, VMEM resident (constant block)
    # o_ref: (1, S, TC, E) output slab for (b, t)
    n_samples, vocab, _ = w_ref.shape
    tc = o_ref.shape[2]

    ids = x_ref[0]                                               # (1, TC) int32
    iota_v = jax.lax.broadcasted_iota(jnp.int32, (vocab, tc), 0)  # (V, TC)
    # one_hot[v, c] = (v == ids[c]); the id row broadcasts across sublanes.
    one_hot = (iota_v == ids).astype(w_ref.dtype)                # (V, TC)

    # One one-hot is built per (b, t) and reused across every sample s (hoists the
    # V*TC compare out of the per-sample work).  Each matmul is
    # (V,TC)^T @ (V,E) -> (TC,E) on the MXU; Precision.HIGHEST keeps the f32
    # result bit-exact (each output element is a single 1.0 * w term).
    for s in range(n_samples):                                   # S is small & static
        tile = jax.lax.dot_general(
            one_hot, w_ref[s],
            dimension_numbers=(((0,), (0,)), ((), ())),
            precision=jax.lax.Precision.HIGHEST,
            preferred_element_type=jnp.float32,
        )                                                        # (TC, E) f32
        o_ref[0, s, :, :] = tile.astype(o_ref.dtype)


# ---------------------------------------------------------------------------
# Path B: large-vocab path — true gather via per-row DMAs from HBM.
# ---------------------------------------------------------------------------
def _make_gather_kernel(ctx_len: int):
    def kernel(ids_ref, w_hbm, o_ref, sem):
        # ids_ref: (B*C,)       int32 token ids in SMEM (scalar-prefetched)
        # w_hbm:   (S, V, E)    embedding table left in HBM (pl.ANY)
        # o_ref:   (1, 1, TC, E) pipelined output slab for (s, b, t)
        # sem:     (1,)         DMA semaphore shared by all row copies of this step
        s = pl.program_id(0)
        b = pl.program_id(1)
        t = pl.program_id(2)
        tc = o_ref.shape[2]
        base = t * tc

        # Issue TC row copies  W[s, x[b, base+i], :] -> o_ref[0, 0, i, :] ...
        @pl.loop(0, tc)
        def _issue(i):
            pos = jnp.minimum(base + i, ctx_len - 1)   # clamp (tiles always divide C)
            tok = ids_ref[b * ctx_len + pos]
            pltpu.make_async_copy(
                w_hbm.at[s, pl.ds(tok, 1)],            # (1, E) row in HBM
                o_ref.at[0, 0, pl.ds(i, 1)],           # (1, E) row in the VMEM slab
                sem.at[0],
            ).start()

        # ... then drain.  Every copy has an identical size, so waiting TC times on
        # an equally-shaped descriptor consumes exactly the TC completions.
        @pl.loop(0, tc)
        def _drain(i):
            del i
            pltpu.make_async_copy(
                w_hbm.at[s, pl.ds(0, 1)],
                o_ref.at[0, 0, pl.ds(0, 1)],
                sem.at[0],
            ).wait()

        # TODO(synk): overlap issue/drain across consecutive ctx tiles (manual
        # double-buffering of the row DMAs) to hide per-row DMA latency further.

    return kernel


# ---------------------------------------------------------------------------
# Wrapper
# ---------------------------------------------------------------------------
def _vmem_capacity_bytes() -> int:
    try:
        return int(pltpu.get_tpu_info().vmem_capacity_bytes)
    except Exception:
        return 64 * 1024 * 1024   # conservative fallback: smallest per-core VMEM (v7x)


def _pick_ctx_tile(c: int, tokens_per_tile: int) -> int:
    """Largest tile <= tokens_per_tile that divides C (keeps every block full and
    lane/sublane-legal; no ragged-edge handling needed in the kernels)."""
    if c <= tokens_per_tile:
        return c
    tc = tokens_per_tile
    while c % tc and tc > 128:
        tc //= 2
    return tc if c % tc == 0 else c


def embed_group_forward(w_e: jax.Array, x: jax.Array, *,
                        tokens_per_tile: int = 512,
                        onehot_max_vocab: int = 512,
                        path: str | None = None) -> jax.Array:
    """Pallas implementation of EmbedGroup.forward.

    Args:
      w_e:  (S, V, E) embedding table.
      x:    (B, C) integer token ids.
      path: None (auto), "onehot", or "gather".
    Returns:
      (B, S, C, E) gathered embeddings, same dtype as w_e.
    """
    S, V, E = w_e.shape
    B, C = x.shape
    w_item = jnp.dtype(w_e.dtype).itemsize

    TC = _pick_ctx_tile(C, tokens_per_tile)
    n_ct = C // TC

    usable_vmem = _vmem_capacity_bytes() - (8 << 20)   # headroom for compiler scratch

    # Honest VMEM budget for the one-hot path: double-buffered pipeline blocks plus
    # the materialized intermediates (one-hot, iota, f32 tile).
    onehot_need = (
        2 * S * V * E * w_item          # whole table (pipeline double-buffers it)
        + 2 * S * TC * E * w_item       # (1, S, TC, E) output slab, double-buffered
        + 2 * max(TC * 4, 4096)         # token-id tiles, padded to >= one (8,128) tile
        + V * TC * (4 + w_item)         # iota/compare + one-hot in table dtype
        + TC * E * 4                    # f32 matmul tile
    )
    gather_need = 2 * TC * E * w_item + (1 << 20)

    if path is None:
        # One-hot gather costs O(V) MXU work per token: compute/memory crossover is
        # ~100-300 vocab rows, so only use it for small V; otherwise do a true gather.
        path = "onehot" if (V <= onehot_max_vocab and onehot_need <= usable_vmem) else "gather"

    out_shape = jax.ShapeDtypeStruct((B, S, C, E), w_e.dtype)

    if path == "onehot":
        vmem_limit = int(min(usable_vmem, max(onehot_need + (2 << 20), 16 << 20)))
        x3 = x.astype(jnp.int32).reshape(B, 1, C)
        return pl.pallas_call(
            _onehot_kernel,
            out_shape=out_shape,
            grid_spec=pltpu.PrefetchScalarGridSpec(
                num_scalar_prefetch=0,
                grid=(B, n_ct),
                in_specs=[
                    # ids: one (1,1,TC) tile per (b, t); TC is either a multiple of 128
                    # or the full context, so the block tiling is always legal.
                    pl.BlockSpec((1, 1, TC), lambda b, t: (b, 0, t)),
                    # whole table, constant block index -> DMA'd into VMEM once per call.
                    # TODO(synk): single-buffer this constant block (pl.Buffered(1)) to
                    # halve its VMEM footprint once that pipeline_mode is universally supported.
                    pl.BlockSpec((S, V, E), lambda b, t: (0, 0, 0)),
                ],
                out_specs=pl.BlockSpec((1, S, TC, E), lambda b, t: (b, 0, t, 0)),
            ),
            compiler_params=pltpu.CompilerParams(
                dimension_semantics=("parallel", "parallel"),
                vmem_limit_bytes=vmem_limit,
            ),
        )(x3, w_e)

    # path == "gather"
    vmem_limit = int(min(usable_vmem, max(gather_need + (2 << 20), 16 << 20)))
    ids = x.astype(jnp.int32).reshape(-1)               # (B*C,) -> SMEM via scalar prefetch
    return pl.pallas_call(
        _make_gather_kernel(C),
        out_shape=out_shape,
        grid_spec=pltpu.PrefetchScalarGridSpec(
            num_scalar_prefetch=1,
            grid=(S, B, n_ct),
            in_specs=[pl.BlockSpec(memory_space=pl.ANY)],   # table stays in HBM
            out_specs=pl.BlockSpec((1, 1, TC, E), lambda s, b, t, ids_ref: (b, s, t, 0)),
            scratch_shapes=[pltpu.SemaphoreType.DMA((1,))],
        ),
        compiler_params=pltpu.CompilerParams(
            dimension_semantics=("parallel", "parallel", "arbitrary"),
            vmem_limit_bytes=vmem_limit,
        ),
    )(ids, w_e)


if __name__ == "__main__":
    # Small config consistent with TransformerConfig / EmbedGroup.__init__.
    sample_count = 2
    n_vocab = 32
    d_embed = 128
    weight_alpha = 1.5
    batch = 2
    n_ctx = 256

    key = jax.random.PRNGKey(0)
    k_w, k_x = jax.random.split(key)

    # Deterministic parameter init (matches shape/scale of the nn.Parameter).
    w_e = (weight_alpha
           * jax.random.normal(k_w, (sample_count, n_vocab, d_embed), dtype=jnp.float32)
           / np.sqrt(d_embed)).astype(jnp.float32)
    x = jax.random.randint(k_x, (batch, n_ctx), 0, n_vocab, dtype=jnp.int32)

    # Reference: W_E[:, x] -> (s, b, c, e), then transpose to (b, s, c, e).
    ref = jnp.transpose(w_e[:, x], (1, 0, 2, 3))

    # 1) auto path (small vocab -> resident-table one-hot, single ctx tile).
    out = jax.block_until_ready(embed_group_forward(w_e, x))
    assert out.shape == (batch, sample_count, n_ctx, d_embed), out.shape
    np.testing.assert_allclose(np.asarray(out), np.asarray(ref), rtol=0, atol=0)

    # 2) one-hot path with multiple ctx tiles (exercises the (b, t) index maps).
    out = jax.block_until_ready(
        embed_group_forward(w_e, x, tokens_per_tile=128, path="onehot"))
    np.testing.assert_allclose(np.asarray(out), np.asarray(ref), rtol=0, atol=0)

    # 3) true-gather path (the large-vocab kernel), also with multiple ctx tiles.
    out = jax.block_until_ready(
        embed_group_forward(w_e, x, tokens_per_tile=128, path="gather"))
    np.testing.assert_allclose(np.asarray(out), np.asarray(ref), rtol=0, atol=0)

    print("KERNEL_OK")
</pallas_src>

<mosaic_0001>
module attributes {stable_mosaic.version = 11 : i64} {
  func.func @_onehot_kernel(%arg0: i32, %arg1: i32, %arg2: memref<1x1x256xi32, #tpu.memory_space<vmem>>, %arg3: memref<2x32x128xf32, #tpu.memory_space<vmem>>, %arg4: memref<1x2x256x128xf32, #tpu.memory_space<vmem>>) attributes {dimension_semantics = [#tpu.dimension_semantics<parallel>, #tpu.dimension_semantics<parallel>], iteration_bounds = array<i64: 2, 1>, scalar_prefetch = 0 : i64, scratch_operands = 0 : i64, tpu.core_type = #tpu.core_type<tc>, window_params = [{transform_indices = @transform_0, window_bounds = array<i64: 1, 1, 256>}, {pipeline_mode = #tpu.pipeline_mode<synchronous>, transform_indices = @transform_1, window_bounds = array<i64: 2, 32, 128>}, {transform_indices = @transform_2, window_bounds = array<i64: 1, 2, 256, 128>}]} {
    %c0 = arith.constant 0 : index
    %c0_0 = arith.constant 0 : index
    %c0_1 = arith.constant 0 : index
    %0 = vector.load %arg2[%c0, %c0_0, %c0_1] : memref<1x1x256xi32, #tpu.memory_space<vmem>>, vector<1x1x256xi32>
    %1 = vector.shape_cast %0 : vector<1x1x256xi32> to vector<1x256xi32>
    %2 = tpu.iota {dimensions = array<i32: 0>} : vector<32x256xi32>
    %3 = vector.broadcast %1 : vector<1x256xi32> to vector<32x256xi32>
    %4 = arith.cmpi eq, %2, %3 : vector<32x256xi32>
    %5 = arith.extui %4 : vector<32x256xi1> to vector<32x256xi32>
    %6 = arith.sitofp %5 : vector<32x256xi32> to vector<32x256xf32>
    %c0_2 = arith.constant 0 : index
    %c0_3 = arith.constant 0 : index
    %c0_4 = arith.constant 0 : index
    %7 = vector.load %arg3[%c0_2, %c0_3, %c0_4] : memref<2x32x128xf32, #tpu.memory_space<vmem>>, vector<1x32x128xf32>
    %8 = vector.shape_cast %7 : vector<1x32x128xf32> to vector<32x128xf32>
    %cst = arith.constant dense<0.000000e+00> : vector<256x128xf32>
    %9 = tpu.matmul %6, %8, %cst {dimension_numbers = #tpu.dot_dimension_numbers<[0], [0], [1], [1], [0, 1, 1, 1], [], []>, precision = #tpu.contract_precision<fp32>} : vector<32x256xf32>, vector<32x128xf32>, vector<256x128xf32> -> vector<256x128xf32>
    %c0_5 = arith.constant 0 : index
    %c0_6 = arith.constant 0 : index
    %c0_7 = arith.constant 0 : index
    %c0_8 = arith.constant 0 : index
    %10 = vector.load %arg4[%c0_5, %c0_6, %c0_7, %c0_8] : memref<1x2x256x128xf32, #tpu.memory_space<vmem>>, vector<1x1x256x128xf32>
    %11 = vector.shape_cast %10 : vector<1x1x256x128xf32> to vector<256x128xf32>
    %12 = vector.shape_cast %9 : vector<256x128xf32> to vector<1x1x256x128xf32>
    tpu.vector_store %arg4[%c0_5, %c0_6, %c0_7, %c0_8], %12 {strides = array<i32>} : memref<1x2x256x128xf32, #tpu.memory_space<vmem>>, vector<1x1x256x128xf32>,
    %c1 = arith.constant 1 : index
    %c0_9 = arith.constant 0 : index
    %c0_10 = arith.constant 0 : index
    %13 = vector.load %arg3[%c1, %c0_9, %c0_10] : memref<2x32x128xf32, #tpu.memory_space<vmem>>, vector<1x32x128xf32>
    %14 = vector.shape_cast %13 : vector<1x32x128xf32> to vector<32x128xf32>
    %cst_11 = arith.constant dense<0.000000e+00> : vector<256x128xf32>
    %15 = tpu.matmul %6, %14, %cst_11 {dimension_numbers = #tpu.dot_dimension_numbers<[0], [0], [1], [1], [0, 1, 1, 1], [], []>, precision = #tpu.contract_precision<fp32>} : vector<32x256xf32>, vector<32x128xf32>, vector<256x128xf32> -> vector<256x128xf32>
    %c0_12 = arith.constant 0 : index
    %c1_13 = arith.constant 1 : index
    %c0_14 = arith.constant 0 : index
    %c0_15 = arith.constant 0 : index
    %16 = vector.load %arg4[%c0_12, %c1_13, %c0_14, %c0_15] : memref<1x2x256x128xf32, #tpu.memory_space<vmem>>, vector<1x1x256x128xf32>
    %17 = vector.shape_cast %16 : vector<1x1x256x128xf32> to vector<256x128xf32>
    %18 = vector.shape_cast %15 : vector<256x128xf32> to vector<1x1x256x128xf32>
    tpu.vector_store %arg4[%c0_12, %c1_13, %c0_14, %c0_15], %18 {strides = array<i32>} : memref<1x2x256x128xf32, #tpu.memory_space<vmem>>, vector<1x1x256x128xf32>,
    return
  }
  func.func @transform_0(%arg0: i32, %arg1: i32) -> (i32, i32, i32) {
    %c0_i32 = arith.constant 0 : i32
    %c0_i32_0 = arith.constant 0 : i32
    return %arg0, %c0_i32, %arg1 : i32, i32, i32
  }
  func.func @transform_1(%arg0: i32, %arg1: i32) -> (i32, i32, i32) {
    %c0_i32 = arith.constant 0 : i32
    %c0_i32_0 = arith.constant 0 : i32
    %c0_i32_1 = arith.constant 0 : i32
    %c0_i32_2 = arith.constant 0 : i32
    return %c0_i32, %c0_i32_0, %c0_i32_1 : i32, i32, i32
  }
  func.func @transform_2(%arg0: i32, %arg1: i32) -> (i32, i32, i32, i32) {
    %c0_i32 = arith.constant 0 : i32
    %c0_i32_0 = arith.constant 0 : i32
    %c0_i32_1 = arith.constant 0 : i32
    return %arg0, %c0_i32, %arg1, %c0_i32_0 : i32, i32, i32, i32
  }
}

</mosaic_0001>

<llo_original>
// kernel: tpu_custom_call.1
$region0: #{tpu_custom_call.1}
  #allocation0 [shape = 'u32[]', space=smem, size = 0x4, offset = 0x4, fixed_abs, tag = 'smem constant byte address 0x4 - core index']
  #allocation1 [shape = 'u32[144,128]{1,0:T(1,128)}', space=vmem, size = 0x12000, scoped, tag = 'internal scratch']
  %s0 = inlined_call_operand.hbm [shape: s32[2,1,256], index: 0, kind: input, shape index: {}]
  %s1 = inlined_call_operand.hbm [shape: f32[2,32,128], index: 1, kind: input, shape index: {}]
  %s2 = inlined_call_operand.hbm [shape: f32[2,2,256,128], index: 2, kind: output, shape index: {}]
  %s3 = sld [smem:[#allocation0]]
  $region49: #{tpu_custom_call.1} parent=0
    _
  %s5 = ssub.s32 1, %s3
  %s6 = scalar_select 0, %s5, %s3
  $region1: #{tpu_custom_call.1} parent=0
    #allocation2 [shape = 'u8[2048]{0}', space=vmem, size = 0x800, scoped, tag = 'input window, operand 0']
    #allocation3 [shape = 's32[2]{0}', space=sflag, size = 0x8, scoped, tag = 'scoped memory for tpu_custom_call.1']
    #allocation4 [shape = 's32[2]{0}', space=sflag, size = 0x8, scoped, tag = 'scoped memory for tpu_custom_call.1']
    #allocation5 [shape = 'u8[32768]{0}', space=vmem, size = 0x8000, scoped, tag = 'input window, operand 1, single buffered']
    #allocation6 [shape = 's32[1]{0}', space=sflag, size = 0x4, scoped, tag = 'scoped memory for tpu_custom_call.1']
    #allocation7 [shape = 'u8[524288]{0}', space=vmem, size = 0x80000, scoped, tag = 'output window, operand 0']
    %7 = vsyncpa [#allocation3], 0
    %s8 = scalar_lea.sflag [#allocation3], 1
    %9 = vsyncpa %s8, 0
    %10 = vsyncpa [#allocation6], 0
    %11 = vsyncpa [#allocation4], 0
    %s12 = scalar_lea.sflag [#allocation4], 1
    %13 = vsyncpa %s12, 0
    loop: start=0, step=1, limit=4
    $region2: #{tpu_custom_call.1} parent=1 // loop_pre_header
      _
    $region3: #{tpu_custom_call.1} parent=1 // loop_header
      %s15 = sphi 0, %s19
      %p16 = scmp.ge.s32.totalorder %s15, 4
      %s22 = sphi 0, %s34
      %s23 = sphi 0, %s30
      %s24 = sphi 0, %s22
      %s25 = sphi 0, %s23
      %s26 = sphi 0, %s24
      %s27 = sphi 0, %s25
      %s39 = sphi 0, %s41
      %s42 = sphi 0, %s39
      %s43 = sphi 0, %s42
      %s59 = sphi 0, %s43
      %s63 = sphi 0, %s63
      %s65 = sphi 0, %s63
      %s66 = sphi 0, %s65
      %s80 = sphi 0, %s66
      %s88 = sphi 0, %s90
      %s91 = sphi 0, %s88
      %s92 = sphi 0, %s91
      %s108 = sphi 0, %s92
    $region4: #{tpu_custom_call.1} parent=1 // loop_header_branch
      %18 = sbr.rel (%p16) target = $region8
    $region5: #{tpu_custom_call.1} parent=1 // loop_body
      %s20 = ssub.s32 %s15, 1
      %s21 = ssub.s32 %s15, 2
      %s28 = sadd.s32 1, %s23
      %p29 = scmp.ge.s32.totalorder %s28, 1
      %s30 = scalar_select %p29, 0, %s28
      %s31 = sadd.s32 1, %s22
      %s32 = scalar_select %p29, %s31, %s22
      %p33 = scmp.ge.s32.totalorder %s32, 2
      %s34 = scalar_select %p33, 0, %s32
      %s35 = ssub.s32 %s22, %s34
      %s36 = ssub.s32 %s23, %s30
      %s37 = sor.u32 %s35, %s36
      %p38 = scmp.eq.s32.totalorder %s37, 0
      %s40 = sadd.s32 %s39, 1
      %s41 = scalar_select %p38, %s39, %s40
      %p44 = pneg %p38
      %p45 = scmp.eq.s32.totalorder %s15, 1
      %p46 = por %p44, %p45
      %p47 = scmp.ne.s32.totalorder %s39, %s42
      %p48 = scmp.eq.s32.totalorder %s15, 0
      %p49 = por %p47, %p48
      %p50 = scmp.ne.s32.totalorder %s39, %s42
      %p51 = scmp.eq.s32.totalorder %s20, 1
      %p52 = por %p50, %p51
      %p53 = scmp.ne.s32.totalorder %s42, %s43
      %p54 = scmp.eq.s32.totalorder %s20, 0
      %p55 = por %p53, %p54
      %p56 = scmp.ne.s32.totalorder %s42, %s43
      %p57 = scmp.eq.s32.totalorder %s21, 1
      %p58 = por %p56, %p57
      %p60 = scmp.ne.s32.totalorder %s43, %s59
      %p61 = scmp.eq.s32.totalorder %s21, 0
      %p62 = por %p60, %p61
      %s64 = sadd.s32 %s63, 1
      %p67 = scmp.eq.s32.totalorder %s15, 1
      %p68 = scmp.ne.s32.totalorder %s63, %s65
      %p69 = scmp.eq.s32.totalorder %s15, 0
      %p70 = por %p68, %p69
      %p71 = scmp.ne.s32.totalorder %s63, %s65
      %p72 = scmp.eq.s32.totalorder %s20, 1
      %p73 = por %p71, %p72
      %p74 = scmp.ne.s32.totalorder %s65, %s66
      %p75 = scmp.eq.s32.totalorder %s20, 0
      %p76 = por %p74, %p75
      %p77 = scmp.ne.s32.totalorder %s65, %s66
      %p78 = scmp.eq.s32.totalorder %s21, 1
      %p79 = por %p77, %p78
      %p81 = scmp.ne.s32.totalorder %s66, %s80
      %p82 = scmp.eq.s32.totalorder %s21, 0
      %p83 = por %p81, %p82
      %s84 = ssub.s32 %s22, %s34
      %s85 = ssub.s32 %s23, %s30
      %s86 = sor.u32 %s84, %s85
      %p87 = scmp.eq.s32.totalorder %s86, 0
      %s89 = sadd.s32 %s88, 1
      %s90 = scalar_select %p87, %s88, %s89
      %p93 = pneg %p87
      %p94 = scmp.eq.s32.totalorder %s15, 1
      %p95 = por %p93, %p94
      %p96 = scmp.ne.s32.totalorder %s88, %s91
      %p97 = scmp.eq.s32.totalorder %s15, 0
      %p98 = por %p96, %p97
      %p99 = scmp.ne.s32.totalorder %s88, %s91
      %p100 = scmp.eq.s32.totalorder %s20, 1
      %p101 = por %p99, %p100
      %p102 = scmp.ne.s32.totalorder %s91, %s92
      %p103 = scmp.eq.s32.totalorder %s20, 0
      %p104 = por %p102, %p103
      %p105 = scmp.ne.s32.totalorder %s91, %s92
      %p106 = scmp.eq.s32.totalorder %s21, 1
      %p107 = por %p105, %p106
      %p109 = scmp.ne.s32.totalorder %s92, %s108
      %p110 = scmp.eq.s32.totalorder %s21, 0
      %p111 = por %p109, %p110
      %p112 = scmp.le.s32.totalorder 1, %s15
      %p113 = scmp.lt.s32.totalorder %s15, 3
      %p114 = pnand %p112, %p113
      %p115 = pneg %p114
      // Predicated region
      $region9: #{tpu_custom_call.1} parent=5 // pred_check
        _
      $region10: #{tpu_custom_call.1} parent=5 // pred_check_branch
        %117 = sbr.rel (%p114) target = $region12
      $region11: #{tpu_custom_call.1} parent=5 // pred_region
        %s118 = ssub.s32 %s15, 1
        // Predicated region
        $region13: #{tpu_custom_call.1} parent=11 // pred_check
          %p119 = pneg %p76
        $region14: #{tpu_custom_call.1} parent=11 // pred_check_branch
          %121 = sbr.rel (%p119) target = $region16
        $region15: #{tpu_custom_call.1} parent=11 // pred_region
          %s123 = ssub.s32 1024, 1024
          %124 = vsyncadd [#allocation6], %s123
          %s125 = sshll.u32 [#allocation5], 4
          %s126 = int_to_ptr.vmem [resolvable:$true] %s125
          %131 = dma.hbm_to_vmem [thread:$0]  %s1, 1024, %s126, [#allocation6], 128, 128, 8
        $region16: #{tpu_custom_call.1} parent=11 // pred_fallthru
          _
      $region12: #{tpu_custom_call.1} parent=5 // pred_fallthru
        _
      %p132 = scmp.lt.s32.totalorder %s15, 2
      // Predicated region
      $region17: #{tpu_custom_call.1} parent=5 // pred_check
        %p133 = pneg %p132
      $region18: #{tpu_custom_call.1} parent=5 // pred_check_branch
        %135 = sbr.rel (%p133) target = $region20
      $region19: #{tpu_custom_call.1} parent=5 // pred_region
        // Predicated region
        $region21: #{tpu_custom_call.1} parent=19 // pred_check
          %p136 = pneg %p49
        $region22: #{tpu_custom_call.1} parent=19 // pred_check_branch
          %138 = sbr.rel (%p136) target = $region24
        $region23: #{tpu_custom_call.1} parent=19 // pred_region
          %s139 = sand.u32 %s39, 1
          %s140 = scalar_lea.sflag [#allocation3], %s139
          %s141 = sand.u32 %s39, 1
          %s142 = smul.addr %s141, 2
          %s143 = scalar_lea.vmem [#allocation2], %s142
          %s144 = smul.u32 2, %s23
          %s146 = ssub.s32 32, 32
          %147 = vsyncadd %s140, %s146
          %s148 = smul.addr %s22, 2
          %s149 = sadd.s32 %s144, %s148
          %s150 = smul.addr %s149, 16
          %s151 = scalar_lea.hbm %s0, %s150
          %s153 = sshll.u32 %s143, 4
          %s154 = int_to_ptr.vmem [resolvable:$true] %s153
          %156 = dma.hbm_to_vmem [thread:$0]  %s151, 32, %s154, %s140
        $region24: #{tpu_custom_call.1} parent=19 // pred_fallthru
          _
      $region20: #{tpu_custom_call.1} parent=5 // pred_fallthru
        _
      %p157 = scmp.le.s32.totalorder 1, %s15
      %p158 = scmp.lt.s32.totalorder %s15, 3
      %p159 = pnand %p157, %p158
      %p160 = pneg %p159
      // Predicated region
      $region25: #{tpu_custom_call.1} parent=5 // pred_check
        _
      $region26: #{tpu_custom_call.1} parent=5 // pred_check_branch
        %162 = sbr.rel (%p159) target = $region28
      $region27: #{tpu_custom_call.1} parent=5 // pred_region
        %s163 = ssub.s32 %s15, 1
        %s164 = sand.u32 %s42, 1
        %s165 = scalar_lea.sflag [#allocation3], %s164
        %s166 = sand.u32 %s42, 1
        %s167 = smul.addr %s166, 2
        %s168 = scalar_lea.vmem [#allocation2], %s167
        // Predicated region
        $region29: #{tpu_custom_call.1} parent=27 // pred_check
          %p169 = pneg %p55
        $region30: #{tpu_custom_call.1} parent=27 // pred_check_branch
          %171 = sbr.rel (%p169) target = $region32
        $region31: #{tpu_custom_call.1} parent=27 // pred_region
          %172 = dma.done %s165, 32
        $region32: #{tpu_custom_call.1} parent=27 // pred_fallthru
          _
        // Predicated region
        $region33: #{tpu_custom_call.1} parent=27 // pred_check
          %p173 = pneg %p76
        $region34: #{tpu_custom_call.1} parent=27 // pred_check_branch
          %175 = sbr.rel (%p173) target = $region36
        $region35: #{tpu_custom_call.1} parent=27 // pred_region
          %176 = dma.done [#allocation6], 1024
        $region36: #{tpu_custom_call.1} parent=27 // pred_fallthru
          _
        %s177 = sand.u32 %s42, 1
        %s178 = scalar_lea.sflag [#allocation3], %s177
        %s179 = sand.u32 %s42, 1
        %s180 = smul.addr %s179, 2
        %s181 = scalar_lea.vmem [#allocation2], %s180
        %p182 = pneg %p55
        %p183 = pneg %p52
        %p184 = pneg %p76
        %p185 = pneg %p73
        %p186 = pneg %p104
        %p187 = pneg %p101
        %s188 = sand.u32 %s91, 1
        %s189 = scalar_lea.sflag [#allocation4], %s188
        %s190 = sand.u32 %s91, 1
        %s191 = smul.addr %s190, 512
        %s192 = scalar_lea.vmem [#allocation7], %s191
        %s193 = smul.u32 2, %s25
        %s194 = smul.u32 32, %s25
        %v195 = vld [vmem:[%s168] sm:$0x3]
        %v196 = vlaneseq
        %v197 = vshrl.u32 %v196, 7
        %v198 = vadd.s32 %v197, 8
        %v199 = vadd.s32 %v197, 16
        %v200 = vadd.s32 %v197, 24
        %v201 = vlaneseq
        %v202 = vshrl.u32 %v201, 7
        %v203 = vsub.s32 0, %v202
        %v204 = vrot.slane %v195, %v203
        %v205 = vlaneseq
        %v206 = vshrl.u32 %v205, 7
        %v207 = vsub.s32 1, %v206
        %v208 = vrot.slane %v195, %v207
        %vm209 = vcmp.eq.s32.totalorder %v197, %v204
        %vm210 = vcmp.eq.s32.totalorder %v197, %v208
        %vm211 = vcmp.eq.s32.totalorder %v198, %v204
        %vm212 = vcmp.eq.s32.totalorder %v198, %v208
        %vm213 = vcmp.eq.s32.totalorder %v199, %v204
        %vm214 = vcmp.eq.s32.totalorder %v199, %v208
        %vm215 = vcmp.eq.s32.totalorder %v200, %v204
        %vm216 = vcmp.eq.s32.totalorder %v200, %v208
        %v217 = vsel %vm209, 1, 0
        %v218 = vsel %vm210, 1, 0
        %v219 = vsel %vm211, 1, 0
        %v220 = vsel %vm212, 1, 0
        %v221 = vsel %vm213, 1, 0
        %v222 = vsel %vm214, 1, 0
        %v223 = vsel %vm215, 1, 0
        %v224 = vsel %vm216, 1, 0
        %v225 = vcvt.s32.f32 %v217
        %v226 = vcvt.s32.f32 %v218
        %v227 = vcvt.s32.f32 %v219
        %v228 = vcvt.s32.f32 %v220
        %v229 = vcvt.s32.f32 %v221
        %v230 = vcvt.s32.f32 %v222
        %v231 = vcvt.s32.f32 %v223
        %v232 = vcvt.s32.f32 %v224
        %v233 = vld [vmem:[#allocation5] sm:$0xff]
        %v234 = vld [vmem:[#allocation5 + $0x8] sm:$0xff]
        %v235 = vld [vmem:[#allocation5 + $0x10] sm:$0xff]
        %v236 = vld [vmem:[#allocation5 + $0x18] sm:$0xff]
        %237 = vxpose.xlu0.b32.start [1/16] %v225, 128
        %238 = vxpose.xlu0.b32.cont [2/16] %v227, 128
        %239 = vxpose.xlu0.b32.cont [3/16] %v229, 128
        %240 = vxpose.xlu0.b32.cont [4/16] %v231, 128
        %241 = vxpose.xlu0.b32.cont [5/16] 0.0, 128
        %242 = vxpose.xlu0.b32.cont [6/16] 0.0, 128
        %243 = vxpose.xlu0.b32.cont [7/16] 0.0, 128
        %244 = vxpose.xlu0.b32.cont [8/16] 0.0, 128
        %245 = vxpose.xlu0.b32.cont [9/16] 0.0, 128
        %246 = vxpose.xlu0.b32.cont [10/16] 0.0, 128
        %247 = vxpose.xlu0.b32.cont [11/16] 0.0, 128
        %248 = vxpose.xlu0.b32.cont [12/16] 0.0, 128
        %249 = vxpose.xlu0.b32.cont [13/16] 0.0, 128
        %250 = vxpose.xlu0.b32.cont [14/16] 0.0, 128
        %251 = vxpose.xlu0.b32.cont [15/16] 0.0, 128
        %252 = vxpose.xlu0.b32.end [16/16] 0.0, 128
        %v253 = vpop.trf.xlu0
        %v254 = vpop.trf.xlu0
        %v255 = vpop.trf.xlu0
        %v256 = vpop.trf.xlu0
        %v257 = vpop.trf.xlu0
        %v258 = vpop.trf.xlu0
        %v259 = vpop.trf.xlu0
        %v260 = vpop.trf.xlu0
        %v261 = vpop.trf.xlu0
        %v262 = vpop.trf.xlu0
        %v263 = vpop.trf.xlu0
        %v264 = vpop.trf.xlu0
        %v265 = vpop.trf.xlu0
        %v266 = vpop.trf.xlu0
        %v267 = vpop.trf.xlu0
        %v268 = vpop.trf.xlu0
        %269 = vxpose.xlu0.b32.start [1/16] %v226, 128
        %270 = vxpose.xlu0.b32.cont [2/16] %v228, 128
        %271 = vxpose.xlu0.b32.cont [3/16] %v230, 128
        %272 = vxpose.xlu0.b32.cont [4/16] %v232, 128
        %273 = vxpose.xlu0.b32.cont [5/16] 0.0, 128
        %274 = vxpose.xlu0.b32.cont [6/16] 0.0, 128
        %275 = vxpose.xlu0.b32.cont [7/16] 0.0, 128
        %276 = vxpose.xlu0.b32.cont [8/16] 0.0, 128
        %277 = vxpose.xlu0.b32.cont [9/16] 0.0, 128
        %278 = vxpose.xlu0.b32.cont [10/16] 0.0, 128
        %279 = vxpose.xlu0.b32.cont [11/16] 0.0, 128
        %280 = vxpose.xlu0.b32.cont [12/16] 0.0, 128
        %281 = vxpose.xlu0.b32.cont [13/16] 0.0, 128
        %282 = vxpose.xlu0.b32.cont [14/16] 0.0, 128
        %283 = vxpose.xlu0.b32.cont [15/16] 0.0, 128
        %284 = vxpose.xlu0.b32.end [16/16] 0.0, 128
        %v285 = vpop.trf.xlu0
        %v286 = vpop.trf.xlu0
        %v287 = vpop.trf.xlu0
        %v288 = vpop.trf.xlu0
        %v289 = vpop.trf.xlu0
        %v290 = vpop.trf.xlu0
        %v291 = vpop.trf.xlu0
        %v292 = vpop.trf.xlu0
        %v293 = vpop.trf.xlu0
        %v294 = vpop.trf.xlu0
        %v295 = vpop.trf.xlu0
        %v296 = vpop.trf.xlu0
        %v297 = vpop.trf.xlu0
        %v298 = vpop.trf.xlu0
        %v299 = vpop.trf.xlu0
        %v300 = vpop.trf.xlu0
        %vm301 = vcmask 261120
        %v303 = vsel %vm301, %v253, 0
        %v306 = vsel %vm301, %v254, 0
        %v309 = vsel %vm301, %v255, 0
        %v312 = vsel %vm301, %v256, 0
        %v315 = vsel %vm301, %v257, 0
        %v318 = vsel %vm301, %v258, 0
        %v321 = vsel %vm301, %v259, 0
        %v324 = vsel %vm301, %v260, 0
        %v327 = vsel %vm301, %v261, 0
        %v330 = vsel %vm301, %v262, 0
        %v333 = vsel %vm301, %v263, 0
        %v336 = vsel %vm301, %v264, 0
        %v339 = vsel %vm301, %v265, 0
        %v342 = vsel %vm301, %v266, 0
        %v345 = vsel %vm301, %v267, 0
        %v348 = vsel %vm301, %v268, 0
        %v351 = vsel %vm301, %v285, 0
        %v354 = vsel %vm301, %v286, 0
        %v357 = vsel %vm301, %v287, 0
        %v360 = vsel %vm301, %v288, 0
        %v363 = vsel %vm301, %v289, 0
        %v366 = vsel %vm301, %v290, 0
        %v369 = vsel %vm301, %v291, 0
        %v372 = vsel %vm301, %v292, 0
        %v375 = vsel %vm301, %v293, 0
        %v378 = vsel %vm301, %v294, 0
        %v381 = vsel %vm301, %v295, 0
        %v384 = vsel %vm301, %v296, 0
        %v387 = vsel %vm301, %v297, 0
        %v390 = vsel %vm301, %v298, 0
        %v393 = vsel %vm301, %v299, 0
        %v396 = vsel %vm301, %v300, 0
        %398 = vmatprep.subr.mxu0 0.0
        %v399 = vand.u32 %v233, 4294901760
        %400 = vmatpush1.msra.mxu0 %v399
        %401 = vmatprep.subr.mxu0 0.0
        %v402 = vand.u32 %v234, 4294901760
        %403 = vmatpush1.msra.mxu0 %v402
        %404 = vmatprep.subr.mxu0 0.0
        %v405 = vand.u32 %v235, 4294901760
        %406 = vmatpush1.msra.mxu0 %v405
        %407 = vmatprep.subr.mxu0 0.0
        %v408 = vand.u32 %v236, 4294901760
        %409 = vmatpush1.msra.mxu0 %v408
        %410 = vmatprep.subr.mxu0 0.0
        %411 = vmatpush1.msra.mxu0 0.0
        %412 = vmatprep.subr.mxu0 0.0
        %413 = vmatpush1.msra.mxu0 0.0
        %414 = vmatprep.subr.mxu0 0.0
        %415 = vmatpush1.msra.mxu0 0.0
        %416 = vmatprep.subr.mxu0 0.0
        %417 = vmatpush1.msra.mxu0 0.0
        %418 = vmatprep.subr.mxu0 0.0
        %419 = vmatpush1.msra.mxu0 0.0
        %420 = vmatprep.subr.mxu0 0.0
        %421 = vmatpush1.msra.mxu0 0.0
        %422 = vmatprep.subr.mxu0 0.0
        %423 = vmatpush1.msra.mxu0 0.0
        %424 = vmatprep.subr.mxu0 0.0
        %425 = vmatpush1.msra.mxu0 0.0
        %426 = vmatprep.subr.mxu0 0.0
        %427 = vmatpush1.msra.mxu0 0.0
        %428 = vmatprep.subr.mxu0 0.0
        %429 = vmatpush1.msra.mxu0 0.0
        %430 = vmatprep.subr.mxu0 0.0
        %431 = vmatpush1.msra.mxu0 0.0
        %432 = vmatprep.subr.mxu0 0.0
        %433 = vmatpush1.msra.mxu0 0.0
        %434 = vmatprep.subr.mxu0 0.0
        %435 = vmatpush1.msra.mxu0 0.0
        %436 = vmatprep.subr.mxu0 0.0
        %437 = vmatpush1.msra.mxu0 0.0
        %438 = vmatprep.subr.mxu0 0.0
        %439 = vmatpush1.msra.mxu0 0.0
        %440 = vmatprep.subr.mxu0 0.0
        %441 = vmatpush1.msra.mxu0 0.0
        %442 = vmatprep.subr.mxu0 0.0
        %443 = vmatpush1.msra.mxu0 0.0
        %444 = vmatprep.subr.mxu0 0.0
        %445 = vmatpush1.msra.mxu0 0.0
        %446 = vmatprep.subr.mxu0 0.0
        %447 = vmatpush1.msra.mxu0 0.0
        %448 = vmatprep.subr.mxu0 0.0
        %449 = vmatpush1.msra.mxu0 0.0
        %450 = vmatprep.subr.mxu0 0.0
        %451 = vmatpush1.msra.mxu0 0.0
        %452 = vmatprep.subr.mxu0 0.0
        %453 = vmatpush1.msra.mxu0 0.0
        %454 = vmatprep.subr.mxu0 0.0
        %455 = vmatpush1.msra.mxu0 0.0
        %456 = vmatprep.subr.mxu0 0.0
        %457 = vmatpush1.msra.mxu0 0.0
        %458 = vmatprep.subr.mxu0 0.0
        %459 = vmatpush1.msra.mxu0 0.0
        %460 = vmatprep.subr.mxu0 0.0
        %461 = vmatpush1.msra.mxu0 0.0
        %462 = vmatprep.subr.mxu0 0.0
        %463 = vmatpush1.msra.mxu0 0.0
        %464 = vmatprep.subr.mxu0 0.0
        %465 = vmatpush1.msra.mxu0 0.0
        %466 = vmatprep.mubr.f32.mxu0 0.0
        %v467 = vand.u32 %v303, 4294901760
        %v468 = vsub.f32 %v303, %v467
        %v469 = vand.u32 %v468, 4294901760
        %v470 = vsub.f32 %v468, %v469
        %v471 = vand.u32 %v470, 4294901760
        %472 = vmatmul.mubr.f32.gmra.mrb[0].mxu0 %v471
        %v473 = vpop.f32.mrb[0].mxu0
        %v474 = vadd.f32 0.0, %v473
        %v475 = vpop.f32.mrb[0].mxu0
        %476 = vmatprep.mubr.f32.mxu0 0.0
        %v477 = vand.u32 %v306, 4294901760
        %v478 = vsub.f32 %v306, %v477
        %v479 = vand.u32 %v478, 4294901760
        %v480 = vsub.f32 %v478, %v479
        %v481 = vand.u32 %v480, 4294901760
        %482 = vmatmul.mubr.f32.gmra.mrb[0].mxu0 %v481
        %v483 = vpop.f32.mrb[0].mxu0
        %v484 = vadd.f32 0.0, %v483
        %v485 = vpop.f32.mrb[0].mxu0
        %486 = vmatprep.mubr.f32.mxu0 0.0
        %v487 = vand.u32 %v309, 4294901760
        %v488 = vsub.f32 %v309, %v487
        %v489 = vand.u32 %v488, 4294901760
        %v490 = vsub.f32 %v488, %v489
        %v491 = vand.u32 %v490, 4294901760
        %492 = vmatmul.mubr.f32.gmra.mrb[0].mxu0 %v491
        %v493 = vpop.f32.mrb[0].mxu0
        %v494 = vadd.f32 0.0, %v493
        %v495 = vpop.f32.mrb[0].mxu0
        %496 = vmatprep.mubr.f32.mxu0 0.0
        %v497 = vand.u32 %v312, 4294901760
        %v498 = vsub.f32 %v312, %v497
        %v499 = vand.u32 %v498, 4294901760
        %v500 = vsub.f32 %v498, %v499
        %v501 = vand.u32 %v500, 4294901760
        %502 = vmatmul.mubr.f32.gmra.mrb[0].mxu0 %v501
        %v503 = vpop.f32.mrb[0].mxu0
        %v504 = vadd.f32 0.0, %v503
        %v505 = vpop.f32.mrb[0].mxu0
        %506 = vmatprep.mubr.f32.mxu0 0.0
        %v507 = vand.u32 %v315, 4294901760
        %v508 = vsub.f32 %v315, %v507
        %v509 = vand.u32 %v508, 4294901760
        %v510 = vsub.f32 %v508, %v509
        %v511 = vand.u32 %v510, 4294901760
        %512 = vmatmul.mubr.f32.gmra.mrb[0].mxu0 %v511
        %v513 = vpop.f32.mrb[0].mxu0
        %v514 = vadd.f32 0.0, %v513
        %v515 = vpop.f32.mrb[0].mxu0
        %516 = vmatprep.mubr.f32.mxu0 0.0
        %v517 = vand.u32 %v318, 4294901760
        %v518 = vsub.f32 %v318, %v517
        %v519 = vand.u32 %v518, 4294901760
        %v520 = vsub.f32 %v518, %v519
        %v521 = vand.u32 %v520, 4294901760
        %522 = vmatmul.mubr.f32.gmra.mrb[0].mxu0 %v521
        %v523 = vpop.f32.mrb[0].mxu0
        %v524 = vadd.f32 0.0, %v523
        %v525 = vpop.f32.mrb[0].mxu0
        %526 = vmatprep.mubr.f32.mxu0 0.0
        %v527 = vand.u32 %v321, 4294901760
        %v528 = vsub.f32 %v321, %v527
        %v529 = vand.u32 %v528, 4294901760
        %v530 = vsub.f32 %v528, %v529
        %v531 = vand.u32 %v530, 4294901760
        %532 = vmatmul.mubr.f32.gmra.mrb[0].mxu0 %v531
        %v533 = vpop.f32.mrb[0].mxu0
        %v534 = vadd.f32 0.0, %v533
        %v535 = vpop.f32.mrb[0].mxu0
        %536 = vmatprep.mubr.f32.mxu0 0.0
        %v537 = vand.u32 %v324, 4294901760
        %v538 = vsub.f32 %v324, %v537
        %v539 = vand.u32 %v538, 4294901760
        %v540 = vsub.f32 %v538, %v539
        %v541 = vand.u32 %v540, 4294901760
        %542 = vmatmul.mubr.f32.gmra.mrb[0].mxu0 %v541
        %v543 = vpop.f32.mrb[0].mxu0
        %v544 = vadd.f32 0.0, %v543
        %v545 = vpop.f32.mrb[0].mxu0
        %546 = vmatprep.mubr.f32.mxu0 0.0
        %v547 = vand.u32 %v327, 4294901760
        %v548 = vsub.f32 %v327, %v547
        %v549 = vand.u32 %v548, 4294901760
        %v550 = vsub.f32 %v548, %v549
        %v551 = vand.u32 %v550, 4294901760
        %552 = vmatmul.mubr.f32.gmra.mrb[0].mxu0 %v551
        %v553 = vpop.f32.mrb[0].mxu0
        %v554 = vadd.f32 0.0, %v553
        %v555 = vpop.f32.mrb[0].mxu0
        %556 = vmatprep.mubr.f32.mxu0 0.0
        %v557 = vand.u32 %v330, 4294901760
        %v558 = vsub.f32 %v330, %v557
        %v559 = vand.u32 %v558, 4294901760
        %v560 = vsub.f32 %v558, %v559
        %v561 = vand.u32 %v560, 4294901760
        %562 = vmatmul.mubr.f32.gmra.mrb[0].mxu0 %v561
        %v563 = vpop.f32.mrb[0].mxu0
        %v564 = vadd.f32 0.0, %v563
        %v565 = vpop.f32.mrb[0].mxu0
        %566 = vmatprep.mubr.f32.mxu0 0.0
        %v567 = vand.u32 %v333, 4294901760
        %v568 = vsub.f32 %v333, %v567
        %v569 = vand.u32 %v568, 4294901760
        %v570 = vsub.f32 %v568, %v569
        %v571 = vand.u32 %v570, 4294901760
        %572 = vmatmul.mubr.f32.gmra.mrb[0].mxu0 %v571
        %v573 = vpop.f32.mrb[0].mxu0
        %v574 = vadd.f32 0.0, %v573
        %v575 = vpop.f32.mrb[0].mxu0
        %576 = vmatprep.mubr.f32.mxu0 0.0
        %v577 = vand.u32 %v336, 4294901760
        %v578 = vsub.f32 %v336, %v577
        %v579 = vand.u32 %v578, 4294901760
        %v580 = vsub.f32 %v578, %v579
        %v581 = vand.u32 %v580, 4294901760
        %582 = vmatmul.mubr.f32.gmra.mrb[0].mxu0 %v581
        %v583 = vpop.f32.mrb[0].mxu0
        %v584 = vadd.f32 0.0, %v583
        %v585 = vpop.f32.mrb[0].mxu0
        %586 = vmatprep.mubr.f32.mxu0 0.0
        %v587 = vand.u32 %v339, 4294901760
        %v588 = vsub.f32 %v339, %v587
        %v589 = vand.u32 %v588, 4294901760
        %v590 = vsub.f32 %v588, %v589
        %v591 = vand.u32 %v590, 4294901760
        %592 = vmatmul.mubr.f32.gmra.mrb[0].mxu0 %v591
        %v593 = vpop.f32.mrb[0].mxu0
        %v594 = vadd.f32 0.0, %v593
        %v595 = vpop.f32.mrb[0].mxu0
        %596 = vmatprep.mubr.f32.mxu0 0.0
        %v597 = vand.u32 %v342, 4294901760
        %v598 = vsub.f32 %v342, %v597
        %v599 = vand.u32 %v598, 4294901760
        %v600 = vsub.f32 %v598, %v599
        %v601 = vand.u32 %v600, 4294901760
        %602 = vmatmul.mubr.f32.gmra.mrb[0].mxu0 %v601
        %v603 = vpop.f32.mrb[0].mxu0
        %v604 = vadd.f32 0.0, %v603
        %v605 = vpop.f32.mrb[0].mxu0
        %606 = vmatprep.mubr.f32.mxu0 0.0
        %v607 = vand.u32 %v345, 4294901760
        %v608 = vsub.f32 %v345, %v607
        %v609 = vand.u32 %v608, 4294901760
        %v610 = vsub.f32 %v608, %v609
        %v611 = vand.u32 %v610, 4294901760
        %612 = vmatmul.mubr.f32.gmra.mrb[0].mxu0 %v611
        %v613 = vpop.f32.mrb[0].mxu0
        %v614 = vadd.f32 0.0, %v613
        %v615 = vpop.f32.mrb[0].mxu0
        %616 = vmatprep.mubr.f32.mxu0 0.0
        %v617 = vand.u32 %v348, 4294901760
        %v618 = vsub.f32 %v348, %v617
        %v619 = vand.u32 %v618, 4294901760
        %v620 = vsub.f32 %v618, %v619
        %v621 = vand.u32 %v620, 4294901760
        %622 = vmatmul.mubr.f32.gmra.mrb[0].mxu0 %v621
        %v623 = vpop.f32.mrb[0].mxu0
        %v624 = vadd.f32 0.0, %v623
        %v625 = vpop.f32.mrb[0].mxu0
        %626 = vmatprep.mubr.f32.mxu0 0.0
        %v627 = vand.u32 %v351, 4294901760
        %v628 = vsub.f32 %v351, %v627
        %v629 = vand.u32 %v628, 4294901760
        %v630 = vsub.f32 %v628, %v629
        %v631 = vand.u32 %v630, 4294901760
        %632 = vmatmul.mubr.f32.gmra.mrb[0].mxu0 %v631
        %v633 = vpop.f32.mrb[0].mxu0
        %v634 = vadd.f32 0.0, %v633
        %v635 = vpop.f32.mrb[0].mxu0
        %636 = vmatprep.mubr.f32.mxu0 0.0
        %v637 = vand.u32 %v354, 4294901760
        %v638 = vsub.f32 %v354, %v637
        %v639 = vand.u32 %v638, 4294901760
        %v640 = vsub.f32 %v638, %v639
        %v641 = vand.u32 %v640, 4294901760
        %642 = vmatmul.mubr.f32.gmra.mrb[0].mxu0 %v641
        %v643 = vpop.f32.mrb[0].mxu0
        %v644 = vadd.f32 0.0, %v643
        %v645 = vpop.f32.mrb[0].mxu0
        %646 = vmatprep.mubr.f32.mxu0 0.0
        %v647 = vand.u32 %v357, 4294901760
        %v648 = vsub.f32 %v357, %v647
        %v649 = vand.u32 %v648, 4294901760
        %v650 = vsub.f32 %v648, %v649
        %v651 = vand.u32 %v650, 4294901760
        %652 = vmatmul.mubr.f32.gmra.mrb[0].mxu0 %v651
        %v653 = vpop.f32.mrb[0].mxu0
        %v654 = vadd.f32 0.0, %v653
        %v655 = vpop.f32.mrb[0].mxu0
        %656 = vmatprep.mubr.f32.mxu0 0.0
        %v657 = vand.u32 %v360, 4294901760
        %v658 = vsub.f32 %v360, %v657
        %v659 = vand.u32 %v658, 4294901760
        %v660 = vsub.f32 %v658, %v659
        %v661 = vand.u32 %v660, 4294901760
        %662 = vmatmul.mubr.f32.gmra.mrb[0].mxu0 %v661
        %v663 = vpop.f32.mrb[0].mxu0
        %v664 = vadd.f32 0.0, %v663
        %v665 = vpop.f32.mrb[0].mxu0
        %666 = vmatprep.mubr.f32.mxu0 0.0
        %v667 = vand.u32 %v363, 4294901760
        %v668 = vsub.f32 %v363, %v667
        %v669 = vand.u32 %v668, 4294901760
        %v670 = vsub.f32 %v668, %v669
        %v671 = vand.u32 %v670, 4294901760
        %672 = vmatmul.mubr.f32.gmra.mrb[0].mxu0 %v671
        %v673 = vpop.f32.mrb[0].mxu0
        %v674 = vadd.f32 0.0, %v673
        %v675 = vpop.f32.mrb[0].mxu0
        %676 = vmatprep.mubr.f32.mxu0 0.0
        %v677 = vand.u32 %v366, 4294901760
        %v678 = vsub.f32 %v366, %v677
        %v679 = vand.u32 %v678, 4294901760
        %v680 = vsub.f32 %v678, %v679
        %v681 = vand.u32 %v680, 4294901760
        %682 = vmatmul.mubr.f32.gmra.mrb[0].mxu0 %v681
        %v683 = vpop.f32.mrb[0].mxu0
        %v684 = vadd.f32 0.0, %v683
        %v685 = vpop.f32.mrb[0].mxu0
        %686 = vmatprep.mubr.f32.mxu0 0.0
        %v687 = vand.u32 %v369, 4294901760
        %v688 = vsub.f32 %v369, %v687
        %v689 = vand.u32 %v688, 4294901760
        %v690 = vsub.f32 %v688, %v689
        %v691 = vand.u32 %v690, 4294901760
        %692 = vmatmul.mubr.f32.gmra.mrb[0].mxu0 %v691
        %v693 = vpop.f32.mrb[0].mxu0
        %v694 = vadd.f32 0.0, %v693
        %v695 = vpop.f32.mrb[0].mxu0
        %696 = vmatprep.mubr.f32.mxu0 0.0
        %v697 = vand.u32 %v372, 4294901760
        %v698 = vsub.f32 %v372, %v697
        %v699 = vand.u32 %v698, 4294901760
        %v700 = vsub.f32 %v698, %v699
        %v701 = vand.u32 %v700, 4294901760
        %702 = vmatmul.mubr.f32.gmra.mrb[0].mxu0 %v701
        %v703 = vpop.f32.mrb[0].mxu0
        %v704 = vadd.f32 0.0, %v703
        %v705 = vpop.f32.mrb[0].mxu0
        %706 = vmatprep.mubr.f32.mxu0 0.0
        %v707 = vand.u32 %v375, 4294901760
        %v708 = vsub.f32 %v375, %v707
        %v709 = vand.u32 %v708, 4294901760
        %v710 = vsub.f32 %v708, %v709
        %v711 = vand.u32 %v710, 4294901760
        %712 = vmatmul.mubr.f32.gmra.mrb[0].mxu0 %v711
        %v713 = vpop.f32.mrb[0].mxu0
        %v714 = vadd.f32 0.0, %v713
        %v715 = vpop.f32.mrb[0].mxu0
        %716 = vmatprep.mubr.f32.mxu0 0.0
        %v717 = vand.u32 %v378, 4294901760
        %v718 = vsub.f32 %v378, %v717
        %v719 = vand.u32 %v718, 4294901760
        %v720 = vsub.f32 %v718, %v719
        %v721 = vand.u32 %v720, 4294901760
        %722 = vmatmul.mubr.f32.gmra.mrb[0].mxu0 %v721
        %v723 = vpop.f32.mrb[0].mxu0
        %v724 = vadd.f32 0.0, %v723
        %v725 = vpop.f32.mrb[0].mxu0
        %726 = vmatprep.mubr.f32.mxu0 0.0
        %v727 = vand.u32 %v381, 4294901760
        %v728 = vsub.f32 %v381, %v727
        %v729 = vand.u32 %v728, 4294901760
        %v730 = vsub.f32 %v728, %v729
        %v731 = vand.u32 %v730, 4294901760
        %732 = vmatmul.mubr.f32.gmra.mrb[0].mxu0 %v731
        %v733 = vpop.f32.mrb[0].mxu0
        %v734 = vadd.f32 0.0, %v733
        %v735 = vpop.f32.mrb[0].mxu0
        %736 = vmatprep.mubr.f32.mxu0 0.0
        %v737 = vand.u32 %v384, 4294901760
        %v738 = vsub.f32 %v384, %v737
        %v739 = vand.u32 %v738, 4294901760
        %v740 = vsub.f32 %v738, %v739
        %v741 = vand.u32 %v740, 4294901760
        %742 = vmatmul.mubr.f32.gmra.mrb[0].mxu0 %v741
        %v743 = vpop.f32.mrb[0].mxu0
        %v744 = vadd.f32 0.0, %v743
        %v745 = vpop.f32.mrb[0].mxu0
        %746 = vmatprep.mubr.f32.mxu0 0.0
        %v747 = vand.u32 %v387, 4294901760
        %v748 = vsub.f32 %v387, %v747
        %v749 = vand.u32 %v748, 4294901760
        %v750 = vsub.f32 %v748, %v749
        %v751 = vand.u32 %v750, 4294901760
        %752 = vmatmul.mubr.f32.gmra.mrb[0].mxu0 %v751
        %v753 = vpop.f32.mrb[0].mxu0
        %v754 = vadd.f32 0.0, %v753
        %v755 = vpop.f32.mrb[0].mxu0
        %756 = vmatprep.mubr.f32.mxu0 0.0
        %v757 = vand.u32 %v390, 4294901760
        %v758 = vsub.f32 %v390, %v757
        %v759 = vand.u32 %v758, 4294901760
        %v760 = vsub.f32 %v758, %v759
        %v761 = vand.u32 %v760, 4294901760
        %762 = vmatmul.mubr.f32.gmra.mrb[0].mxu0 %v761
        %v763 = vpop.f32.mrb[0].mxu0
        %v764 = vadd.f32 0.0, %v763
        %v765 = vpop.f32.mrb[0].mxu0
        %766 = vmatprep.mubr.f32.mxu0 0.0
        %v767 = vand.u32 %v393, 4294901760
        %v768 = vsub.f32 %v393, %v767
        %v769 = vand.u32 %v768, 4294901760
        %v770 = vsub.f32 %v768, %v769
        %v771 = vand.u32 %v770, 4294901760
        %772 = vmatmul.mubr.f32.gmra.mrb[0].mxu0 %v771
        %v773 = vpop.f32.mrb[0].mxu0
        %v774 = vadd.f32 0.0, %v773
        %v775 = vpop.f32.mrb[0].mxu0
        %776 = vmatprep.mubr.f32.mxu0 0.0
        %v777 = vand.u32 %v396, 4294901760
        %v778 = vsub.f32 %v396, %v777
        %v779 = vand.u32 %v778, 4294901760
        %v780 = vsub.f32 %v778, %v779
        %v781 = vand.u32 %v780, 4294901760
        %782 = vmatmul.mubr.f32.gmra.mrb[0].mxu0 %v781
        %v783 = vpop.f32.mrb[0].mxu0
        %v784 = vadd.f32 0.0, %v783
        %v785 = vpop.f32.mrb[0].mxu0
        %786 = vdwg.mxu0
        %787 = vmatprep.subr.mxu0 0.0
        %v788 = vand.u32 %v233, 4294901760
        %v789 = vsub.f32 %v233, %v788
        %v790 = vand.u32 %v789, 4294901760
        %v791 = vsub.f32 %v789, %v790
        %v792 = vand.u32 %v791, 4294901760
        %793 = vmatpush1.msra.mxu0 %v792
        %794 = vmatprep.subr.mxu0 0.0
        %v795 = vand.u32 %v234, 4294901760
        %v796 = vsub.f32 %v234, %v795
        %v797 = vand.u32 %v796, 4294901760
        %v798 = vsub.f32 %v796, %v797
        %v799 = vand.u32 %v798, 4294901760
        %800 = vmatpush1.msra.mxu0 %v799
        %801 = vmatprep.subr.mxu0 0.0
        %v802 = vand.u32 %v235, 4294901760
        %v803 = vsub.f32 %v235, %v802
        %v804 = vand.u32 %v803, 4294901760
        %v805 = vsub.f32 %v803, %v804
        %v806 = vand.u32 %v805, 4294901760
        %807 = vmatpush1.msra.mxu0 %v806
        %808 = vmatprep.subr.mxu0 0.0
        %v809 = vand.u32 %v236, 4294901760
        %v810 = vsub.f32 %v236, %v809
        %v811 = vand.u32 %v810, 4294901760
        %v812 = vsub.f32 %v810, %v811
        %v813 = vand.u32 %v812, 4294901760
        %814 = vmatpush1.msra.mxu0 %v813
        %815 = vmatprep.subr.mxu0 0.0
        %816 = vmatpush1.msra.mxu0 0.0
        %817 = vmatprep.subr.mxu0 0.0
        %818 = vmatpush1.msra.mxu0 0.0
        %819 = vmatprep.subr.mxu0 0.0
        %820 = vmatpush1.msra.mxu0 0.0
        %821 = vmatprep.subr.mxu0 0.0
        %822 = vmatpush1.msra.mxu0 0.0
        %823 = vmatprep.subr.mxu0 0.0
        %824 = vmatpush1.msra.mxu0 0.0
        %825 = vmatprep.subr.mxu0 0.0
        %826 = vmatpush1.msra.mxu0 0.0
        %827 = vmatprep.subr.mxu0 0.0
        %828 = vmatpush1.msra.mxu0 0.0
        %829 = vmatprep.subr.mxu0 0.0
        %830 = vmatpush1.msra.mxu0 0.0
        %831 = vmatprep.subr.mxu0 0.0
        %832 = vmatpush1.msra.mxu0 0.0
        %833 = vmatprep.subr.mxu0 0.0
        %834 = vmatpush1.msra.mxu0 0.0
        %835 = vmatprep.subr.mxu0 0.0
        %836 = vmatpush1.msra.mxu0 0.0
        %837 = vmatprep.subr.mxu0 0.0
        %838 = vmatpush1.msra.mxu0 0.0
        %839 = vmatprep.subr.mxu0 0.0
        %840 = vmatpush1.msra.mxu0 0.0
        %841 = vmatprep.subr.mxu0 0.0
        %842 = vmatpush1.msra.mxu0 0.0
        %843 = vmatprep.subr.mxu0 0.0
        %844 = vmatpush1.msra.mxu0 0.0
        %845 = vmatprep.subr.mxu0 0.0
        %846 = vmatpush1.msra.mxu0 0.0
        %847 = vmatprep.subr.mxu0 0.0
        %848 = vmatpush1.msra.mxu0 0.0
        %849 = vmatprep.subr.mxu0 0.0
        %850 = vmatpush1.msra.mxu0 0.0
        %851 = vmatprep.subr.mxu0 0.0
        %852 = vmatpush1.msra.mxu0 0.0
        %853 = vmatprep.subr.mxu0 0.0
        %854 = vmatpush1.msra.mxu0 0.0
        %855 = vmatprep.subr.mxu0 0.0
        %856 = vmatpush1.msra.mxu0 0.0
        %857 = vmatprep.subr.mxu0 0.0
        %858 = vmatpush1.msra.mxu0 0.0
        %859 = vmatprep.subr.mxu0 0.0
        %860 = vmatpush1.msra.mxu0 0.0
        %861 = vmatprep.subr.mxu0 0.0
        %862 = vmatpush1.msra.mxu0 0.0
        %863 = vmatprep.subr.mxu0 0.0
        %864 = vmatpush1.msra.mxu0 0.0
        %865 = vmatprep.subr.mxu0 0.0
        %866 = vmatpush1.msra.mxu0 0.0
        %867 = vmatprep.subr.mxu0 0.0
        %868 = vmatpush1.msra.mxu0 0.0
        %869 = vmatprep.subr.mxu0 0.0
        %870 = vmatpush1.msra.mxu0 0.0
        %871 = vmatprep.mubr.f32.mxu0 0.0
        %v872 = vand.u32 %v303, 4294901760
        %873 = vmatmul.mubr.f32.gmra.mrb[0].mxu0 %v872
        %v874 = vpop.f32.mrb[0].mxu0
        %v875 = vadd.f32 %v474, %v874
        %v876 = vpop.f32.mrb[0].mxu0
        %877 = vmatprep.mubr.f32.mxu0 0.0
        %v878 = vand.u32 %v306, 4294901760
        %879 = vmatmul.mubr.f32.gmra.mrb[0].mxu0 %v878
        %v880 = vpop.f32.mrb[0].mxu0
        %v881 = vadd.f32 %v484, %v880
        %v882 = vpop.f32.mrb[0].mxu0
        %883 = vmatprep.mubr.f32.mxu0 0.0
        %v884 = vand.u32 %v309, 4294901760
        %885 = vmatmul.mubr.f32.gmra.mrb[0].mxu0 %v884
        %v886 = vpop.f32.mrb[0].mxu0
        %v887 = vadd.f32 %v494, %v886
        %v888 = vpop.f32.mrb[0].mxu0
        %889 = vmatprep.mubr.f32.mxu0 0.0
        %v890 = vand.u32 %v312, 4294901760
        %891 = vmatmul.mubr.f32.gmra.mrb[0].mxu0 %v890
        %v892 = vpop.f32.mrb[0].mxu0
        %v893 = vadd.f32 %v504, %v892
        %v894 = vpop.f32.mrb[0].mxu0
        %895 = vmatprep.mubr.f32.mxu0 0.0
        %v896 = vand.u32 %v315, 4294901760
        %897 = vmatmul.mubr.f32.gmra.mrb[0].mxu0 %v896
        %v898 = vpop.f32.mrb[0].mxu0
        %v899 = vadd.f32 %v514, %v898
        %v900 = vpop.f32.mrb[0].mxu0
        %901 = vmatprep.mubr.f32.mxu0 0.0
        %v902 = vand.u32 %v318, 4294901760
        %903 = vmatmul.mubr.f32.gmra.mrb[0].mxu0 %v902
        %v904 = vpop.f32.mrb[0].mxu0
        %v905 = vadd.f32 %v524, %v904
        %v906 = vpop.f32.mrb[0].mxu0
        %907 = vmatprep.mubr.f32.mxu0 0.0
        %v908 = vand.u32 %v321, 4294901760
        %909 = vmatmul.mubr.f32.gmra.mrb[0].mxu0 %v908
        %v910 = vpop.f32.mrb[0].mxu0
        %v911 = vadd.f32 %v534, %v910
        %v912 = vpop.f32.mrb[0].mxu0
        %913 = vmatprep.mubr.f32.mxu0 0.0
        %v914 = vand.u32 %v324, 4294901760
        %915 = vmatmul.mubr.f32.gmra.mrb[0].mxu0 %v914
        %v916 = vpop.f32.mrb[0].mxu0
        %v917 = vadd.f32 %v544, %v916
        %v918 = vpop.f32.mrb[0].mxu0
        %919 = vmatprep.mubr.f32.mxu0 0.0
        %v920 = vand.u32 %v327, 4294901760
        %921 = vmatmul.mubr.f32.gmra.mrb[0].mxu0 %v920
        %v922 = vpop.f32.mrb[0].mxu0
        %v923 = vadd.f32 %v554, %v922
        %v924 = vpop.f32.mrb[0].mxu0
        %925 = vmatprep.mubr.f32.mxu0 0.0
        %v926 = vand.u32 %v330, 4294901760
        %927 = vmatmul.mubr.f32.gmra.mrb[0].mxu0 %v926
        %v928 = vpop.f32.mrb[0].mxu0
        %v929 = vadd.f32 %v564, %v928
        %v930 = vpop.f32.mrb[0].mxu0
        %931 = vmatprep.mubr.f32.mxu0 0.0
        %v932 = vand.u32 %v333, 4294901760
        %933 = vmatmul.mubr.f32.gmra.mrb[0].mxu0 %v932
        %v934 = vpop.f32.mrb[0].mxu0
        %v935 = vadd.f32 %v574, %v934
        %v936 = vpop.f32.mrb[0].mxu0
        %937 = vmatprep.mubr.f32.mxu0 0.0
        %v938 = vand.u32 %v336, 4294901760
        %939 = vmatmul.mubr.f32.gmra.mrb[0].mxu0 %v938
        %v940 = vpop.f32.mrb[0].mxu0
        %v941 = vadd.f32 %v584, %v940
        %v942 = vpop.f32.mrb[0].mxu0
        %943 = vmatprep.mubr.f32.mxu0 0.0
        %v944 = vand.u32 %v339, 4294901760
        %945 = vmatmul.mubr.f32.gmra.mrb[0].mxu0 %v944
        %v946 = vpop.f32.mrb[0].mxu0
        %v947 = vadd.f32 %v594, %v946
        %v948 = vpop.f32.mrb[0].mxu0
        %949 = vmatprep.mubr.f32.mxu0 0.0
        %v950 = vand.u32 %v342, 4294901760
        %951 = vmatmul.mubr.f32.gmra.mrb[0].mxu0 %v950
        %v952 = vpop.f32.mrb[0].mxu0
        %v953 = vadd.f32 %v604, %v952
        %v954 = vpop.f32.mrb[0].mxu0
        %955 = vmatprep.mubr.f32.mxu0 0.0
        %v956 = vand.u32 %v345, 4294901760
        %957 = vmatmul.mubr.f32.gmra.mrb[0].mxu0 %v956
        %v958 = vpop.f32.mrb[0].mxu0
        %v959 = vadd.f32 %v614, %v958
        %v960 = vpop.f32.mrb[0].mxu0
        %961 = vmatprep.mubr.f32.mxu0 0.0
        %v962 = vand.u32 %v348, 4294901760
        %963 = vmatmul.mubr.f32.gmra.mrb[0].mxu0 %v962
        %v964 = vpop.f32.mrb[0].mxu0
        %v965 = vadd.f32 %v624, %v964
        %v966 = vpop.f32.mrb[0].mxu0
        %967 = vmatprep.mubr.f32.mxu0 0.0
        %v968 = vand.u32 %v351, 4294901760
        %969 = vmatmul.mubr.f32.gmra.mrb[0].mxu0 %v968
        %v970 = vpop.f32.mrb[0].mxu0
        %v971 = vadd.f32 %v634, %v970
        %v972 = vpop.f32.mrb[0].mxu0
        %973 = vmatprep.mubr.f32.mxu0 0.0
        %v974 = vand.u32 %v354, 4294901760
        %975 = vmatmul.mubr.f32.gmra.mrb[0].mxu0 %v974
        %v976 = vpop.f32.mrb[0].mxu0
        %v977 = vadd.f32 %v644, %v976
        %v978 = vpop.f32.mrb[0].mxu0
        %979 = vmatprep.mubr.f32.mxu0 0.0
        %v980 = vand.u32 %v357, 4294901760
        %981 = vmatmul.mubr.f32.gmra.mrb[0].mxu0 %v980
        %v982 = vpop.f32.mrb[0].mxu0
        %v983 = vadd.f32 %v654, %v982
        %v984 = vpop.f32.mrb[0].mxu0
        %985 = vmatprep.mubr.f32.mxu0 0.0
        %v986 = vand.u32 %v360, 4294901760
        %987 = vmatmul.mubr.f32.gmra.mrb[0].mxu0 %v986
        %v988 = vpop.f32.mrb[0].mxu0
        %v989 = vadd.f32 %v664, %v988
        %v990 = vpop.f32.mrb[0].mxu0
        %991 = vmatprep.mubr.f32.mxu0 0.0
        %v992 = vand.u32 %v363, 4294901760
        %993 = vmatmul.mubr.f32.gmra.mrb[0].mxu0 %v992
        %v994 = vpop.f32.mrb[0].mxu0
        %v995 = vadd.f32 %v674, %v994
        %v996 = vpop.f32.mrb[0].mxu0
        %997 = vmatprep.mubr.f32.mxu0 0.0
        %v998 = vand.u32 %v366, 4294901760
        %999 = vmatmul.mubr.f32.gmra.mrb[0].mxu0 %v998
        %v1000 = vpop.f32.mrb[0].mxu0
        %v1001 = vadd.f32 %v684, %v1000
        %v1002 = vpop.f32.mrb[0].mxu0
        %1003 = vmatprep.mubr.f32.mxu0 0.0
        %v1004 = vand.u32 %v369, 4294901760
        %1005 = vmatmul.mubr.f32.gmra.mrb[0].mxu0 %v1004
        %v1006 = vpop.f32.mrb[0].mxu0
        %v1007 = vadd.f32 %v694, %v1006
        %v1008 = vpop.f32.mrb[0].mxu0
        %1009 = vmatprep.mubr.f32.mxu0 0.0
        %v1010 = vand.u32 %v372, 4294901760
        %1011 = vmatmul.mubr.f32.gmra.mrb[0].mxu0 %v1010
        %v1012 = vpop.f32.mrb[0].mxu0
        %v1013 = vadd.f32 %v704, %v1012
        %v1014 = vpop.f32.mrb[0].mxu0
        %1015 = vmatprep.mubr.f32.mxu0 0.0
        %v1016 = vand.u32 %v375, 4294901760
        %1017 = vmatmul.mubr.f32.gmra.mrb[0].mxu0 %v1016
        %v1018 = vpop.f32.mrb[0].mxu0
        %v1019 = vadd.f32 %v714, %v1018
        %v1020 = vpop.f32.mrb[0].mxu0
        %1021 = vmatprep.mubr.f32.mxu0 0.0
        %v1022 = vand.u32 %v378, 4294901760
        %1023 = vmatmul.mubr.f32.gmra.mrb[0].mxu0 %v1022
        %v1024 = vpop.f32.mrb[0].mxu0
        %v1025 = vadd.f32 %v724, %v1024
        %v1026 = vpop.f32.mrb[0].mxu0
        %1027 = vmatprep.mubr.f32.mxu0 0.0
        %v1028 = vand.u32 %v381, 4294901760
        %1029 = vmatmul.mubr.f32.gmra.mrb[0].mxu0 %v1028
        %v1030 = vpop.f32.mrb[0].mxu0
        %v1031 = vadd.f32 %v734, %v1030
        %v1032 = vpop.f32.mrb[0].mxu0
        %1033 = vmatprep.mubr.f32.mxu0 0.0
        %v1034 = vand.u32 %v384, 4294901760
        %1035 = vmatmul.mubr.f32.gmra.mrb[0].mxu0 %v1034
        %v1036 = vpop.f32.mrb[0].mxu0
        %v1037 = vadd.f32 %v744, %v1036
        %v1038 = vpop.f32.mrb[0].mxu0
        %1039 = vmatprep.mubr.f32.mxu0 0.0
        %v1040 = vand.u32 %v387, 4294901760
        %1041 = vmatmul.mubr.f32.gmra.mrb[0].mxu0 %v1040
        %v1042 = vpop.f32.mrb[0].mxu0
        %v1043 = vadd.f32 %v754, %v1042
        %v1044 = vpop.f32.mrb[0].mxu0
        %1045 = vmatprep.mubr.f32.mxu0 0.0
        %v1046 = vand.u32 %v390, 4294901760
        %1047 = vmatmul.mubr.f32.gmra.mrb[0].mxu0 %v1046
        %v1048 = vpop.f32.mrb[0].mxu0
        %v1049 = vadd.f32 %v764, %v1048
        %v1050 = vpop.f32.mrb[0].mxu0
        %1051 = vmatprep.mubr.f32.mxu0 0.0
        %v1052 = vand.u32 %v393, 4294901760
        %1053 = vmatmul.mubr.f32.gmra.mrb[0].mxu0 %v1052
        %v1054 = vpop.f32.mrb[0].mxu0
        %v1055 = vadd.f32 %v774, %v1054
        %v1056 = vpop.f32.mrb[0].mxu0
        %1057 = vmatprep.mubr.f32.mxu0 0.0
        %v1058 = vand.u32 %v396, 4294901760
        %1059 = vmatmul.mubr.f32.gmra.mrb[0].mxu0 %v1058
        %v1060 = vpop.f32.mrb[0].mxu0
        %v1061 = vadd.f32 %v784, %v1060
        %v1062 = vpop.f32.mrb[0].mxu0
        %1063 = vdwg.mxu0
        %1064 = vmatprep.subr.mxu0 0.0
        %v1065 = vand.u32 %v233, 4294901760
        %v1066 = vsub.f32 %v233, %v1065
        %1067 = vmatpush1.msra.mxu0 %v1066
        %1068 = vmatprep.subr.mxu0 0.0
        %v1069 = vand.u32 %v234, 4294901760
        %v1070 = vsub.f32 %v234, %v1069
        %1071 = vmatpush1.msra.mxu0 %v1070
        %1072 = vmatprep.subr.mxu0 0.0
        %v1073 = vand.u32 %v235, 4294901760
        %v1074 = vsub.f32 %v235, %v1073
        %1075 = vmatpush1.msra.mxu0 %v1074
        %1076 = vmatprep.subr.mxu0 0.0
        %v1077 = vand.u32 %v236, 4294901760
        %v1078 = vsub.f32 %v236, %v1077
        %1079 = vmatpush1.msra.mxu0 %v1078
        %1080 = vmatprep.subr.mxu0 0.0
        %1081 = vmatpush1.msra.mxu0 0.0
        %1082 = vmatprep.subr.mxu0 0.0
        %1083 = vmatpush1.msra.mxu0 0.0
        %1084 = vmatprep.subr.mxu0 0.0
        %1085 = vmatpush1.msra.mxu0 0.0
        %1086 = vmatprep.subr.mxu0 0.0
        %1087 = vmatpush1.msra.mxu0 0.0
        %1088 = vmatprep.subr.mxu0 0.0
        %1089 = vmatpush1.msra.mxu0 0.0
        %1090 = vmatprep.subr.mxu0 0.0
        %1091 = vmatpush1.msra.mxu0 0.0
        %1092 = vmatprep.subr.mxu0 0.0
        %1093 = vmatpush1.msra.mxu0 0.0
        %1094 = vmatprep.subr.mxu0 0.0
        %1095 = vmatpush1.msra.mxu0 0.0
        %1096 = vmatprep.subr.mxu0 0.0
        %1097 = vmatpush1.msra.mxu0 0.0
        %1098 = vmatprep.subr.mxu0 0.0
        %1099 = vmatpush1.msra.mxu0 0.0
        %1100 = vmatprep.subr.mxu0 0.0
        %1101 = vmatpush1.msra.mxu0 0.0
        %1102 = vmatprep.subr.mxu0 0.0
        %1103 = vmatpush1.msra.mxu0 0.0
        %1104 = vmatprep.subr.mxu0 0.0
        %1105 = vmatpush1.msra.mxu0 0.0
        %1106 = vmatprep.subr.mxu0 0.0
        %1107 = vmatpush1.msra.mxu0 0.0
        %1108 = vmatprep.subr.mxu0 0.0
        %1109 = vmatpush1.msra.mxu0 0.0
        %1110 = vmatprep.subr.mxu0 0.0
        %1111 = vmatpush1.msra.mxu0 0.0
        %1112 = vmatprep.subr.mxu0 0.0
        %1113 = vmatpush1.msra.mxu0 0.0
        %1114 = vmatprep.subr.mxu0 0.0
        %1115 = vmatpush1.msra.mxu0 0.0
        %1116 = vmatprep.subr.mxu0 0.0
        %1117 = vmatpush1.msra.mxu0 0.0
        %1118 = vmatprep.subr.mxu0 0.0
        %1119 = vmatpush1.msra.mxu0 0.0
        %1120 = vmatprep.subr.mxu0 0.0
        %1121 = vmatpush1.msra.mxu0 0.0
        %1122 = vmatprep.subr.mxu0 0.0
        %1123 = vmatpush1.msra.mxu0 0.0
        %1124 = vmatprep.subr.mxu0 0.0
        %1125 = vmatpush1.msra.mxu0 0.0
        %1126 = vmatprep.subr.mxu0 0.0
        %1127 = vmatpush1.msra.mxu0 0.0
        %1128 = vmatprep.subr.mxu0 0.0
        %1129 = vmatpush1.msra.mxu0 0.0
        %1130 = vmatprep.subr.mxu0 0.0
        %1131 = vmatpush1.msra.mxu0 0.0
        %1132 = vmatprep.subr.mxu0 0.0
        %1133 = vmatpush1.msra.mxu0 0.0
        %1134 = vmatprep.subr.mxu0 0.0
        %1135 = vmatpush1.msra.mxu0 0.0
        %1136 = vmatprep.mubr.f32.mxu0 0.0
        %v1137 = vand.u32 %v303, 4294901760
        %v1138 = vsub.f32 %v303, %v1137
        %1139 = vmatmul.mubr.f32.gmra.mrb[0].mxu0 %v1138
        %v1140 = vpop.f32.mrb[0].mxu0
        %v1141 = vadd.f32 %v875, %v1140
        %v1142 = vpop.f32.mrb[0].mxu0
        %1143 = vmatprep.mubr.f32.mxu0 0.0
        %v1144 = vand.u32 %v306, 4294901760
        %v1145 = vsub.f32 %v306, %v1144
        %1146 = vmatmul.mubr.f32.gmra.mrb[0].mxu0 %v1145
        %v1147 = vpop.f32.mrb[0].mxu0
        %v1148 = vadd.f32 %v881, %v1147
        %v1149 = vpop.f32.mrb[0].mxu0
        %1150 = vmatprep.mubr.f32.mxu0 0.0
        %v1151 = vand.u32 %v309, 4294901760
        %v1152 = vsub.f32 %v309, %v1151
        %1153 = vmatmul.mubr.f32.gmra.mrb[0].mxu0 %v1152
        %v1154 = vpop.f32.mrb[0].mxu0
        %v1155 = vadd.f32 %v887, %v1154
        %v1156 = vpop.f32.mrb[0].mxu0
        %1157 = vmatprep.mubr.f32.mxu0 0.0
        %v1158 = vand.u32 %v312, 4294901760
        %v1159 = vsub.f32 %v312, %v1158
        %1160 = vmatmul.mubr.f32.gmra.mrb[0].mxu0 %v1159
        %v1161 = vpop.f32.mrb[0].mxu0
        %v1162 = vadd.f32 %v893, %v1161
        %v1163 = vpop.f32.mrb[0].mxu0
        %1164 = vmatprep.mubr.f32.mxu0 0.0
        %v1165 = vand.u32 %v315, 4294901760
        %v1166 = vsub.f32 %v315, %v1165
        %1167 = vmatmul.mubr.f32.gmra.mrb[0].mxu0 %v1166
        %v1168 = vpop.f32.mrb[0].mxu0
        %v1169 = vadd.f32 %v899, %v1168
        %v1170 = vpop.f32.mrb[0].mxu0
        %1171 = vmatprep.mubr.f32.mxu0 0.0
        %v1172 = vand.u32 %v318, 4294901760
        %v1173 = vsub.f32 %v318, %v1172
        %1174 = vmatmul.mubr.f32.gmra.mrb[0].mxu0 %v1173
        %v1175 = vpop.f32.mrb[0].mxu0
        %v1176 = vadd.f32 %v905, %v1175
        %v1177 = vpop.f32.mrb[0].mxu0
        %1178 = vmatprep.mubr.f32.mxu0 0.0
        %v1179 = vand.u32 %v321, 4294901760
        %v1180 = vsub.f32 %v321, %v1179
        %1181 = vmatmul.mubr.f32.gmra.mrb[0].mxu0 %v1180
        %v1182 = vpop.f32.mrb[0].mxu0
        %v1183 = vadd.f32 %v911, %v1182
        %v1184 = vpop.f32.mrb[0].mxu0
        %1185 = vmatprep.mubr.f32.mxu0 0.0
        %v1186 = vand.u32 %v324, 4294901760
        %v1187 = vsub.f32 %v324, %v1186
        %1188 = vmatmul.mubr.f32.gmra.mrb[0].mxu0 %v1187
        %v1189 = vpop.f32.mrb[0].mxu0
        %v1190 = vadd.f32 %v917, %v1189
        %v1191 = vpop.f32.mrb[0].mxu0
        %1192 = vmatprep.mubr.f32.mxu0 0.0
        %v1193 = vand.u32 %v327, 4294901760
        %v1194 = vsub.f32 %v327, %v1193
        %1195 = vmatmul.mubr.f32.gmra.mrb[0].mxu0 %v1194
        %v1196 = vpop.f32.mrb[0].mxu0
        %v1197 = vadd.f32 %v923, %v1196
        %v1198 = vpop.f32.mrb[0].mxu0
        %1199 = vmatprep.mubr.f32.mxu0 0.0
        %v1200 = vand.u32 %v330, 4294901760
        %v1201 = vsub.f32 %v330, %v1200
        %1202 = vmatmul.mubr.f32.gmra.mrb[0].mxu0 %v1201
        %v1203 = vpop.f32.mrb[0].mxu0
        %v1204 = vadd.f32 %v929, %v1203
        %v1205 = vpop.f32.mrb[0].mxu0
        %1206 = vmatprep.mubr.f32.mxu0 0.0
        %v1207 = vand.u32 %v333, 4294901760
        %v1208 = vsub.f32 %v333, %v1207
        %1209 = vmatmul.mubr.f32.gmra.mrb[0].mxu0 %v1208
        %v1210 = vpop.f32.mrb[0].mxu0
        %v1211 = vadd.f32 %v935, %v1210
        %v1212 = vpop.f32.mrb[0].mxu0
        %1213 = vmatprep.mubr.f32.mxu0 0.0
        %v1214 = vand.u32 %v336, 4294901760
        %v1215 = vsub.f32 %v336, %v1214
        %1216 = vmatmul.mubr.f32.gmra.mrb[0].mxu0 %v1215
        %v1217 = vpop.f32.mrb[0].mxu0
        %v1218 = vadd.f32 %v941, %v1217
        %v1219 = vpop.f32.mrb[0].mxu0
        %1220 = vmatprep.mubr.f32.mxu0 0.0
        %v1221 = vand.u32 %v339, 4294901760
        %v1222 = vsub.f32 %v339, %v1221
        %1223 = vmatmul.mubr.f32.gmra.mrb[0].mxu0 %v1222
        %v1224 = vpop.f32.mrb[0].mxu0
        %v1225 = vadd.f32 %v947, %v1224
        %v1226 = vpop.f32.mrb[0].mxu0
        %1227 = vmatprep.mubr.f32.mxu0 0.0
        %v1228 = vand.u32 %v342, 4294901760
        %v1229 = vsub.f32 %v342, %v1228
        %1230 = vmatmul.mubr.f32.gmra.mrb[0].mxu0 %v1229
        %v1231 = vpop.f32.mrb[0].mxu0
        %v1232 = vadd.f32 %v953, %v1231
        %v1233 = vpop.f32.mrb[0].mxu0
        %1234 = vmatprep.mubr.f32.mxu0 0.0
        %v1235 = vand.u32 %v345, 4294901760
        %v1236 = vsub.f32 %v345, %v1235
        %1237 = vmatmul.mubr.f32.gmra.mrb[0].mxu0 %v1236
        %v1238 = vpop.f32.mrb[0].mxu0
        %v1239 = vadd.f32 %v959, %v1238
        %v1240 = vpop.f32.mrb[0].mxu0
        %1241 = vmatprep.mubr.f32.mxu0 0.0
        %v1242 = vand.u32 %v348, 4294901760
        %v1243 = vsub.f32 %v348, %v1242
        %1244 = vmatmul.mubr.f32.gmra.mrb[0].mxu0 %v1243
        %v1245 = vpop.f32.mrb[0].mxu0
        %v1246 = vadd.f32 %v965, %v1245
        %v1247 = vpop.f32.mrb[0].mxu0
        %1248 = vmatprep.mubr.f32.mxu0 0.0
        %v1249 = vand.u32 %v351, 4294901760
        %v1250 = vsub.f32 %v351, %v1249
        %1251 = vmatmul.mubr.f32.gmra.mrb[0].mxu0 %v1250
        %v1252 = vpop.f32.mrb[0].mxu0
        %v1253 = vadd.f32 %v971, %v1252
        %v1254 = vpop.f32.mrb[0].mxu0
        %1255 = vmatprep.mubr.f32.mxu0 0.0
        %v1256 = vand.u32 %v354, 4294901760
        %v1257 = vsub.f32 %v354, %v1256
        %1258 = vmatmul.mubr.f32.gmra.mrb[0].mxu0 %v1257
        %v1259 = vpop.f32.mrb[0].mxu0
        %v1260 = vadd.f32 %v977, %v1259
        %v1261 = vpop.f32.mrb[0].mxu0
        %1262 = vmatprep.mubr.f32.mxu0 0.0
        %v1263 = vand.u32 %v357, 4294901760
        %v1264 = vsub.f32 %v357, %v1263
        %1265 = vmatmul.mubr.f32.gmra.mrb[0].mxu0 %v1264
        %v1266 = vpop.f32.mrb[0].mxu0
        %v1267 = vadd.f32 %v983, %v1266
        %v1268 = vpop.f32.mrb[0].mxu0
        %1269 = vmatprep.mubr.f32.mxu0 0.0
        %v1270 = vand.u32 %v360, 4294901760
        %v1271 = vsub.f32 %v360, %v1270
        %1272 = vmatmul.mubr.f32.gmra.mrb[0].mxu0 %v1271
        %v1273 = vpop.f32.mrb[0].mxu0
        %v1274 = vadd.f32 %v989, %v1273
        %v1275 = vpop.f32.mrb[0].mxu0
        %1276 = vmatprep.mubr.f32.mxu0 0.0
        %v1277 = vand.u32 %v363, 4294901760
        %v1278 = vsub.f32 %v363, %v1277
        %1279 = vmatmul.mubr.f32.gmra.mrb[0].mxu0 %v1278
        %v1280 = vpop.f32.mrb[0].mxu0
        %v1281 = vadd.f32 %v995, %v1280
        %v1282 = vpop.f32.mrb[0].mxu0
        %1283 = vmatprep.mubr.f32.mxu0 0.0
        %v1284 = vand.u32 %v366, 4294901760
        %v1285 = vsub.f32 %v366, %v1284
        %1286 = vmatmul.mubr.f32.gmra.mrb[0].mxu0 %v1285
        %v1287 = vpop.f32.mrb[0].mxu0
        %v1288 = vadd.f32 %v1001, %v1287
        %v1289 = vpop.f32.mrb[0].mxu0
        %1290 = vmatprep.mubr.f32.mxu0 0.0
        %v1291 = vand.u32 %v369, 4294901760
        %v1292 = vsub.f32 %v369, %v1291
        %1293 = vmatmul.mubr.f32.gmra.mrb[0].mxu0 %v1292
        %v1294 = vpop.f32.mrb[0].mxu0
        %v1295 = vadd.f32 %v1007, %v1294
        %v1296 = vpop.f32.mrb[0].mxu0
        %1297 = vmatprep.mubr.f32.mxu0 0.0
        %v1298 = vand.u32 %v372, 4294901760
        %v1299 = vsub.f32 %v372, %v1298
        %1300 = vmatmul.mubr.f32.gmra.mrb[0].mxu0 %v1299
        %v1301 = vpop.f32.mrb[0].mxu0
        %v1302 = vadd.f32 %v1013, %v1301
        %v1303 = vpop.f32.mrb[0].mxu0
        %1304 = vmatprep.mubr.f32.mxu0 0.0
        %v1305 = vand.u32 %v375, 4294901760
        %v1306 = vsub.f32 %v375, %v1305
        %1307 = vmatmul.mubr.f32.gmra.mrb[0].mxu0 %v1306
        %v1308 = vpop.f32.mrb[0].mxu0
        %v1309 = vadd.f32 %v1019, %v1308
        %v1310 = vpop.f32.mrb[0].mxu0
        %1311 = vmatprep.mubr.f32.mxu0 0.0
        %v1312 = vand.u32 %v378, 4294901760
        %v1313 = vsub.f32 %v378, %v1312
        %1314 = vmatmul.mubr.f32.gmra.mrb[0].mxu0 %v1313
        %v1315 = vpop.f32.mrb[0].mxu0
        %v1316 = vadd.f32 %v1025, %v1315
        %v1317 = vpop.f32.mrb[0].mxu0
        %1318 = vmatprep.mubr.f32.mxu0 0.0
        %v1319 = vand.u32 %v381, 4294901760
        %v1320 = vsub.f32 %v381, %v1319
        %1321 = vmatmul.mubr.f32.gmra.mrb[0].mxu0 %v1320
        %v1322 = vpop.f32.mrb[0].mxu0
        %v1323 = vadd.f32 %v1031, %v1322
        %v1324 = vpop.f32.mrb[0].mxu0
        %1325 = vmatprep.mubr.f32.mxu0 0.0
        %v1326 = vand.u32 %v384, 4294901760
        %v1327 = vsub.f32 %v384, %v1326
        %1328 = vmatmul.mubr.f32.gmra.mrb[0].mxu0 %v1327
        %v1329 = vpop.f32.mrb[0].mxu0
        %v1330 = vadd.f32 %v1037, %v1329
        %v1331 = vpop.f32.mrb[0].mxu0
        %1332 = vmatprep.mubr.f32.mxu0 0.0
        %v1333 = vand.u32 %v387, 4294901760
        %v1334 = vsub.f32 %v387, %v1333
        %1335 = vmatmul.mubr.f32.gmra.mrb[0].mxu0 %v1334
        %v1336 = vpop.f32.mrb[0].mxu0
        %v1337 = vadd.f32 %v1043, %v1336
        %v1338 = vpop.f32.mrb[0].mxu0
        %1339 = vmatprep.mubr.f32.mxu0 0.0
        %v1340 = vand.u32 %v390, 4294901760
        %v1341 = vsub.f32 %v390, %v1340
        %1342 = vmatmul.mubr.f32.gmra.mrb[0].mxu0 %v1341
        %v1343 = vpop.f32.mrb[0].mxu0
        %v1344 = vadd.f32 %v1049, %v1343
        %v1345 = vpop.f32.mrb[0].mxu0
        %1346 = vmatprep.mubr.f32.mxu0 0.0
        %v1347 = vand.u32 %v393, 4294901760
        %v1348 = vsub.f32 %v393, %v1347
        %1349 = vmatmul.mubr.f32.gmra.mrb[0].mxu0 %v1348
        %v1350 = vpop.f32.mrb[0].mxu0
        %v1351 = vadd.f32 %v1055, %v1350
        %v1352 = vpop.f32.mrb[0].mxu0
        %1353 = vmatprep.mubr.f32.mxu0 0.0
        %v1354 = vand.u32 %v396, 4294901760
        %v1355 = vsub.f32 %v396, %v1354
        %1356 = vmatmul.mubr.f32.gmra.mrb[0].mxu0 %v1355
        %v1357 = vpop.f32.mrb[0].mxu0
        %v1358 = vadd.f32 %v1061, %v1357
        %v1359 = vpop.f32.mrb[0].mxu0
        %1360 = vdwg.mxu0
        %1361 = vmatprep.subr.mxu0 0.0
        %v1362 = vand.u32 %v233, 4294901760
        %1363 = vmatpush1.msra.mxu0 %v1362
        %1364 = vmatprep.subr.mxu0 0.0
        %v1365 = vand.u32 %v234, 4294901760
        %1366 = vmatpush1.msra.mxu0 %v1365
        %1367 = vmatprep.subr.mxu0 0.0
        %v1368 = vand.u32 %v235, 4294901760
        %1369 = vmatpush1.msra.mxu0 %v1368
        %1370 = vmatprep.subr.mxu0 0.0
        %v1371 = vand.u32 %v236, 4294901760
        %1372 = vmatpush1.msra.mxu0 %v1371
        %1373 = vmatprep.subr.mxu0 0.0
        %1374 = vmatpush1.msra.mxu0 0.0
        %1375 = vmatprep.subr.mxu0 0.0
        %1376 = vmatpush1.msra.mxu0 0.0
        %1377 = vmatprep.subr.mxu0 0.0
        %1378 = vmatpush1.msra.mxu0 0.0
        %1379 = vmatprep.subr.mxu0 0.0
        %1380 = vmatpush1.msra.mxu0 0.0
        %1381 = vmatprep.subr.mxu0 0.0
        %1382 = vmatpush1.msra.mxu0 0.0
        %1383 = vmatprep.subr.mxu0 0.0
        %1384 = vmatpush1.msra.mxu0 0.0
        %1385 = vmatprep.subr.mxu0 0.0
        %1386 = vmatpush1.msra.mxu0 0.0
        %1387 = vmatprep.subr.mxu0 0.0
        %1388 = vmatpush1.msra.mxu0 0.0
        %1389 = vmatprep.subr.mxu0 0.0
        %1390 = vmatpush1.msra.mxu0 0.0
        %1391 = vmatprep.subr.mxu0 0.0
        %1392 = vmatpush1.msra.mxu0 0.0
        %1393 = vmatprep.subr.mxu0 0.0
        %1394 = vmatpush1.msra.mxu0 0.0
        %1395 = vmatprep.subr.mxu0 0.0
        %1396 = vmatpush1.msra.mxu0 0.0
        %1397 = vmatprep.subr.mxu0 0.0
        %1398 = vmatpush1.msra.mxu0 0.0
        %1399 = vmatprep.subr.mxu0 0.0
        %1400 = vmatpush1.msra.mxu0 0.0
        %1401 = vmatprep.subr.mxu0 0.0
        %1402 = vmatpush1.msra.mxu0 0.0
        %1403 = vmatprep.subr.mxu0 0.0
        %1404 = vmatpush1.msra.mxu0 0.0
        %1405 = vmatprep.subr.mxu0 0.0
        %1406 = vmatpush1.msra.mxu0 0.0
        %1407 = vmatprep.subr.mxu0 0.0
        %1408 = vmatpush1.msra.mxu0 0.0
        %1409 = vmatprep.subr.mxu0 0.0
        %1410 = vmatpush1.msra.mxu0 0.0
        %1411 = vmatprep.subr.mxu0 0.0
        %1412 = vmatpush1.msra.mxu0 0.0
        %1413 = vmatprep.subr.mxu0 0.0
        %1414 = vmatpush1.msra.mxu0 0.0
        %1415 = vmatprep.subr.mxu0 0.0
        %1416 = vmatpush1.msra.mxu0 0.0
        %1417 = vmatprep.subr.mxu0 0.0
        %1418 = vmatpush1.msra.mxu0 0.0
        %1419 = vmatprep.subr.mxu0 0.0
        %1420 = vmatpush1.msra.mxu0 0.0
        %1421 = vmatprep.subr.mxu0 0.0
        %1422 = vmatpush1.msra.mxu0 0.0
        %1423 = vmatprep.subr.mxu0 0.0
        %1424 = vmatpush1.msra.mxu0 0.0
        %1425 = vmatprep.subr.mxu0 0.0
        %1426 = vmatpush1.msra.mxu0 0.0
        %1427 = vmatprep.subr.mxu0 0.0
        %1428 = vmatpush1.msra.mxu0 0.0
        %1429 = vmatprep.mubr.f32.mxu0 0.0
        %v1430 = vand.u32 %v303, 4294901760
        %v1431 = vsub.f32 %v303, %v1430
        %v1432 = vand.u32 %v1431, 4294901760
        %1433 = vmatmul.mubr.f32.gmra.mrb[0].mxu0 %v1432
        %v1434 = vpop.f32.mrb[0].mxu0
        %v1435 = vadd.f32 %v1141, %v1434
        %v1436 = vpop.f32.mrb[0].mxu0
        %1437 = vmatprep.mubr.f32.mxu0 0.0
        %v1438 = vand.u32 %v306, 4294901760
        %v1439 = vsub.f32 %v306, %v1438
        %v1440 = vand.u32 %v1439, 4294901760
        %1441 = vmatmul.mubr.f32.gmra.mrb[0].mxu0 %v1440
        %v1442 = vpop.f32.mrb[0].mxu0
        %v1443 = vadd.f32 %v1148, %v1442
        %v1444 = vpop.f32.mrb[0].mxu0
        %1445 = vmatprep.mubr.f32.mxu0 0.0
        %v1446 = vand.u32 %v309, 4294901760
        %v1447 = vsub.f32 %v309, %v1446
        %v1448 = vand.u32 %v1447, 4294901760
        %1449 = vmatmul.mubr.f32.gmra.mrb[0].mxu0 %v1448
        %v1450 = vpop.f32.mrb[0].mxu0
        %v1451 = vadd.f32 %v1155, %v1450
        %v1452 = vpop.f32.mrb[0].mxu0
        %1453 = vmatprep.mubr.f32.mxu0 0.0
        %v1454 = vand.u32 %v312, 4294901760
        %v1455 = vsub.f32 %v312, %v1454
        %v1456 = vand.u32 %v1455, 4294901760
        %1457 = vmatmul.mubr.f32.gmra.mrb[0].mxu0 %v1456
        %v1458 = vpop.f32.mrb[0].mxu0
        %v1459 = vadd.f32 %v1162, %v1458
        %v1460 = vpop.f32.mrb[0].mxu0
        %1461 = vmatprep.mubr.f32.mxu0 0.0
        %v1462 = vand.u32 %v315, 4294901760
        %v1463 = vsub.f32 %v315, %v1462
        %v1464 = vand.u32 %v1463, 4294901760
        %1465 = vmatmul.mubr.f32.gmra.mrb[0].mxu0 %v1464
        %v1466 = vpop.f32.mrb[0].mxu0
        %v1467 = vadd.f32 %v1169, %v1466
        %v1468 = vpop.f32.mrb[0].mxu0
        %1469 = vmatprep.mubr.f32.mxu0 0.0
        %v1470 = vand.u32 %v318, 4294901760
        %v1471 = vsub.f32 %v318, %v1470
        %v1472 = vand.u32 %v1471, 4294901760
        %1473 = vmatmul.mubr.f32.gmra.mrb[0].mxu0 %v1472
        %v1474 = vpop.f32.mrb[0].mxu0
        %v1475 = vadd.f32 %v1176, %v1474
        %v1476 = vpop.f32.mrb[0].mxu0
        %1477 = vmatprep.mubr.f32.mxu0 0.0
        %v1478 = vand.u32 %v321, 4294901760
        %v1479 = vsub.f32 %v321, %v1478
        %v1480 = vand.u32 %v1479, 4294901760
        %1481 = vmatmul.mubr.f32.gmra.mrb[0].mxu0 %v1480
        %v1482 = vpop.f32.mrb[0].mxu0
        %v1483 = vadd.f32 %v1183, %v1482
        %v1484 = vpop.f32.mrb[0].mxu0
        %1485 = vmatprep.mubr.f32.mxu0 0.0
        %v1486 = vand.u32 %v324, 4294901760
        %v1487 = vsub.f32 %v324, %v1486
        %v1488 = vand.u32 %v1487, 4294901760
        %1489 = vmatmul.mubr.f32.gmra.mrb[0].mxu0 %v1488
        %v1490 = vpop.f32.mrb[0].mxu0
        %v1491 = vadd.f32 %v1190, %v1490
        %v1492 = vpop.f32.mrb[0].mxu0
        %1493 = vmatprep.mubr.f32.mxu0 0.0
        %v1494 = vand.u32 %v327, 4294901760
        %v1495 = vsub.f32 %v327, %v1494
        %v1496 = vand.u32 %v1495, 4294901760
        %1497 = vmatmul.mubr.f32.gmra.mrb[0].mxu0 %v1496
        %v1498 = vpop.f32.mrb[0].mxu0
        %v1499 = vadd.f32 %v1197, %v1498
        %v1500 = vpop.f32.mrb[0].mxu0
        %1501 = vmatprep.mubr.f32.mxu0 0.0
        %v1502 = vand.u32 %v330, 4294901760
        %v1503 = vsub.f32 %v330, %v1502
        %v1504 = vand.u32 %v1503, 4294901760
        %1505 = vmatmul.mubr.f32.gmra.mrb[0].mxu0 %v1504
        %v1506 = vpop.f32.mrb[0].mxu0
        %v1507 = vadd.f32 %v1204, %v1506
        %v1508 = vpop.f32.mrb[0].mxu0
        %1509 = vmatprep.mubr.f32.mxu0 0.0
        %v1510 = vand.u32 %v333, 4294901760
        %v1511 = vsub.f32 %v333, %v1510
        %v1512 = vand.u32 %v1511, 4294901760
        %1513 = vmatmul.mubr.f32.gmra.mrb[0].mxu0 %v1512
        %v1514 = vpop.f32.mrb[0].mxu0
        %v1515 = vadd.f32 %v1211, %v1514
        %v1516 = vpop.f32.mrb[0].mxu0
        %1517 = vmatprep.mubr.f32.mxu0 0.0
        %v1518 = vand.u32 %v336, 4294901760
        %v1519 = vsub.f32 %v336, %v1518
        %v1520 = vand.u32 %v1519, 4294901760
        %1521 = vmatmul.mubr.f32.gmra.mrb[0].mxu0 %v1520
        %v1522 = vpop.f32.mrb[0].mxu0
        %v1523 = vadd.f32 %v1218, %v1522
        %v1524 = vpop.f32.mrb[0].mxu0
        %1525 = vmatprep.mubr.f32.mxu0 0.0
        %v1526 = vand.u32 %v339, 4294901760
        %v1527 = vsub.f32 %v339, %v1526
        %v1528 = vand.u32 %v1527, 4294901760
        %1529 = vmatmul.mubr.f32.gmra.mrb[0].mxu0 %v1528
        %v1530 = vpop.f32.mrb[0].mxu0
        %v1531 = vadd.f32 %v1225, %v1530
        %v1532 = vpop.f32.mrb[0].mxu0
        %1533 = vmatprep.mubr.f32.mxu0 0.0
        %v1534 = vand.u32 %v342, 4294901760
        %v1535 = vsub.f32 %v342, %v1534
        %v1536 = vand.u32 %v1535, 4294901760
        %1537 = vmatmul.mubr.f32.gmra.mrb[0].mxu0 %v1536
        %v1538 = vpop.f32.mrb[0].mxu0
        %v1539 = vadd.f32 %v1232, %v1538
        %v1540 = vpop.f32.mrb[0].mxu0
        %1541 = vmatprep.mubr.f32.mxu0 0.0
        %v1542 = vand.u32 %v345, 4294901760
        %v1543 = vsub.f32 %v345, %v1542
        %v1544 = vand.u32 %v1543, 4294901760
        %1545 = vmatmul.mubr.f32.gmra.mrb[0].mxu0 %v1544
        %v1546 = vpop.f32.mrb[0].mxu0
        %v1547 = vadd.f32 %v1239, %v1546
        %v1548 = vpop.f32.mrb[0].mxu0
        %1549 = vmatprep.mubr.f32.mxu0 0.0
        %v1550 = vand.u32 %v348, 4294901760
        %v1551 = vsub.f32 %v348, %v1550
        %v1552 = vand.u32 %v1551, 4294901760
        %1553 = vmatmul.mubr.f32.gmra.mrb[0].mxu0 %v1552
        %v1554 = vpop.f32.mrb[0].mxu0
        %v1555 = vadd.f32 %v1246, %v1554
        %v1556 = vpop.f32.mrb[0].mxu0
        %1557 = vmatprep.mubr.f32.mxu0 0.0
        %v1558 = vand.u32 %v351, 4294901760
        %v1559 = vsub.f32 %v351, %v1558
        %v1560 = vand.u32 %v1559, 4294901760
        %1561 = vmatmul.mubr.f32.gmra.mrb[0].mxu0 %v1560
        %v1562 = vpop.f32.mrb[0].mxu0
        %v1563 = vadd.f32 %v1253, %v1562
        %v1564 = vpop.f32.mrb[0].mxu0
        %1565 = vmatprep.mubr.f32.mxu0 0.0
        %v1566 = vand.u32 %v354, 4294901760
        %v1567 = vsub.f32 %v354, %v1566
        %v1568 = vand.u32 %v1567, 4294901760
        %1569 = vmatmul.mubr.f32.gmra.mrb[0].mxu0 %v1568
        %v1570 = vpop.f32.mrb[0].mxu0
        %v1571 = vadd.f32 %v1260, %v1570
        %v1572 = vpop.f32.mrb[0].mxu0
        %1573 = vmatprep.mubr.f32.mxu0 0.0
        %v1574 = vand.u32 %v357, 4294901760
        %v1575 = vsub.f32 %v357, %v1574
        %v1576 = vand.u32 %v1575, 4294901760
        %1577 = vmatmul.mubr.f32.gmra.mrb[0].mxu0 %v1576
        %v1578 = vpop.f32.mrb[0].mxu0
        %v1579 = vadd.f32 %v1267, %v1578
        %v1580 = vpop.f32.mrb[0].mxu0
        %1581 = vmatprep.mubr.f32.mxu0 0.0
        %v1582 = vand.u32 %v360, 4294901760
        %v1583 = vsub.f32 %v360, %v1582
        %v1584 = vand.u32 %v1583, 4294901760
        %1585 = vmatmul.mubr.f32.gmra.mrb[0].mxu0 %v1584
        %v1586 = vpop.f32.mrb[0].mxu0
        %v1587 = vadd.f32 %v1274, %v1586
        %v1588 = vpop.f32.mrb[0].mxu0
        %1589 = vmatprep.mubr.f32.mxu0 0.0
        %v1590 = vand.u32 %v363, 4294901760
        %v1591 = vsub.f32 %v363, %v1590
        %v1592 = vand.u32 %v1591, 4294901760
        %1593 = vmatmul.mubr.f32.gmra.mrb[0].mxu0 %v1592
        %v1594 = vpop.f32.mrb[0].mxu0
        %v1595 = vadd.f32 %v1281, %v1594
        %v1596 = vpop.f32.mrb[0].mxu0
        %1597 = vmatprep.mubr.f32.mxu0 0.0
        %v1598 = vand.u32 %v366, 4294901760
        %v1599 = vsub.f32 %v366, %v1598
        %v1600 = vand.u32 %v1599, 4294901760
        %1601 = vmatmul.mubr.f32.gmra.mrb[0].mxu0 %v1600
        %v1602 = vpop.f32.mrb[0].mxu0
        %v1603 = vadd.f32 %v1288, %v1602
        %v1604 = vpop.f32.mrb[0].mxu0
        %1605 = vmatprep.mubr.f32.mxu0 0.0
        %v1606 = vand.u32 %v369, 4294901760
        %v1607 = vsub.f32 %v369, %v1606
        %v1608 = vand.u32 %v1607, 4294901760
        %1609 = vmatmul.mubr.f32.gmra.mrb[0].mxu0 %v1608
        %v1610 = vpop.f32.mrb[0].mxu0
        %v1611 = vadd.f32 %v1295, %v1610
        %v1612 = vpop.f32.mrb[0].mxu0
        %1613 = vmatprep.mubr.f32.mxu0 0.0
        %v1614 = vand.u32 %v372, 4294901760
        %v1615 = vsub.f32 %v372, %v1614
        %v1616 = vand.u32 %v1615, 4294901760
        %1617 = vmatmul.mubr.f32.gmra.mrb[0].mxu0 %v1616
        %v1618 = vpop.f32.mrb[0].mxu0
        %v1619 = vadd.f32 %v1302, %v1618
        %v1620 = vpop.f32.mrb[0].mxu0
        %1621 = vmatprep.mubr.f32.mxu0 0.0
        %v1622 = vand.u32 %v375, 4294901760
        %v1623 = vsub.f32 %v375, %v1622
        %v1624 = vand.u32 %v1623, 4294901760
        %1625 = vmatmul.mubr.f32.gmra.mrb[0].mxu0 %v1624
        %v1626 = vpop.f32.mrb[0].mxu0
        %v1627 = vadd.f32 %v1309, %v1626
        %v1628 = vpop.f32.mrb[0].mxu0
        %1629 = vmatprep.mubr.f32.mxu0 0.0
        %v1630 = vand.u32 %v378, 4294901760
        %v1631 = vsub.f32 %v378, %v1630
        %v1632 = vand.u32 %v1631, 4294901760
        %1633 = vmatmul.mubr.f32.gmra.mrb[0].mxu0 %v1632
        %v1634 = vpop.f32.mrb[0].mxu0
        %v1635 = vadd.f32 %v1316, %v1634
        %v1636 = vpop.f32.mrb[0].mxu0
        %1637 = vmatprep.mubr.f32.mxu0 0.0
        %v1638 = vand.u32 %v381, 4294901760
        %v1639 = vsub.f32 %v381, %v1638
        %v1640 = vand.u32 %v1639, 4294901760
        %1641 = vmatmul.mubr.f32.gmra.mrb[0].mxu0 %v1640
        %v1642 = vpop.f32.mrb[0].mxu0
        %v1643 = vadd.f32 %v1323, %v1642
        %v1644 = vpop.f32.mrb[0].mxu0
        %1645 = vmatprep.mubr.f32.mxu0 0.0
        %v1646 = vand.u32 %v384, 4294901760
        %v1647 = vsub.f32 %v384, %v1646
        %v1648 = vand.u32 %v1647, 4294901760
        %1649 = vmatmul.mubr.f32.gmra.mrb[0].mxu0 %v1648
        %v1650 = vpop.f32.mrb[0].mxu0
        %v1651 = vadd.f32 %v1330, %v1650
        %v1652 = vpop.f32.mrb[0].mxu0
        %1653 = vmatprep.mubr.f32.mxu0 0.0
        %v1654 = vand.u32 %v387, 4294901760
        %v1655 = vsub.f32 %v387, %v1654
        %v1656 = vand.u32 %v1655, 4294901760
        %1657 = vmatmul.mubr.f32.gmra.mrb[0].mxu0 %v1656
        %v1658 = vpop.f32.mrb[0].mxu0
        %v1659 = vadd.f32 %v1337, %v1658
        %v1660 = vpop.f32.mrb[0].mxu0
        %1661 = vmatprep.mubr.f32.mxu0 0.0
        %v1662 = vand.u32 %v390, 4294901760
        %v1663 = vsub.f32 %v390, %v1662
        %v1664 = vand.u32 %v1663, 4294901760
        %1665 = vmatmul.mubr.f32.gmra.mrb[0].mxu0 %v1664
        %v1666 = vpop.f32.mrb[0].mxu0
        %v1667 = vadd.f32 %v1344, %v1666
        %v1668 = vpop.f32.mrb[0].mxu0
        %1669 = vmatprep.mubr.f32.mxu0 0.0
        %v1670 = vand.u32 %v393, 4294901760
        %v1671 = vsub.f32 %v393, %v1670
        %v1672 = vand.u32 %v1671, 4294901760
        %1673 = vmatmul.mubr.f32.gmra.mrb[0].mxu0 %v1672
        %v1674 = vpop.f32.mrb[0].mxu0
        %v1675 = vadd.f32 %v1351, %v1674
        %v1676 = vpop.f32.mrb[0].mxu0
        %1677 = vmatprep.mubr.f32.mxu0 0.0
        %v1678 = vand.u32 %v396, 4294901760
        %v1679 = vsub.f32 %v396, %v1678
        %v1680 = vand.u32 %v1679, 4294901760
        %1681 = vmatmul.mubr.f32.gmra.mrb[0].mxu0 %v1680
        %v1682 = vpop.f32.mrb[0].mxu0
        %v1683 = vadd.f32 %v1358, %v1682
        %v1684 = vpop.f32.mrb[0].mxu0
        %1685 = vdwg.mxu0
        %1686 = vmatprep.subr.mxu0 0.0
        %v1687 = vand.u32 %v233, 4294901760
        %v1688 = vsub.f32 %v233, %v1687
        %v1689 = vand.u32 %v1688, 4294901760
        %1690 = vmatpush1.msra.mxu0 %v1689
        %1691 = vmatprep.subr.mxu0 0.0
        %v1692 = vand.u32 %v234, 4294901760
        %v1693 = vsub.f32 %v234, %v1692
        %v1694 = vand.u32 %v1693, 4294901760
        %1695 = vmatpush1.msra.mxu0 %v1694
        %1696 = vmatprep.subr.mxu0 0.0
        %v1697 = vand.u32 %v235, 4294901760
        %v1698 = vsub.f32 %v235, %v1697
        %v1699 = vand.u32 %v1698, 4294901760
        %1700 = vmatpush1.msra.mxu0 %v1699
        %1701 = vmatprep.subr.mxu0 0.0
        %v1702 = vand.u32 %v236, 4294901760
        %v1703 = vsub.f32 %v236, %v1702
        %v1704 = vand.u32 %v1703, 4294901760
        %1705 = vmatpush1.msra.mxu0 %v1704
        %1706 = vmatprep.subr.mxu0 0.0
        %1707 = vmatpush1.msra.mxu0 0.0
        %1708 = vmatprep.subr.mxu0 0.0
        %1709 = vmatpush1.msra.mxu0 0.0
        %1710 = vmatprep.subr.mxu0 0.0
        %1711 = vmatpush1.msra.mxu0 0.0
        %1712 = vmatprep.subr.mxu0 0.0
        %1713 = vmatpush1.msra.mxu0 0.0
        %1714 = vmatprep.subr.mxu0 0.0
        %1715 = vmatpush1.msra.mxu0 0.0
        %1716 = vmatprep.subr.mxu0 0.0
        %1717 = vmatpush1.msra.mxu0 0.0
        %1718 = vmatprep.subr.mxu0 0.0
        %1719 = vmatpush1.msra.mxu0 0.0
        %1720 = vmatprep.subr.mxu0 0.0
        %1721 = vmatpush1.msra.mxu0 0.0
        %1722 = vmatprep.subr.mxu0 0.0
        %1723 = vmatpush1.msra.mxu0 0.0
        %1724 = vmatprep.subr.mxu0 0.0
        %1725 = vmatpush1.msra.mxu0 0.0
        %1726 = vmatprep.subr.mxu0 0.0
        %1727 = vmatpush1.msra.mxu0 0.0
        %1728 = vmatprep.subr.mxu0 0.0
        %1729 = vmatpush1.msra.mxu0 0.0
        %1730 = vmatprep.subr.mxu0 0.0
        %1731 = vmatpush1.msra.mxu0 0.0
        %1732 = vmatprep.subr.mxu0 0.0
        %1733 = vmatpush1.msra.mxu0 0.0
        %1734 = vmatprep.subr.mxu0 0.0
        %1735 = vmatpush1.msra.mxu0 0.0
        %1736 = vmatprep.subr.mxu0 0.0
        %1737 = vmatpush1.msra.mxu0 0.0
        %1738 = vmatprep.subr.mxu0 0.0
        %1739 = vmatpush1.msra.mxu0 0.0
        %1740 = vmatprep.subr.mxu0 0.0
        %1741 = vmatpush1.msra.mxu0 0.0
        %1742 = vmatprep.subr.mxu0 0.0
        %1743 = vmatpush1.msra.mxu0 0.0
        %1744 = vmatprep.subr.mxu0 0.0
        %1745 = vmatpush1.msra.mxu0 0.0
        %1746 = vmatprep.subr.mxu0 0.0
        %1747 = vmatpush1.msra.mxu0 0.0
        %1748 = vmatprep.subr.mxu0 0.0
        %1749 = vmatpush1.msra.mxu0 0.0
        %1750 = vmatprep.subr.mxu0 0.0
        %1751 = vmatpush1.msra.mxu0 0.0
        %1752 = vmatprep.subr.mxu0 0.0
        %1753 = vmatpush1.msra.mxu0 0.0
        %1754 = vmatprep.subr.mxu0 0.0
        %1755 = vmatpush1.msra.mxu0 0.0
        %1756 = vmatprep.subr.mxu0 0.0
        %1757 = vmatpush1.msra.mxu0 0.0
        %1758 = vmatprep.subr.mxu0 0.0
        %1759 = vmatpush1.msra.mxu0 0.0
        %1760 = vmatprep.subr.mxu0 0.0
        %1761 = vmatpush1.msra.mxu0 0.0
        %1762 = vmatprep.mubr.f32.mxu0 0.0
        %v1763 = vand.u32 %v303, 4294901760
        %1764 = vmatmul.mubr.f32.gmra.mrb[0].mxu0 %v1763
        %v1765 = vpop.f32.mrb[0].mxu0
        %v1766 = vadd.f32 %v1435, %v1765
        %v1767 = vpop.f32.mrb[0].mxu0
        %1768 = vmatprep.mubr.f32.mxu0 0.0
        %v1769 = vand.u32 %v306, 4294901760
        %1770 = vmatmul.mubr.f32.gmra.mrb[0].mxu0 %v1769
        %v1771 = vpop.f32.mrb[0].mxu0
        %v1772 = vadd.f32 %v1443, %v1771
        %v1773 = vpop.f32.mrb[0].mxu0
        %1774 = vmatprep.mubr.f32.mxu0 0.0
        %v1775 = vand.u32 %v309, 4294901760
        %1776 = vmatmul.mubr.f32.gmra.mrb[0].mxu0 %v1775
        %v1777 = vpop.f32.mrb[0].mxu0
        %v1778 = vadd.f32 %v1451, %v1777
        %v1779 = vpop.f32.mrb[0].mxu0
        %1780 = vmatprep.mubr.f32.mxu0 0.0
        %v1781 = vand.u32 %v312, 4294901760
        %1782 = vmatmul.mubr.f32.gmra.mrb[0].mxu0 %v1781
        %v1783 = vpop.f32.mrb[0].mxu0
        %v1784 = vadd.f32 %v1459, %v1783
        %v1785 = vpop.f32.mrb[0].mxu0
        %1786 = vmatprep.mubr.f32.mxu0 0.0
        %v1787 = vand.u32 %v315, 4294901760
        %1788 = vmatmul.mubr.f32.gmra.mrb[0].mxu0 %v1787
        %v1789 = vpop.f32.mrb[0].mxu0
        %v1790 = vadd.f32 %v1467, %v1789
        %v1791 = vpop.f32.mrb[0].mxu0
        %1792 = vmatprep.mubr.f32.mxu0 0.0
        %v1793 = vand.u32 %v318, 4294901760
        %1794 = vmatmul.mubr.f32.gmra.mrb[0].mxu0 %v1793
        %v1795 = vpop.f32.mrb[0].mxu0
        %v1796 = vadd.f32 %v1475, %v1795
        %v1797 = vpop.f32.mrb[0].mxu0
        %1798 = vmatprep.mubr.f32.mxu0 0.0
        %v1799 = vand.u32 %v321, 4294901760
        %1800 = vmatmul.mubr.f32.gmra.mrb[0].mxu0 %v1799
        %v1801 = vpop.f32.mrb[0].mxu0
        %v1802 = vadd.f32 %v1483, %v1801
        %v1803 = vpop.f32.mrb[0].mxu0
        %1804 = vmatprep.mubr.f32.mxu0 0.0
        %v1805 = vand.u32 %v324, 4294901760
        %1806 = vmatmul.mubr.f32.gmra.mrb[0].mxu0 %v1805
        %v1807 = vpop.f32.mrb[0].mxu0
        %v1808 = vadd.f32 %v1491, %v1807
        %v1809 = vpop.f32.mrb[0].mxu0
        %1810 = vmatprep.mubr.f32.mxu0 0.0
        %v1811 = vand.u32 %v327, 4294901760
        %1812 = vmatmul.mubr.f32.gmra.mrb[0].mxu0 %v1811
        %v1813 = vpop.f32.mrb[0].mxu0
        %v1814 = vadd.f32 %v1499, %v1813
        %v1815 = vpop.f32.mrb[0].mxu0
        %1816 = vmatprep.mubr.f32.mxu0 0.0
        %v1817 = vand.u32 %v330, 4294901760
        %1818 = vmatmul.mubr.f32.gmra.mrb[0].mxu0 %v1817
        %v1819 = vpop.f32.mrb[0].mxu0
        %v1820 = vadd.f32 %v1507, %v1819
        %v1821 = vpop.f32.mrb[0].mxu0
        %1822 = vmatprep.mubr.f32.mxu0 0.0
        %v1823 = vand.u32 %v333, 4294901760
        %1824 = vmatmul.mubr.f32.gmra.mrb[0].mxu0 %v1823
        %v1825 = vpop.f32.mrb[0].mxu0
        %v1826 = vadd.f32 %v1515, %v1825
        %v1827 = vpop.f32.mrb[0].mxu0
        %1828 = vmatprep.mubr.f32.mxu0 0.0
        %v1829 = vand.u32 %v336, 4294901760
        %1830 = vmatmul.mubr.f32.gmra.mrb[0].mxu0 %v1829
        %v1831 = vpop.f32.mrb[0].mxu0
        %v1832 = vadd.f32 %v1523, %v1831
        %v1833 = vpop.f32.mrb[0].mxu0
        %1834 = vmatprep.mubr.f32.mxu0 0.0
        %v1835 = vand.u32 %v339, 4294901760
        %1836 = vmatmul.mubr.f32.gmra.mrb[0].mxu0 %v1835
        %v1837 = vpop.f32.mrb[0].mxu0
        %v1838 = vadd.f32 %v1531, %v1837
        %v1839 = vpop.f32.mrb[0].mxu0
        %1840 = vmatprep.mubr.f32.mxu0 0.0
        %v1841 = vand.u32 %v342, 4294901760
        %1842 = vmatmul.mubr.f32.gmra.mrb[0].mxu0 %v1841
        %v1843 = vpop.f32.mrb[0].mxu0
        %v1844 = vadd.f32 %v1539, %v1843
        %v1845 = vpop.f32.mrb[0].mxu0
        %1846 = vmatprep.mubr.f32.mxu0 0.0
        %v1847 = vand.u32 %v345, 4294901760
        %1848 = vmatmul.mubr.f32.gmra.mrb[0].mxu0 %v1847
        %v1849 = vpop.f32.mrb[0].mxu0
        %v1850 = vadd.f32 %v1547, %v1849
        %v1851 = vpop.f32.mrb[0].mxu0
        %1852 = vmatprep.mubr.f32.mxu0 0.0
        %v1853 = vand.u32 %v348, 4294901760
        %1854 = vmatmul.mubr.f32.gmra.mrb[0].mxu0 %v1853
        %v1855 = vpop.f32.mrb[0].mxu0
        %v1856 = vadd.f32 %v1555, %v1855
        %v1857 = vpop.f32.mrb[0].mxu0
        %1858 = vmatprep.mubr.f32.mxu0 0.0
        %v1859 = vand.u32 %v351, 4294901760
        %1860 = vmatmul.mubr.f32.gmra.mrb[0].mxu0 %v1859
        %v1861 = vpop.f32.mrb[0].mxu0
        %v1862 = vadd.f32 %v1563, %v1861
        %v1863 = vpop.f32.mrb[0].mxu0
        %1864 = vmatprep.mubr.f32.mxu0 0.0
        %v1865 = vand.u32 %v354, 4294901760
        %1866 = vmatmul.mubr.f32.gmra.mrb[0].mxu0 %v1865
        %v1867 = vpop.f32.mrb[0].mxu0
        %v1868 = vadd.f32 %v1571, %v1867
        %v1869 = vpop.f32.mrb[0].mxu0
        %1870 = vmatprep.mubr.f32.mxu0 0.0
        %v1871 = vand.u32 %v357, 4294901760
        %1872 = vmatmul.mubr.f32.gmra.mrb[0].mxu0 %v1871
        %v1873 = vpop.f32.mrb[0].mxu0
        %v1874 = vadd.f32 %v1579, %v1873
        %v1875 = vpop.f32.mrb[0].mxu0
        %1876 = vmatprep.mubr.f32.mxu0 0.0
        %v1877 = vand.u32 %v360, 4294901760
        %1878 = vmatmul.mubr.f32.gmra.mrb[0].mxu0 %v1877
        %v1879 = vpop.f32.mrb[0].mxu0
        %v1880 = vadd.f32 %v1587, %v1879
        %v1881 = vpop.f32.mrb[0].mxu0
        %1882 = vmatprep.mubr.f32.mxu0 0.0
        %v1883 = vand.u32 %v363, 4294901760
        %1884 = vmatmul.mubr.f32.gmra.mrb[0].mxu0 %v1883
        %v1885 = vpop.f32.mrb[0].mxu0
        %v1886 = vadd.f32 %v1595, %v1885
        %v1887 = vpop.f32.mrb[0].mxu0
        %1888 = vmatprep.mubr.f32.mxu0 0.0
        %v1889 = vand.u32 %v366, 4294901760
        %1890 = vmatmul.mubr.f32.gmra.mrb[0].mxu0 %v1889
        %v1891 = vpop.f32.mrb[0].mxu0
        %v1892 = vadd.f32 %v1603, %v1891
        %v1893 = vpop.f32.mrb[0].mxu0
        %1894 = vmatprep.mubr.f32.mxu0 0.0
        %v1895 = vand.u32 %v369, 4294901760
        %1896 = vmatmul.mubr.f32.gmra.mrb[0].mxu0 %v1895
        %v1897 = vpop.f32.mrb[0].mxu0
        %v1898 = vadd.f32 %v1611, %v1897
        %v1899 = vpop.f32.mrb[0].mxu0
        %1900 = vmatprep.mubr.f32.mxu0 0.0
        %v1901 = vand.u32 %v372, 4294901760
        %1902 = vmatmul.mubr.f32.gmra.mrb[0].mxu0 %v1901
        %v1903 = vpop.f32.mrb[0].mxu0
        %v1904 = vadd.f32 %v1619, %v1903
        %v1905 = vpop.f32.mrb[0].mxu0
        %1906 = vmatprep.mubr.f32.mxu0 0.0
        %v1907 = vand.u32 %v375, 4294901760
        %1908 = vmatmul.mubr.f32.gmra.mrb[0].mxu0 %v1907
        %v1909 = vpop.f32.mrb[0].mxu0
        %v1910 = vadd.f32 %v1627, %v1909
        %v1911 = vpop.f32.mrb[0].mxu0
        %1912 = vmatprep.mubr.f32.mxu0 0.0
        %v1913 = vand.u32 %v378, 4294901760
        %1914 = vmatmul.mubr.f32.gmra.mrb[0].mxu0 %v1913
        %v1915 = vpop.f32.mrb[0].mxu0
        %v1916 = vadd.f32 %v1635, %v1915
        %v1917 = vpop.f32.mrb[0].mxu0
        %1918 = vmatprep.mubr.f32.mxu0 0.0
        %v1919 = vand.u32 %v381, 4294901760
        %1920 = vmatmul.mubr.f32.gmra.mrb[0].mxu0 %v1919
        %v1921 = vpop.f32.mrb[0].mxu0
        %v1922 = vadd.f32 %v1643, %v1921
        %v1923 = vpop.f32.mrb[0].mxu0
        %1924 = vmatprep.mubr.f32.mxu0 0.0
        %v1925 = vand.u32 %v384, 4294901760
        %1926 = vmatmul.mubr.f32.gmra.mrb[0].mxu0 %v1925
        %v1927 = vpop.f32.mrb[0].mxu0
        %v1928 = vadd.f32 %v1651, %v1927
        %v1929 = vpop.f32.mrb[0].mxu0
        %1930 = vmatprep.mubr.f32.mxu0 0.0
        %v1931 = vand.u32 %v387, 4294901760
        %1932 = vmatmul.mubr.f32.gmra.mrb[0].mxu0 %v1931
        %v1933 = vpop.f32.mrb[0].mxu0
        %v1934 = vadd.f32 %v1659, %v1933
        %v1935 = vpop.f32.mrb[0].mxu0
        %1936 = vmatprep.mubr.f32.mxu0 0.0
        %v1937 = vand.u32 %v390, 4294901760
        %1938 = vmatmul.mubr.f32.gmra.mrb[0].mxu0 %v1937
        %v1939 = vpop.f32.mrb[0].mxu0
        %v1940 = vadd.f32 %v1667, %v1939
        %v1941 = vpop.f32.mrb[0].mxu0
        %1942 = vmatprep.mubr.f32.mxu0 0.0
        %v1943 = vand.u32 %v393, 4294901760
        %1944 = vmatmul.mubr.f32.gmra.mrb[0].mxu0 %v1943
        %v1945 = vpop.f32.mrb[0].mxu0
        %v1946 = vadd.f32 %v1675, %v1945
        %v1947 = vpop.f32.mrb[0].mxu0
        %1948 = vmatprep.mubr.f32.mxu0 0.0
        %v1949 = vand.u32 %v396, 4294901760
        %1950 = vmatmul.mubr.f32.gmra.mrb[0].mxu0 %v1949
        %v1951 = vpop.f32.mrb[0].mxu0
        %v1952 = vadd.f32 %v1683, %v1951
        %v1953 = vpop.f32.mrb[0].mxu0
        %1954 = vdwg.mxu0
        %1955 = vmatprep.subr.mxu0 0.0
        %v1956 = vand.u32 %v233, 4294901760
        %1957 = vmatpush1.msra.mxu0 %v1956
        %1958 = vmatprep.subr.mxu0 0.0
        %v1959 = vand.u32 %v234, 4294901760
        %1960 = vmatpush1.msra.mxu0 %v1959
        %1961 = vmatprep.subr.mxu0 0.0
        %v1962 = vand.u32 %v235, 4294901760
        %1963 = vmatpush1.msra.mxu0 %v1962
        %1964 = vmatprep.subr.mxu0 0.0
        %v1965 = vand.u32 %v236, 4294901760
        %1966 = vmatpush1.msra.mxu0 %v1965
        %1967 = vmatprep.subr.mxu0 0.0
        %1968 = vmatpush1.msra.mxu0 0.0
        %1969 = vmatprep.subr.mxu0 0.0
        %1970 = vmatpush1.msra.mxu0 0.0
        %1971 = vmatprep.subr.mxu0 0.0
        %1972 = vmatpush1.msra.mxu0 0.0
        %1973 = vmatprep.subr.mxu0 0.0
        %1974 = vmatpush1.msra.mxu0 0.0
        %1975 = vmatprep.subr.mxu0 0.0
        %1976 = vmatpush1.msra.mxu0 0.0
        %1977 = vmatprep.subr.mxu0 0.0
        %1978 = vmatpush1.msra.mxu0 0.0
        %1979 = vmatprep.subr.mxu0 0.0
        %1980 = vmatpush1.msra.mxu0 0.0
        %1981 = vmatprep.subr.mxu0 0.0
        %1982 = vmatpush1.msra.mxu0 0.0
        %1983 = vmatprep.subr.mxu0 0.0
        %1984 = vmatpush1.msra.mxu0 0.0
        %1985 = vmatprep.subr.mxu0 0.0
        %1986 = vmatpush1.msra.mxu0 0.0
        %1987 = vmatprep.subr.mxu0 0.0
        %1988 = vmatpush1.msra.mxu0 0.0
        %1989 = vmatprep.subr.mxu0 0.0
        %1990 = vmatpush1.msra.mxu0 0.0
        %1991 = vmatprep.subr.mxu0 0.0
        %1992 = vmatpush1.msra.mxu0 0.0
        %1993 = vmatprep.subr.mxu0 0.0
        %1994 = vmatpush1.msra.mxu0 0.0
        %1995 = vmatprep.subr.mxu0 0.0
        %1996 = vmatpush1.msra.mxu0 0.0
        %1997 = vmatprep.subr.mxu0 0.0
        %1998 = vmatpush1.msra.mxu0 0.0
        %1999 = vmatprep.subr.mxu0 0.0
        %2000 = vmatpush1.msra.mxu0 0.0
        %2001 = vmatprep.subr.mxu0 0.0
        %2002 = vmatpush1.msra.mxu0 0.0
        %2003 = vmatprep.subr.mxu0 0.0
        %2004 = vmatpush1.msra.mxu0 0.0
        %2005 = vmatprep.subr.mxu0 0.0
        %2006 = vmatpush1.msra.mxu0 0.0
        %2007 = vmatprep.subr.mxu0 0.0
        %2008 = vmatpush1.msra.mxu0 0.0
        %2009 = vmatprep.subr.mxu0 0.0
        %2010 = vmatpush1.msra.mxu0 0.0
        %2011 = vmatprep.subr.mxu0 0.0
        %2012 = vmatpush1.msra.mxu0 0.0
        %2013 = vmatprep.subr.mxu0 0.0
        %2014 = vmatpush1.msra.mxu0 0.0
        %2015 = vmatprep.subr.mxu0 0.0
        %2016 = vmatpush1.msra.mxu0 0.0
        %2017 = vmatprep.subr.mxu0 0.0
        %2018 = vmatpush1.msra.mxu0 0.0
        %2019 = vmatprep.subr.mxu0 0.0
        %2020 = vmatpush1.msra.mxu0 0.0
        %2021 = vmatprep.subr.mxu0 0.0
        %2022 = vmatpush1.msra.mxu0 0.0
        %2023 = vmatprep.mubr.f32.mxu0 0.0
        %v2024 = vand.u32 %v303, 4294901760
        %2025 = vmatmul.mubr.f32.gmra.mrb[0].mxu0 %v2024
        %v2026 = vpop.f32.mrb[0].mxu0
        %v2027 = vadd.f32 %v1766, %v2026
        %v2028 = vpop.f32.mrb[0].mxu0
        %2029 = vmatprep.mubr.f32.mxu0 0.0
        %v2030 = vand.u32 %v306, 4294901760
        %2031 = vmatmul.mubr.f32.gmra.mrb[0].mxu0 %v2030
        %v2032 = vpop.f32.mrb[0].mxu0
        %v2033 = vadd.f32 %v1772, %v2032
        %v2034 = vpop.f32.mrb[0].mxu0
        %2035 = vmatprep.mubr.f32.mxu0 0.0
        %v2036 = vand.u32 %v309, 4294901760
        %2037 = vmatmul.mubr.f32.gmra.mrb[0].mxu0 %v2036
        %v2038 = vpop.f32.mrb[0].mxu0
        %v2039 = vadd.f32 %v1778, %v2038
        %v2040 = vpop.f32.mrb[0].mxu0
        %2041 = vmatprep.mubr.f32.mxu0 0.0
        %v2042 = vand.u32 %v312, 4294901760
        %2043 = vmatmul.mubr.f32.gmra.mrb[0].mxu0 %v2042
        %v2044 = vpop.f32.mrb[0].mxu0
        %v2045 = vadd.f32 %v1784, %v2044
        %v2046 = vpop.f32.mrb[0].mxu0
        %2047 = vmatprep.mubr.f32.mxu0 0.0
        %v2048 = vand.u32 %v315, 4294901760
        %2049 = vmatmul.mubr.f32.gmra.mrb[0].mxu0 %v2048
        %v2050 = vpop.f32.mrb[0].mxu0
        %v2051 = vadd.f32 %v1790, %v2050
        %v2052 = vpop.f32.mrb[0].mxu0
        %2053 = vmatprep.mubr.f32.mxu0 0.0
        %v2054 = vand.u32 %v318, 4294901760
        %2055 = vmatmul.mubr.f32.gmra.mrb[0].mxu0 %v2054
        %v2056 = vpop.f32.mrb[0].mxu0
        %v2057 = vadd.f32 %v1796, %v2056
        %v2058 = vpop.f32.mrb[0].mxu0
        %2059 = vmatprep.mubr.f32.mxu0 0.0
        %v2060 = vand.u32 %v321, 4294901760
        %2061 = vmatmul.mubr.f32.gmra.mrb[0].mxu0 %v2060
        %v2062 = vpop.f32.mrb[0].mxu0
        %v2063 = vadd.f32 %v1802, %v2062
        %v2064 = vpop.f32.mrb[0].mxu0
        %2065 = vmatprep.mubr.f32.mxu0 0.0
        %v2066 = vand.u32 %v324, 4294901760
        %2067 = vmatmul.mubr.f32.gmra.mrb[0].mxu0 %v2066
        %v2068 = vpop.f32.mrb[0].mxu0
        %v2069 = vadd.f32 %v1808, %v2068
        %v2070 = vpop.f32.mrb[0].mxu0
        %2071 = vmatprep.mubr.f32.mxu0 0.0
        %v2072 = vand.u32 %v327, 4294901760
        %2073 = vmatmul.mubr.f32.gmra.mrb[0].mxu0 %v2072
        %v2074 = vpop.f32.mrb[0].mxu0
        %v2075 = vadd.f32 %v1814, %v2074
        %v2076 = vpop.f32.mrb[0].mxu0
        %2077 = vmatprep.mubr.f32.mxu0 0.0
        %v2078 = vand.u32 %v330, 4294901760
        %2079 = vmatmul.mubr.f32.gmra.mrb[0].mxu0 %v2078
        %v2080 = vpop.f32.mrb[0].mxu0
        %v2081 = vadd.f32 %v1820, %v2080
        %v2082 = vpop.f32.mrb[0].mxu0
        %2083 = vmatprep.mubr.f32.mxu0 0.0
        %v2084 = vand.u32 %v333, 4294901760
        %2085 = vmatmul.mubr.f32.gmra.mrb[0].mxu0 %v2084
        %v2086 = vpop.f32.mrb[0].mxu0
        %v2087 = vadd.f32 %v1826, %v2086
        %v2088 = vpop.f32.mrb[0].mxu0
        %2089 = vmatprep.mubr.f32.mxu0 0.0
        %v2090 = vand.u32 %v336, 4294901760
        %2091 = vmatmul.mubr.f32.gmra.mrb[0].mxu0 %v2090
        %v2092 = vpop.f32.mrb[0].mxu0
        %v2093 = vadd.f32 %v1832, %v2092
        %v2094 = vpop.f32.mrb[0].mxu0
        %2095 = vmatprep.mubr.f32.mxu0 0.0
        %v2096 = vand.u32 %v339, 4294901760
        %2097 = vmatmul.mubr.f32.gmra.mrb[0].mxu0 %v2096
        %v2098 = vpop.f32.mrb[0].mxu0
        %v2099 = vadd.f32 %v1838, %v2098
        %v2100 = vpop.f32.mrb[0].mxu0
        %2101 = vmatprep.mubr.f32.mxu0 0.0
        %v2102 = vand.u32 %v342, 4294901760
        %2103 = vmatmul.mubr.f32.gmra.mrb[0].mxu0 %v2102
        %v2104 = vpop.f32.mrb[0].mxu0
        %v2105 = vadd.f32 %v1844, %v2104
        %v2106 = vpop.f32.mrb[0].mxu0
        %2107 = vmatprep.mubr.f32.mxu0 0.0
        %v2108 = vand.u32 %v345, 4294901760
        %2109 = vmatmul.mubr.f32.gmra.mrb[0].mxu0 %v2108
        %v2110 = vpop.f32.mrb[0].mxu0
        %v2111 = vadd.f32 %v1850, %v2110
        %v2112 = vpop.f32.mrb[0].mxu0
        %2113 = vmatprep.mubr.f32.mxu0 0.0
        %v2114 = vand.u32 %v348, 4294901760
        %2115 = vmatmul.mubr.f32.gmra.mrb[0].mxu0 %v2114
        %v2116 = vpop.f32.mrb[0].mxu0
        %v2117 = vadd.f32 %v1856, %v2116
        %v2118 = vpop.f32.mrb[0].mxu0
        %2119 = vmatprep.mubr.f32.mxu0 0.0
        %v2120 = vand.u32 %v351, 4294901760
        %2121 = vmatmul.mubr.f32.gmra.mrb[0].mxu0 %v2120
        %v2122 = vpop.f32.mrb[0].mxu0
        %v2123 = vadd.f32 %v1862, %v2122
        %v2124 = vpop.f32.mrb[0].mxu0
        %2125 = vmatprep.mubr.f32.mxu0 0.0
        %v2126 = vand.u32 %v354, 4294901760
        %2127 = vmatmul.mubr.f32.gmra.mrb[0].mxu0 %v2126
        %v2128 = vpop.f32.mrb[0].mxu0
        %v2129 = vadd.f32 %v1868, %v2128
        %v2130 = vpop.f32.mrb[0].mxu0
        %2131 = vmatprep.mubr.f32.mxu0 0.0
        %v2132 = vand.u32 %v357, 4294901760
        %2133 = vmatmul.mubr.f32.gmra.mrb[0].mxu0 %v2132
        %v2134 = vpop.f32.mrb[0].mxu0
        %v2135 = vadd.f32 %v1874, %v2134
        %v2136 = vpop.f32.mrb[0].mxu0
        %2137 = vmatprep.mubr.f32.mxu0 0.0
        %v2138 = vand.u32 %v360, 4294901760
        %2139 = vmatmul.mubr.f32.gmra.mrb[0].mxu0 %v2138
        %v2140 = vpop.f32.mrb[0].mxu0
        %v2141 = vadd.f32 %v1880, %v2140
        %v2142 = vpop.f32.mrb[0].mxu0
        %2143 = vmatprep.mubr.f32.mxu0 0.0
        %v2144 = vand.u32 %v363, 4294901760
        %2145 = vmatmul.mubr.f32.gmra.mrb[0].mxu0 %v2144
        %v2146 = vpop.f32.mrb[0].mxu0
        %v2147 = vadd.f32 %v1886, %v2146
        %v2148 = vpop.f32.mrb[0].mxu0
        %2149 = vmatprep.mubr.f32.mxu0 0.0
        %v2150 = vand.u32 %v366, 4294901760
        %2151 = vmatmul.mubr.f32.gmra.mrb[0].mxu0 %v2150
        %v2152 = vpop.f32.mrb[0].mxu0
        %v2153 = vadd.f32 %v1892, %v2152
        %v2154 = vpop.f32.mrb[0].mxu0
        %2155 = vmatprep.mubr.f32.mxu0 0.0
        %v2156 = vand.u32 %v369, 4294901760
        %2157 = vmatmul.mubr.f32.gmra.mrb[0].mxu0 %v2156
        %v2158 = vpop.f32.mrb[0].mxu0
        %v2159 = vadd.f32 %v1898, %v2158
        %v2160 = vpop.f32.mrb[0].mxu0
        %2161 = vmatprep.mubr.f32.mxu0 0.0
        %v2162 = vand.u32 %v372, 4294901760
        %2163 = vmatmul.mubr.f32.gmra.mrb[0].mxu0 %v2162
        %v2164 = vpop.f32.mrb[0].mxu0
        %v2165 = vadd.f32 %v1904, %v2164
        %v2166 = vpop.f32.mrb[0].mxu0
        %2167 = vmatprep.mubr.f32.mxu0 0.0
        %v2168 = vand.u32 %v375, 4294901760
        %2169 = vmatmul.mubr.f32.gmra.mrb[0].mxu0 %v2168
        %v2170 = vpop.f32.mrb[0].mxu0
        %v2171 = vadd.f32 %v1910, %v2170
        %v2172 = vpop.f32.mrb[0].mxu0
        %2173 = vmatprep.mubr.f32.mxu0 0.0
        %v2174 = vand.u32 %v378, 4294901760
        %2175 = vmatmul.mubr.f32.gmra.mrb[0].mxu0 %v2174
        %v2176 = vpop.f32.mrb[0].mxu0
        %v2177 = vadd.f32 %v1916, %v2176
        %v2178 = vpop.f32.mrb[0].mxu0
        %2179 = vmatprep.mubr.f32.mxu0 0.0
        %v2180 = vand.u32 %v381, 4294901760
        %2181 = vmatmul.mubr.f32.gmra.mrb[0].mxu0 %v2180
        %v2182 = vpop.f32.mrb[0].mxu0
        %v2183 = vadd.f32 %v1922, %v2182
        %v2184 = vpop.f32.mrb[0].mxu0
        %2185 = vmatprep.mubr.f32.mxu0 0.0
        %v2186 = vand.u32 %v384, 4294901760
        %2187 = vmatmul.mubr.f32.gmra.mrb[0].mxu0 %v2186
        %v2188 = vpop.f32.mrb[0].mxu0
        %v2189 = vadd.f32 %v1928, %v2188
        %v2190 = vpop.f32.mrb[0].mxu0
        %2191 = vmatprep.mubr.f32.mxu0 0.0
        %v2192 = vand.u32 %v387, 4294901760
        %2193 = vmatmul.mubr.f32.gmra.mrb[0].mxu0 %v2192
        %v2194 = vpop.f32.mrb[0].mxu0
        %v2195 = vadd.f32 %v1934, %v2194
        %v2196 = vpop.f32.mrb[0].mxu0
        %2197 = vmatprep.mubr.f32.mxu0 0.0
        %v2198 = vand.u32 %v390, 4294901760
        %2199 = vmatmul.mubr.f32.gmra.mrb[0].mxu0 %v2198
        %v2200 = vpop.f32.mrb[0].mxu0
        %v2201 = vadd.f32 %v1940, %v2200
        %v2202 = vpop.f32.mrb[0].mxu0
        %2203 = vmatprep.mubr.f32.mxu0 0.0
        %v2204 = vand.u32 %v393, 4294901760
        %2205 = vmatmul.mubr.f32.gmra.mrb[0].mxu0 %v2204
        %v2206 = vpop.f32.mrb[0].mxu0
        %v2207 = vadd.f32 %v1946, %v2206
        %v2208 = vpop.f32.mrb[0].mxu0
        %2209 = vmatprep.mubr.f32.mxu0 0.0
        %v2210 = vand.u32 %v396, 4294901760
        %2211 = vmatmul.mubr.f32.gmra.mrb[0].mxu0 %v2210
        %v2212 = vpop.f32.mrb[0].mxu0
        %v2213 = vadd.f32 %v1952, %v2212
        %v2214 = vpop.f32.mrb[0].mxu0
        %2215 = vdwg.mxu0
        %2216 = vst [vmem:[%s192] sm:$0xff] %v2027
        %2217 = vst [vmem:[%s192 + $0x8] sm:$0xff] %v2033
        %2218 = vst [vmem:[%s192 + $0x10] sm:$0xff] %v2039
        %2219 = vst [vmem:[%s192 + $0x18] sm:$0xff] %v2045
        %2220 = vst [vmem:[%s192 + $0x20] sm:$0xff] %v2051
        %2221 = vst [vmem:[%s192 + $0x28] sm:$0xff] %v2057
        %2222 = vst [vmem:[%s192 + $0x30] sm:$0xff] %v2063
        %2223 = vst [vmem:[%s192 + $0x38] sm:$0xff] %v2069
        %2224 = vst [vmem:[%s192 + $0x40] sm:$0xff] %v2075
        %2225 = vst [vmem:[%s192 + $0x48] sm:$0xff] %v2081
        %2226 = vst [vmem:[%s192 + $0x50] sm:$0xff] %v2087
        %2227 = vst [vmem:[%s192 + $0x58] sm:$0xff] %v2093
        %2228 = vst [vmem:[%s192 + $0x60] sm:$0xff] %v2099
        %2229 = vst [vmem:[%s192 + $0x68] sm:$0xff] %v2105
        %2230 = vst [vmem:[%s192 + $0x70] sm:$0xff] %v2111
        %2231 = vst [vmem:[%s192 + $0x78] sm:$0xff] %v2117
        %2232 = vst [vmem:[%s192 + $0x80] sm:$0xff] %v2123
        %2233 = vst [vmem:[%s192 + $0x88] sm:$0xff] %v2129
        %2234 = vst [vmem:[%s192 + $0x90] sm:$0xff] %v2135
        %2235 = vst [vmem:[%s192 + $0x98] sm:$0xff] %v2141
        %2236 = vst [vmem:[%s192 + $0xa0] sm:$0xff] %v2147
        %2237 = vst [vmem:[%s192 + $0xa8] sm:$0xff] %v2153
        %2238 = vst [vmem:[%s192 + $0xb0] sm:$0xff] %v2159
        %2239 = vst [vmem:[%s192 + $0xb8] sm:$0xff] %v2165
        %2240 = vst [vmem:[%s192 + $0xc0] sm:$0xff] %v2171
        %2241 = vst [vmem:[%s192 + $0xc8] sm:$0xff] %v2177
        %2242 = vst [vmem:[%s192 + $0xd0] sm:$0xff] %v2183
        %2243 = vst [vmem:[%s192 + $0xd8] sm:$0xff] %v2189
        %2244 = vst [vmem:[%s192 + $0xe0] sm:$0xff] %v2195
        %2245 = vst [vmem:[%s192 + $0xe8] sm:$0xff] %v2201
        %2246 = vst [vmem:[%s192 + $0xf0] sm:$0xff] %v2207
        %2247 = vst [vmem:[%s192 + $0xf8] sm:$0xff] %v2213
        %s2248 = scalar_lea.vmem [#allocation5], 32
        %v2249 = vld [vmem:[%s2248] sm:$0xff]
        %v2250 = vld [vmem:[%s2248 + $0x8] sm:$0xff]
        %v2251 = vld [vmem:[%s2248 + $0x10] sm:$0xff]
        %v2252 = vld [vmem:[%s2248 + $0x18] sm:$0xff]
        %2253 = vmatprep.subr.mxu0 0.0
        %v2254 = vand.u32 %v2249, 4294901760
        %2255 = vmatpush1.msra.mxu0 %v2254
        %2256 = vmatprep.subr.mxu0 0.0
        %v2257 = vand.u32 %v2250, 4294901760
        %2258 = vmatpush1.msra.mxu0 %v2257
        %2259 = vmatprep.subr.mxu0 0.0
        %v2260 = vand.u32 %v2251, 4294901760
        %2261 = vmatpush1.msra.mxu0 %v2260
        %2262 = vmatprep.subr.mxu0 0.0
        %v2263 = vand.u32 %v2252, 4294901760
        %2264 = vmatpush1.msra.mxu0 %v2263
        %2265 = vmatprep.subr.mxu0 0.0
        %2266 = vmatpush1.msra.mxu0 0.0
        %2267 = vmatprep.subr.mxu0 0.0
        %2268 = vmatpush1.msra.mxu0 0.0
        %2269 = vmatprep.subr.mxu0 0.0
        %2270 = vmatpush1.msra.mxu0 0.0
        %2271 = vmatprep.subr.mxu0 0.0
        %2272 = vmatpush1.msra.mxu0 0.0
        %2273 = vmatprep.subr.mxu0 0.0
        %2274 = vmatpush1.msra.mxu0 0.0
        %2275 = vmatprep.subr.mxu0 0.0
        %2276 = vmatpush1.msra.mxu0 0.0
        %2277 = vmatprep.subr.mxu0 0.0
        %2278 = vmatpush1.msra.mxu0 0.0
        %2279 = vmatprep.subr.mxu0 0.0
        %2280 = vmatpush1.msra.mxu0 0.0
        %2281 = vmatprep.subr.mxu0 0.0
        %2282 = vmatpush1.msra.mxu0 0.0
        %2283 = vmatprep.subr.mxu0 0.0
        %2284 = vmatpush1.msra.mxu0 0.0
        %2285 = vmatprep.subr.mxu0 0.0
        %2286 = vmatpush1.msra.mxu0 0.0
        %2287 = vmatprep.subr.mxu0 0.0
        %2288 = vmatpush1.msra.mxu0 0.0
        %2289 = vmatprep.subr.mxu0 0.0
        %2290 = vmatpush1.msra.mxu0 0.0
        %2291 = vmatprep.subr.mxu0 0.0
        %2292 = vmatpush1.msra.mxu0 0.0
        %2293 = vmatprep.subr.mxu0 0.0
        %2294 = vmatpush1.msra.mxu0 0.0
        %2295 = vmatprep.subr.mxu0 0.0
        %2296 = vmatpush1.msra.mxu0 0.0
        %2297 = vmatprep.subr.mxu0 0.0
        %2298 = vmatpush1.msra.mxu0 0.0
        %2299 = vmatprep.subr.mxu0 0.0
        %2300 = vmatpush1.msra.mxu0 0.0
        %2301 = vmatprep.subr.mxu0 0.0
        %2302 = vmatpush1.msra.mxu0 0.0
        %2303 = vmatprep.subr.mxu0 0.0
        %2304 = vmatpush1.msra.mxu0 0.0
        %2305 = vmatprep.subr.mxu0 0.0
        %2306 = vmatpush1.msra.mxu0 0.0
        %2307 = vmatprep.subr.mxu0 0.0
        %2308 = vmatpush1.msra.mxu0 0.0
        %2309 = vmatprep.subr.mxu0 0.0
        %2310 = vmatpush1.msra.mxu0 0.0
        %2311 = vmatprep.subr.mxu0 0.0
        %2312 = vmatpush1.msra.mxu0 0.0
        %2313 = vmatprep.subr.mxu0 0.0
        %2314 = vmatpush1.msra.mxu0 0.0
        %2315 = vmatprep.subr.mxu0 0.0
        %2316 = vmatpush1.msra.mxu0 0.0
        %2317 = vmatprep.subr.mxu0 0.0
        %2318 = vmatpush1.msra.mxu0 0.0
        %2319 = vmatprep.subr.mxu0 0.0
        %2320 = vmatpush1.msra.mxu0 0.0
        %2321 = vmatprep.mubr.f32.mxu0 0.0
        %v2322 = vand.u32 %v303, 4294901760
        %v2323 = vsub.f32 %v303, %v2322
        %v2324 = vand.u32 %v2323, 4294901760
        %v2325 = vsub.f32 %v2323, %v2324
        %v2326 = vand.u32 %v2325, 4294901760
        %2327 = vmatmul.mubr.f32.gmra.mrb[0].mxu0 %v2326
        %v2328 = vpop.f32.mrb[0].mxu0
        %v2329 = vadd.f32 0.0, %v2328
        %v2330 = vpop.f32.mrb[0].mxu0
        %2331 = vmatprep.mubr.f32.mxu0 0.0
        %v2332 = vand.u32 %v306, 4294901760
        %v2333 = vsub.f32 %v306, %v2332
        %v2334 = vand.u32 %v2333, 4294901760
        %v2335 = vsub.f32 %v2333, %v2334
        %v2336 = vand.u32 %v2335, 4294901760
        %2337 = vmatmul.mubr.f32.gmra.mrb[0].mxu0 %v2336
        %v2338 = vpop.f32.mrb[0].mxu0
        %v2339 = vadd.f32 0.0, %v2338
        %v2340 = vpop.f32.mrb[0].mxu0
        %2341 = vmatprep.mubr.f32.mxu0 0.0
        %v2342 = vand.u32 %v309, 4294901760
        %v2343 = vsub.f32 %v309, %v2342
        %v2344 = vand.u32 %v2343, 4294901760
        %v2345 = vsub.f32 %v2343, %v2344
        %v2346 = vand.u32 %v2345, 4294901760
        %2347 = vmatmul.mubr.f32.gmra.mrb[0].mxu0 %v2346
        %v2348 = vpop.f32.mrb[0].mxu0
        %v2349 = vadd.f32 0.0, %v2348
        %v2350 = vpop.f32.mrb[0].mxu0
        %2351 = vmatprep.mubr.f32.mxu0 0.0
        %v2352 = vand.u32 %v312, 4294901760
        %v2353 = vsub.f32 %v312, %v2352
        %v2354 = vand.u32 %v2353, 4294901760
        %v2355 = vsub.f32 %v2353, %v2354
        %v2356 = vand.u32 %v2355, 4294901760
        %2357 = vmatmul.mubr.f32.gmra.mrb[0].mxu0 %v2356
        %v2358 = vpop.f32.mrb[0].mxu0
        %v2359 = vadd.f32 0.0, %v2358
        %v2360 = vpop.f32.mrb[0].mxu0
        %2361 = vmatprep.mubr.f32.mxu0 0.0
        %v2362 = vand.u32 %v315, 4294901760
        %v2363 = vsub.f32 %v315, %v2362
        %v2364 = vand.u32 %v2363, 4294901760
        %v2365 = vsub.f32 %v2363, %v2364
        %v2366 = vand.u32 %v2365, 4294901760
        %2367 = vmatmul.mubr.f32.gmra.mrb[0].mxu0 %v2366
        %v2368 = vpop.f32.mrb[0].mxu0
        %v2369 = vadd.f32 0.0, %v2368
        %v2370 = vpop.f32.mrb[0].mxu0
        %2371 = vmatprep.mubr.f32.mxu0 0.0
        %v2372 = vand.u32 %v318, 4294901760
        %v2373 = vsub.f32 %v318, %v2372
        %v2374 = vand.u32 %v2373, 4294901760
        %v2375 = vsub.f32 %v2373, %v2374
        %v2376 = vand.u32 %v2375, 4294901760
        %2377 = vmatmul.mubr.f32.gmra.mrb[0].mxu0 %v2376
        %v2378 = vpop.f32.mrb[0].mxu0
        %v2379 = vadd.f32 0.0, %v2378
        %v2380 = vpop.f32.mrb[0].mxu0
        %2381 = vmatprep.mubr.f32.mxu0 0.0
        %v2382 = vand.u32 %v321, 4294901760
        %v2383 = vsub.f32 %v321, %v2382
        %v2384 = vand.u32 %v2383, 4294901760
        %v2385 = vsub.f32 %v2383, %v2384
        %v2386 = vand.u32 %v2385, 4294901760
        %2387 = vmatmul.mubr.f32.gmra.mrb[0].mxu0 %v2386
        %v2388 = vpop.f32.mrb[0].mxu0
        %v2389 = vadd.f32 0.0, %v2388
        %v2390 = vpop.f32.mrb[0].mxu0
        %2391 = vmatprep.mubr.f32.mxu0 0.0
        %v2392 = vand.u32 %v324, 4294901760
        %v2393 = vsub.f32 %v324, %v2392
        %v2394 = vand.u32 %v2393, 4294901760
        %v2395 = vsub.f32 %v2393, %v2394
        %v2396 = vand.u32 %v2395, 4294901760
        %2397 = vmatmul.mubr.f32.gmra.mrb[0].mxu0 %v2396
        %v2398 = vpop.f32.mrb[0].mxu0
        %v2399 = vadd.f32 0.0, %v2398
        %v2400 = vpop.f32.mrb[0].mxu0
        %2401 = vmatprep.mubr.f32.mxu0 0.0
        %v2402 = vand.u32 %v327, 4294901760
        %v2403 = vsub.f32 %v327, %v2402
        %v2404 = vand.u32 %v2403, 4294901760
        %v2405 = vsub.f32 %v2403, %v2404
        %v2406 = vand.u32 %v2405, 4294901760
        %2407 = vmatmul.mubr.f32.gmra.mrb[0].mxu0 %v2406
        %v2408 = vpop.f32.mrb[0].mxu0
        %v2409 = vadd.f32 0.0, %v2408
        %v2410 = vpop.f32.mrb[0].mxu0
        %2411 = vmatprep.mubr.f32.mxu0 0.0
        %v2412 = vand.u32 %v330, 4294901760
        %v2413 = vsub.f32 %v330, %v2412
        %v2414 = vand.u32 %v2413, 4294901760
        %v2415 = vsub.f32 %v2413, %v2414
        %v2416 = vand.u32 %v2415, 4294901760
        %2417 = vmatmul.mubr.f32.gmra.mrb[0].mxu0 %v2416
        %v2418 = vpop.f32.mrb[0].mxu0
        %v2419 = vadd.f32 0.0, %v2418
        %v2420 = vpop.f32.mrb[0].mxu0
        %2421 = vmatprep.mubr.f32.mxu0 0.0
        %v2422 = vand.u32 %v333, 4294901760
        %v2423 = vsub.f32 %v333, %v2422
        %v2424 = vand.u32 %v2423, 4294901760
        %v2425 = vsub.f32 %v2423, %v2424
        %v2426 = vand.u32 %v2425, 4294901760
        %2427 = vmatmul.mubr.f32.gmra.mrb[0].mxu0 %v2426
        %v2428 = vpop.f32.mrb[0].mxu0
        %v2429 = vadd.f32 0.0, %v2428
        %v2430 = vpop.f32.mrb[0].mxu0
        %2431 = vmatprep.mubr.f32.mxu0 0.0
        %v2432 = vand.u32 %v336, 4294901760
        %v2433 = vsub.f32 %v336, %v2432
        %v2434 = vand.u32 %v2433, 4294901760
        %v2435 = vsub.f32 %v2433, %v2434
        %v2436 = vand.u32 %v2435, 4294901760
        %2437 = vmatmul.mubr.f32.gmra.mrb[0].mxu0 %v2436
        %v2438 = vpop.f32.mrb[0].mxu0
        %v2439 = vadd.f32 0.0, %v2438
        %v2440 = vpop.f32.mrb[0].mxu0
        %2441 = vmatprep.mubr.f32.mxu0 0.0
        %v2442 = vand.u32 %v339, 4294901760
        %v2443 = vsub.f32 %v339, %v2442
        %v2444 = vand.u32 %v2443, 4294901760
        %v2445 = vsub.f32 %v2443, %v2444
        %v2446 = vand.u32 %v2445, 4294901760
        %2447 = vmatmul.mubr.f32.gmra.mrb[0].mxu0 %v2446
        %v2448 = vpop.f32.mrb[0].mxu0
        %v2449 = vadd.f32 0.0, %v2448
        %v2450 = vpop.f32.mrb[0].mxu0
        %2451 = vmatprep.mubr.f32.mxu0 0.0
        %v2452 = vand.u32 %v342, 4294901760
        %v2453 = vsub.f32 %v342, %v2452
        %v2454 = vand.u32 %v2453, 4294901760
        %v2455 = vsub.f32 %v2453, %v2454
        %v2456 = vand.u32 %v2455, 4294901760
        %2457 = vmatmul.mubr.f32.gmra.mrb[0].mxu0 %v2456
        %v2458 = vpop.f32.mrb[0].mxu0
        %v2459 = vadd.f32 0.0, %v2458
        %v2460 = vpop.f32.mrb[0].mxu0
        %2461 = vmatprep.mubr.f32.mxu0 0.0
        %v2462 = vand.u32 %v345, 4294901760
        %v2463 = vsub.f32 %v345, %v2462
        %v2464 = vand.u32 %v2463, 4294901760
        %v2465 = vsub.f32 %v2463, %v2464
        %v2466 = vand.u32 %v2465, 4294901760
        %2467 = vmatmul.mubr.f32.gmra.mrb[0].mxu0 %v2466
        %v2468 = vpop.f32.mrb[0].mxu0
        %v2469 = vadd.f32 0.0, %v2468
        %v2470 = vpop.f32.mrb[0].mxu0
        %2471 = vmatprep.mubr.f32.mxu0 0.0
        %v2472 = vand.u32 %v348, 4294901760
        %v2473 = vsub.f32 %v348, %v2472
        %v2474 = vand.u32 %v2473, 4294901760
        %v2475 = vsub.f32 %v2473, %v2474
        %v2476 = vand.u32 %v2475, 4294901760
        %2477 = vmatmul.mubr.f32.gmra.mrb[0].mxu0 %v2476
        %v2478 = vpop.f32.mrb[0].mxu0
        %v2479 = vadd.f32 0.0, %v2478
        %v2480 = vpop.f32.mrb[0].mxu0
        %2481 = vmatprep.mubr.f32.mxu0 0.0
        %v2482 = vand.u32 %v351, 4294901760
        %v2483 = vsub.f32 %v351, %v2482
        %v2484 = vand.u32 %v2483, 4294901760
        %v2485 = vsub.f32 %v2483, %v2484
        %v2486 = vand.u32 %v2485, 4294901760
        %2487 = vmatmul.mubr.f32.gmra.mrb[0].mxu0 %v2486
        %v2488 = vpop.f32.mrb[0].mxu0
        %v2489 = vadd.f32 0.0, %v2488
        %v2490 = vpop.f32.mrb[0].mxu0
        %2491 = vmatprep.mubr.f32.mxu0 0.0
        %v2492 = vand.u32 %v354, 4294901760
        %v2493 = vsub.f32 %v354, %v2492
        %v2494 = vand.u32 %v2493, 4294901760
        %v2495 = vsub.f32 %v2493, %v2494
        %v2496 = vand.u32 %v2495, 4294901760
        %2497 = vmatmul.mubr.f32.gmra.mrb[0].mxu0 %v2496
        %v2498 = vpop.f32.mrb[0].mxu0
        %v2499 = vadd.f32 0.0, %v2498
        %v2500 = vpop.f32.mrb[0].mxu0
        %2501 = vmatprep.mubr.f32.mxu0 0.0
        %v2502 = vand.u32 %v357, 4294901760
        %v2503 = vsub.f32 %v357, %v2502
        %v2504 = vand.u32 %v2503, 4294901760
        %v2505 = vsub.f32 %v2503, %v2504
        %v2506 = vand.u32 %v2505, 4294901760
        %2507 = vmatmul.mubr.f32.gmra.mrb[0].mxu0 %v2506
        %v2508 = vpop.f32.mrb[0].mxu0
        %v2509 = vadd.f32 0.0, %v2508
        %v2510 = vpop.f32.mrb[0].mxu0
        %2511 = vmatprep.mubr.f32.mxu0 0.0
        %v2512 = vand.u32 %v360, 4294901760
        %v2513 = vsub.f32 %v360, %v2512
        %v2514 = vand.u32 %v2513, 4294901760
        %v2515 = vsub.f32 %v2513, %v2514
        %v2516 = vand.u32 %v2515, 4294901760
        %2517 = vmatmul.mubr.f32.gmra.mrb[0].mxu0 %v2516
        %v2518 = vpop.f32.mrb[0].mxu0
        %v2519 = vadd.f32 0.0, %v2518
        %v2520 = vpop.f32.mrb[0].mxu0
        %2521 = vmatprep.mubr.f32.mxu0 0.0
        %v2522 = vand.u32 %v363, 4294901760
        %v2523 = vsub.f32 %v363, %v2522
        %v2524 = vand.u32 %v2523, 4294901760
        %v2525 = vsub.f32 %v2523, %v2524
        %v2526 = vand.u32 %v2525, 4294901760
        %2527 = vmatmul.mubr.f32.gmra.mrb[0].mxu0 %v2526
        %v2528 = vpop.f32.mrb[0].mxu0
        %v2529 = vadd.f32 0.0, %v2528
        %v2530 = vpop.f32.mrb[0].mxu0
        %2531 = vmatprep.mubr.f32.mxu0 0.0
        %v2532 = vand.u32 %v366, 4294901760
        %v2533 = vsub.f32 %v366, %v2532
        %v2534 = vand.u32 %v2533, 4294901760
        %v2535 = vsub.f32 %v2533, %v2534
        %v2536 = vand.u32 %v2535, 4294901760
        %2537 = vmatmul.mubr.f32.gmra.mrb[0].mxu0 %v2536
        %v2538 = vpop.f32.mrb[0].mxu0
        %v2539 = vadd.f32 0.0, %v2538
        %v2540 = vpop.f32.mrb[0].mxu0
        %2541 = vmatprep.mubr.f32.mxu0 0.0
        %v2542 = vand.u32 %v369, 4294901760
        %v2543 = vsub.f32 %v369, %v2542
        %v2544 = vand.u32 %v2543, 4294901760
        %v2545 = vsub.f32 %v2543, %v2544
        %v2546 = vand.u32 %v2545, 4294901760
        %2547 = vmatmul.mubr.f32.gmra.mrb[0].mxu0 %v2546
        %v2548 = vpop.f32.mrb[0].mxu0
        %v2549 = vadd.f32 0.0, %v2548
        %v2550 = vpop.f32.mrb[0].mxu0
        %2551 = vmatprep.mubr.f32.mxu0 0.0
        %v2552 = vand.u32 %v372, 4294901760
        %v2553 = vsub.f32 %v372, %v2552
        %v2554 = vand.u32 %v2553, 4294901760
        %v2555 = vsub.f32 %v2553, %v2554
        %v2556 = vand.u32 %v2555, 4294901760
        %2557 = vmatmul.mubr.f32.gmra.mrb[0].mxu0 %v2556
        %v2558 = vpop.f32.mrb[0].mxu0
        %v2559 = vadd.f32 0.0, %v2558
        %v2560 = vpop.f32.mrb[0].mxu0
        %2561 = vmatprep.mubr.f32.mxu0 0.0
        %v2562 = vand.u32 %v375, 4294901760
        %v2563 = vsub.f32 %v375, %v2562
        %v2564 = vand.u32 %v2563, 4294901760
        %v2565 = vsub.f32 %v2563, %v2564
        %v2566 = vand.u32 %v2565, 4294901760
        %2567 = vmatmul.mubr.f32.gmra.mrb[0].mxu0 %v2566
        %v2568 = vpop.f32.mrb[0].mxu0
        %v2569 = vadd.f32 0.0, %v2568
        %v2570 = vpop.f32.mrb[0].mxu0
        %2571 = vmatprep.mubr.f32.mxu0 0.0
        %v2572 = vand.u32 %v378, 4294901760
        %v2573 = vsub.f32 %v378, %v2572
        %v2574 = vand.u32 %v2573, 4294901760
        %v2575 = vsub.f32 %v2573, %v2574
        %v2576 = vand.u32 %v2575, 4294901760
        %2577 = vmatmul.mubr.f32.gmra.mrb[0].mxu0 %v2576
        %v2578 = vpop.f32.mrb[0].mxu0
        %v2579 = vadd.f32 0.0, %v2578
        %v2580 = vpop.f32.mrb[0].mxu0
        %2581 = vmatprep.mubr.f32.mxu0 0.0
        %v2582 = vand.u32 %v381, 4294901760
        %v2583 = vsub.f32 %v381, %v2582
        %v2584 = vand.u32 %v2583, 4294901760
        %v2585 = vsub.f32 %v2583, %v2584
        %v2586 = vand.u32 %v2585, 4294901760
        %2587 = vmatmul.mubr.f32.gmra.mrb[0].mxu0 %v2586
        %v2588 = vpop.f32.mrb[0].mxu0
        %v2589 = vadd.f32 0.0, %v2588
        %v2590 = vpop.f32.mrb[0].mxu0
        %2591 = vmatprep.mubr.f32.mxu0 0.0
        %v2592 = vand.u32 %v384, 4294901760
        %v2593 = vsub.f32 %v384, %v2592
        %v2594 = vand.u32 %v2593, 4294901760
        %v2595 = vsub.f32 %v2593, %v2594
        %v2596 = vand.u32 %v2595, 4294901760
        %2597 = vmatmul.mubr.f32.gmra.mrb[0].mxu0 %v2596
        %v2598 = vpop.f32.mrb[0].mxu0
        %v2599 = vadd.f32 0.0, %v2598
        %v2600 = vpop.f32.mrb[0].mxu0
        %2601 = vmatprep.mubr.f32.mxu0 0.0
        %v2602 = vand.u32 %v387, 4294901760
        %v2603 = vsub.f32 %v387, %v2602
        %v2604 = vand.u32 %v2603, 4294901760
        %v2605 = vsub.f32 %v2603, %v2604
        %v2606 = vand.u32 %v2605, 4294901760
        %2607 = vmatmul.mubr.f32.gmra.mrb[0].mxu0 %v2606
        %v2608 = vpop.f32.mrb[0].mxu0
        %v2609 = vadd.f32 0.0, %v2608
        %v2610 = vpop.f32.mrb[0].mxu0
        %2611 = vmatprep.mubr.f32.mxu0 0.0
        %v2612 = vand.u32 %v390, 4294901760
        %v2613 = vsub.f32 %v390, %v2612
        %v2614 = vand.u32 %v2613, 4294901760
        %v2615 = vsub.f32 %v2613, %v2614
        %v2616 = vand.u32 %v2615, 4294901760
        %2617 = vmatmul.mubr.f32.gmra.mrb[0].mxu0 %v2616
        %v2618 = vpop.f32.mrb[0].mxu0
        %v2619 = vadd.f32 0.0, %v2618
        %v2620 = vpop.f32.mrb[0].mxu0
        %2621 = vmatprep.mubr.f32.mxu0 0.0
        %v2622 = vand.u32 %v393, 4294901760
        %v2623 = vsub.f32 %v393, %v2622
        %v2624 = vand.u32 %v2623, 4294901760
        %v2625 = vsub.f32 %v2623, %v2624
        %v2626 = vand.u32 %v2625, 4294901760
        %2627 = vmatmul.mubr.f32.gmra.mrb[0].mxu0 %v2626
        %v2628 = vpop.f32.mrb[0].mxu0
        %v2629 = vadd.f32 0.0, %v2628
        %v2630 = vpop.f32.mrb[0].mxu0
        %2631 = vmatprep.mubr.f32.mxu0 0.0
        %v2632 = vand.u32 %v396, 4294901760
        %v2633 = vsub.f32 %v396, %v2632
        %v2634 = vand.u32 %v2633, 4294901760
        %v2635 = vsub.f32 %v2633, %v2634
        %v2636 = vand.u32 %v2635, 4294901760
        %2637 = vmatmul.mubr.f32.gmra.mrb[0].mxu0 %v2636
        %v2638 = vpop.f32.mrb[0].mxu0
        %v2639 = vadd.f32 0.0, %v2638
        %v2640 = vpop.f32.mrb[0].mxu0
        %2641 = vdwg.mxu0
        %2642 = vmatprep.subr.mxu0 0.0
        %v2643 = vand.u32 %v2249, 4294901760
        %v2644 = vsub.f32 %v2249, %v2643
        %v2645 = vand.u32 %v2644, 4294901760
        %v2646 = vsub.f32 %v2644, %v2645
        %v2647 = vand.u32 %v2646, 4294901760
        %2648 = vmatpush1.msra.mxu0 %v2647
        %2649 = vmatprep.subr.mxu0 0.0
        %v2650 = vand.u32 %v2250, 4294901760
        %v2651 = vsub.f32 %v2250, %v2650
        %v2652 = vand.u32 %v2651, 4294901760
        %v2653 = vsub.f32 %v2651, %v2652
        %v2654 = vand.u32 %v2653, 4294901760
        %2655 = vmatpush1.msra.mxu0 %v2654
        %2656 = vmatprep.subr.mxu0 0.0
        %v2657 = vand.u32 %v2251, 4294901760
        %v2658 = vsub.f32 %v2251, %v2657
        %v2659 = vand.u32 %v2658, 4294901760
        %v2660 = vsub.f32 %v2658, %v2659
        %v2661 = vand.u32 %v2660, 4294901760
        %2662 = vmatpush1.msra.mxu0 %v2661
        %2663 = vmatprep.subr.mxu0 0.0
        %v2664 = vand.u32 %v2252, 4294901760
        %v2665 = vsub.f32 %v2252, %v2664
        %v2666 = vand.u32 %v2665, 4294901760
        %v2667 = vsub.f32 %v2665, %v2666
        %v2668 = vand.u32 %v2667, 4294901760
        %2669 = vmatpush1.msra.mxu0 %v2668
        %2670 = vmatprep.subr.mxu0 0.0
        %2671 = vmatpush1.msra.mxu0 0.0
        %2672 = vmatprep.subr.mxu0 0.0
        %2673 = vmatpush1.msra.mxu0 0.0
        %2674 = vmatprep.subr.mxu0 0.0
        %2675 = vmatpush1.msra.mxu0 0.0
        %2676 = vmatprep.subr.mxu0 0.0
        %2677 = vmatpush1.msra.mxu0 0.0
        %2678 = vmatprep.subr.mxu0 0.0
        %2679 = vmatpush1.msra.mxu0 0.0
        %2680 = vmatprep.subr.mxu0 0.0
        %2681 = vmatpush1.msra.mxu0 0.0
        %2682 = vmatprep.subr.mxu0 0.0
        %2683 = vmatpush1.msra.mxu0 0.0
        %2684 = vmatprep.subr.mxu0 0.0
        %2685 = vmatpush1.msra.mxu0 0.0
        %2686 = vmatprep.subr.mxu0 0.0
        %2687 = vmatpush1.msra.mxu0 0.0
        %2688 = vmatprep.subr.mxu0 0.0
        %2689 = vmatpush1.msra.mxu0 0.0
        %2690 = vmatprep.subr.mxu0 0.0
        %2691 = vmatpush1.msra.mxu0 0.0
        %2692 = vmatprep.subr.mxu0 0.0
        %2693 = vmatpush1.msra.mxu0 0.0
        %2694 = vmatprep.subr.mxu0 0.0
        %2695 = vmatpush1.msra.mxu0 0.0
        %2696 = vmatprep.subr.mxu0 0.0
        %2697 = vmatpush1.msra.mxu0 0.0
        %2698 = vmatprep.subr.mxu0 0.0
        %2699 = vmatpush1.msra.mxu0 0.0
        %2700 = vmatprep.subr.mxu0 0.0
        %2701 = vmatpush1.msra.mxu0 0.0
        %2702 = vmatprep.subr.mxu0 0.0
        %2703 = vmatpush1.msra.mxu0 0.0
        %2704 = vmatprep.subr.mxu0 0.0
        %2705 = vmatpush1.msra.mxu0 0.0
        %2706 = vmatprep.subr.mxu0 0.0
        %2707 = vmatpush1.msra.mxu0 0.0
        %2708 = vmatprep.subr.mxu0 0.0
        %2709 = vmatpush1.msra.mxu0 0.0
        %2710 = vmatprep.subr.mxu0 0.0
        %2711 = vmatpush1.msra.mxu0 0.0
        %2712 = vmatprep.subr.mxu0 0.0
        %2713 = vmatpush1.msra.mxu0 0.0
        %2714 = vmatprep.subr.mxu0 0.0
        %2715 = vmatpush1.msra.mxu0 0.0
        %2716 = vmatprep.subr.mxu0 0.0
        %2717 = vmatpush1.msra.mxu0 0.0
        %2718 = vmatprep.subr.mxu0 0.0
        %2719 = vmatpush1.msra.mxu0 0.0
        %2720 = vmatprep.subr.mxu0 0.0
        %2721 = vmatpush1.msra.mxu0 0.0
        %2722 = vmatprep.subr.mxu0 0.0
        %2723 = vmatpush1.msra.mxu0 0.0
        %2724 = vmatprep.subr.mxu0 0.0
        %2725 = vmatpush1.msra.mxu0 0.0
        %2726 = vmatprep.mubr.f32.mxu0 0.0
        %v2727 = vand.u32 %v303, 4294901760
        %2728 = vmatmul.mubr.f32.gmra.mrb[0].mxu0 %v2727
        %v2729 = vpop.f32.mrb[0].mxu0
        %v2730 = vadd.f32 %v2329, %v2729
        %v2731 = vpop.f32.mrb[0].mxu0
        %2732 = vmatprep.mubr.f32.mxu0 0.0
        %v2733 = vand.u32 %v306, 4294901760
        %2734 = vmatmul.mubr.f32.gmra.mrb[0].mxu0 %v2733
        %v2735 = vpop.f32.mrb[0].mxu0
        %v2736 = vadd.f32 %v2339, %v2735
        %v2737 = vpop.f32.mrb[0].mxu0
        %2738 = vmatprep.mubr.f32.mxu0 0.0
        %v2739 = vand.u32 %v309, 4294901760
        %2740 = vmatmul.mubr.f32.gmra.mrb[0].mxu0 %v2739
        %v2741 = vpop.f32.mrb[0].mxu0
        %v2742 = vadd.f32 %v2349, %v2741
        %v2743 = vpop.f32.mrb[0].mxu0
        %2744 = vmatprep.mubr.f32.mxu0 0.0
        %v2745 = vand.u32 %v312, 4294901760
        %2746 = vmatmul.mubr.f32.gmra.mrb[0].mxu0 %v2745
        %v2747 = vpop.f32.mrb[0].mxu0
        %v2748 = vadd.f32 %v2359, %v2747
        %v2749 = vpop.f32.mrb[0].mxu0
        %2750 = vmatprep.mubr.f32.mxu0 0.0
        %v2751 = vand.u32 %v315, 4294901760
        %2752 = vmatmul.mubr.f32.gmra.mrb[0].mxu0 %v2751
        %v2753 = vpop.f32.mrb[0].mxu0
        %v2754 = vadd.f32 %v2369, %v2753
        %v2755 = vpop.f32.mrb[0].mxu0
        %2756 = vmatprep.mubr.f32.mxu0 0.0
        %v2757 = vand.u32 %v318, 4294901760
        %2758 = vmatmul.mubr.f32.gmra.mrb[0].mxu0 %v2757
        %v2759 = vpop.f32.mrb[0].mxu0
        %v2760 = vadd.f32 %v2379, %v2759
        %v2761 = vpop.f32.mrb[0].mxu0
        %2762 = vmatprep.mubr.f32.mxu0 0.0
        %v2763 = vand.u32 %v321, 4294901760
        %2764 = vmatmul.mubr.f32.gmra.mrb[0].mxu0 %v2763
        %v2765 = vpop.f32.mrb[0].mxu0
        %v2766 = vadd.f32 %v2389, %v2765
        %v2767 = vpop.f32.mrb[0].mxu0
        %2768 = vmatprep.mubr.f32.mxu0 0.0
        %v2769 = vand.u32 %v324, 4294901760
        %2770 = vmatmul.mubr.f32.gmra.mrb[0].mxu0 %v2769
        %v2771 = vpop.f32.mrb[0].mxu0
        %v2772 = vadd.f32 %v2399, %v2771
        %v2773 = vpop.f32.mrb[0].mxu0
        %2774 = vmatprep.mubr.f32.mxu0 0.0
        %v2775 = vand.u32 %v327, 4294901760
        %2776 = vmatmul.mubr.f32.gmra.mrb[0].mxu0 %v2775
        %v2777 = vpop.f32.mrb[0].mxu0
        %v2778 = vadd.f32 %v2409, %v2777
        %v2779 = vpop.f32.mrb[0].mxu0
        %2780 = vmatprep.mubr.f32.mxu0 0.0
        %v2781 = vand.u32 %v330, 4294901760
        %2782 = vmatmul.mubr.f32.gmra.mrb[0].mxu0 %v2781
        %v2783 = vpop.f32.mrb[0].mxu0
        %v2784 = vadd.f32 %v2419, %v2783
        %v2785 = vpop.f32.mrb[0].mxu0
        %2786 = vmatprep.mubr.f32.mxu0 0.0
        %v2787 = vand.u32 %v333, 4294901760
        %2788 = vmatmul.mubr.f32.gmra.mrb[0].mxu0 %v2787
        %v2789 = vpop.f32.mrb[0].mxu0
        %v2790 = vadd.f32 %v2429, %v2789
        %v2791 = vpop.f32.mrb[0].mxu0
        %2792 = vmatprep.mubr.f32.mxu0 0.0
        %v2793 = vand.u32 %v336, 4294901760
        %2794 = vmatmul.mubr.f32.gmra.mrb[0].mxu0 %v2793
        %v2795 = vpop.f32.mrb[0].mxu0
        %v2796 = vadd.f32 %v2439, %v2795
        %v2797 = vpop.f32.mrb[0].mxu0
        %2798 = vmatprep.mubr.f32.mxu0 0.0
        %v2799 = vand.u32 %v339, 4294901760
        %2800 = vmatmul.mubr.f32.gmra.mrb[0].mxu0 %v2799
        %v2801 = vpop.f32.mrb[0].mxu0
        %v2802 = vadd.f32 %v2449, %v2801
        %v2803 = vpop.f32.mrb[0].mxu0
        %2804 = vmatprep.mubr.f32.mxu0 0.0
        %v2805 = vand.u32 %v342, 4294901760
        %2806 = vmatmul.mubr.f32.gmra.mrb[0].mxu0 %v2805
        %v2807 = vpop.f32.mrb[0].mxu0
        %v2808 = vadd.f32 %v2459, %v2807
        %v2809 = vpop.f32.mrb[0].mxu0
        %2810 = vmatprep.mubr.f32.mxu0 0.0
        %v2811 = vand.u32 %v345, 4294901760
        %2812 = vmatmul.mubr.f32.gmra.mrb[0].mxu0 %v2811
        %v2813 = vpop.f32.mrb[0].mxu0
        %v2814 = vadd.f32 %v2469, %v2813
        %v2815 = vpop.f32.mrb[0].mxu0
        %2816 = vmatprep.mubr.f32.mxu0 0.0
        %v2817 = vand.u32 %v348, 4294901760
        %2818 = vmatmul.mubr.f32.gmra.mrb[0].mxu0 %v2817
        %v2819 = vpop.f32.mrb[0].mxu0
        %v2820 = vadd.f32 %v2479, %v2819
        %v2821 = vpop.f32.mrb[0].mxu0
        %2822 = vmatprep.mubr.f32.mxu0 0.0
        %v2823 = vand.u32 %v351, 4294901760
        %2824 = vmatmul.mubr.f32.gmra.mrb[0].mxu0 %v2823
        %v2825 = vpop.f32.mrb[0].mxu0
        %v2826 = vadd.f32 %v2489, %v2825
        %v2827 = vpop.f32.mrb[0].mxu0
        %2828 = vmatprep.mubr.f32.mxu0 0.0
        %v2829 = vand.u32 %v354, 4294901760
        %2830 = vmatmul.mubr.f32.gmra.mrb[0].mxu0 %v2829
        %v2831 = vpop.f32.mrb[0].mxu0
        %v2832 = vadd.f32 %v2499, %v2831
        %v2833 = vpop.f32.mrb[0].mxu0
        %2834 = vmatprep.mubr.f32.mxu0 0.0
        %v2835 = vand.u32 %v357, 4294901760
        %2836 = vmatmul.mubr.f32.gmra.mrb[0].mxu0 %v2835
        %v2837 = vpop.f32.mrb[0].mxu0
        %v2838 = vadd.f32 %v2509, %v2837
        %v2839 = vpop.f32.mrb[0].mxu0
        %2840 = vmatprep.mubr.f32.mxu0 0.0
        %v2841 = vand.u32 %v360, 4294901760
        %2842 = vmatmul.mubr.f32.gmra.mrb[0].mxu0 %v2841
        %v2843 = vpop.f32.mrb[0].mxu0
        %v2844 = vadd.f32 %v2519, %v2843
        %v2845 = vpop.f32.mrb[0].mxu0
        %2846 = vmatprep.mubr.f32.mxu0 0.0
        %v2847 = vand.u32 %v363, 4294901760
        %2848 = vmatmul.mubr.f32.gmra.mrb[0].mxu0 %v2847
        %v2849 = vpop.f32.mrb[0].mxu0
        %v2850 = vadd.f32 %v2529, %v2849
        %v2851 = vpop.f32.mrb[0].mxu0
        %2852 = vmatprep.mubr.f32.mxu0 0.0
        %v2853 = vand.u32 %v366, 4294901760
        %2854 = vmatmul.mubr.f32.gmra.mrb[0].mxu0 %v2853
        %v2855 = vpop.f32.mrb[0].mxu0
        %v2856 = vadd.f32 %v2539, %v2855
        %v2857 = vpop.f32.mrb[0].mxu0
        %2858 = vmatprep.mubr.f32.mxu0 0.0
        %v2859 = vand.u32 %v369, 4294901760
        %2860 = vmatmul.mubr.f32.gmra.mrb[0].mxu0 %v2859
        %v2861 = vpop.f32.mrb[0].mxu0
        %v2862 = vadd.f32 %v2549, %v2861
        %v2863 = vpop.f32.mrb[0].mxu0
        %2864 = vmatprep.mubr.f32.mxu0 0.0
        %v2865 = vand.u32 %v372, 4294901760
        %2866 = vmatmul.mubr.f32.gmra.mrb[0].mxu0 %v2865
        %v2867 = vpop.f32.mrb[0].mxu0
        %v2868 = vadd.f32 %v2559, %v2867
        %v2869 = vpop.f32.mrb[0].mxu0
        %2870 = vmatprep.mubr.f32.mxu0 0.0
        %v2871 = vand.u32 %v375, 4294901760
        %2872 = vmatmul.mubr.f32.gmra.mrb[0].mxu0 %v2871
        %v2873 = vpop.f32.mrb[0].mxu0
        %v2874 = vadd.f32 %v2569, %v2873
        %v2875 = vpop.f32.mrb[0].mxu0
        %2876 = vmatprep.mubr.f32.mxu0 0.0
        %v2877 = vand.u32 %v378, 4294901760
        %2878 = vmatmul.mubr.f32.gmra.mrb[0].mxu0 %v2877
        %v2879 = vpop.f32.mrb[0].mxu0
        %v2880 = vadd.f32 %v2579, %v2879
        %v2881 = vpop.f32.mrb[0].mxu0
        %2882 = vmatprep.mubr.f32.mxu0 0.0
        %v2883 = vand.u32 %v381, 4294901760
        %2884 = vmatmul.mubr.f32.gmra.mrb[0].mxu0 %v2883
        %v2885 = vpop.f32.mrb[0].mxu0
        %v2886 = vadd.f32 %v2589, %v2885
        %v2887 = vpop.f32.mrb[0].mxu0
        %2888 = vmatprep.mubr.f32.mxu0 0.0
        %v2889 = vand.u32 %v384, 4294901760
        %2890 = vmatmul.mubr.f32.gmra.mrb[0].mxu0 %v2889
        %v2891 = vpop.f32.mrb[0].mxu0
        %v2892 = vadd.f32 %v2599, %v2891
        %v2893 = vpop.f32.mrb[0].mxu0
        %2894 = vmatprep.mubr.f32.mxu0 0.0
        %v2895 = vand.u32 %v387, 4294901760
        %2896 = vmatmul.mubr.f32.gmra.mrb[0].mxu0 %v2895
        %v2897 = vpop.f32.mrb[0].mxu0
        %v2898 = vadd.f32 %v2609, %v2897
        %v2899 = vpop.f32.mrb[0].mxu0
        %2900 = vmatprep.mubr.f32.mxu0 0.0
        %v2901 = vand.u32 %v390, 4294901760
        %2902 = vmatmul.mubr.f32.gmra.mrb[0].mxu0 %v2901
        %v2903 = vpop.f32.mrb[0].mxu0
        %v2904 = vadd.f32 %v2619, %v2903
        %v2905 = vpop.f32.mrb[0].mxu0
        %2906 = vmatprep.mubr.f32.mxu0 0.0
        %v2907 = vand.u32 %v393, 4294901760
        %2908 = vmatmul.mubr.f32.gmra.mrb[0].mxu0 %v2907
        %v2909 = vpop.f32.mrb[0].mxu0
        %v2910 = vadd.f32 %v2629, %v2909
        %v2911 = vpop.f32.mrb[0].mxu0
        %2912 = vmatprep.mubr.f32.mxu0 0.0
        %v2913 = vand.u32 %v396, 4294901760
        %2914 = vmatmul.mubr.f32.gmra.mrb[0].mxu0 %v2913
        %v2915 = vpop.f32.mrb[0].mxu0
        %v2916 = vadd.f32 %v2639, %v2915
        %v2917 = vpop.f32.mrb[0].mxu0
        %2918 = vdwg.mxu0
        %2919 = vmatprep.subr.mxu0 0.0
        %v2920 = vand.u32 %v2249, 4294901760
        %v2921 = vsub.f32 %v2249, %v2920
        %2922 = vmatpush1.msra.mxu0 %v2921
        %2923 = vmatprep.subr.mxu0 0.0
        %v2924 = vand.u32 %v2250, 4294901760
        %v2925 = vsub.f32 %v2250, %v2924
        %2926 = vmatpush1.msra.mxu0 %v2925
        %2927 = vmatprep.subr.mxu0 0.0
        %v2928 = vand.u32 %v2251, 4294901760
        %v2929 = vsub.f32 %v2251, %v2928
        %2930 = vmatpush1.msra.mxu0 %v2929
        %2931 = vmatprep.subr.mxu0 0.0
        %v2932 = vand.u32 %v2252, 4294901760
        %v2933 = vsub.f32 %v2252, %v2932
        %2934 = vmatpush1.msra.mxu0 %v2933
        %2935 = vmatprep.subr.mxu0 0.0
        %2936 = vmatpush1.msra.mxu0 0.0
        %2937 = vmatprep.subr.mxu0 0.0
        %2938 = vmatpush1.msra.mxu0 0.0
        %2939 = vmatprep.subr.mxu0 0.0
        %2940 = vmatpush1.msra.mxu0 0.0
        %2941 = vmatprep.subr.mxu0 0.0
        %2942 = vmatpush1.msra.mxu0 0.0
        %2943 = vmatprep.subr.mxu0 0.0
        %2944 = vmatpush1.msra.mxu0 0.0
        %2945 = vmatprep.subr.mxu0 0.0
        %2946 = vmatpush1.msra.mxu0 0.0
        %2947 = vmatprep.subr.mxu0 0.0
        %2948 = vmatpush1.msra.mxu0 0.0
        %2949 = vmatprep.subr.mxu0 0.0
        %2950 = vmatpush1.msra.mxu0 0.0
        %2951 = vmatprep.subr.mxu0 0.0
        %2952 = vmatpush1.msra.mxu0 0.0
        %2953 = vmatprep.subr.mxu0 0.0
        %2954 = vmatpush1.msra.mxu0 0.0
        %2955 = vmatprep.subr.mxu0 0.0
        %2956 = vmatpush1.msra.mxu0 0.0
        %2957 = vmatprep.subr.mxu0 0.0
        %2958 = vmatpush1.msra.mxu0 0.0
        %2959 = vmatprep.subr.mxu0 0.0
        %2960 = vmatpush1.msra.mxu0 0.0
        %2961 = vmatprep.subr.mxu0 0.0
        %2962 = vmatpush1.msra.mxu0 0.0
        %2963 = vmatprep.subr.mxu0 0.0
        %2964 = vmatpush1.msra.mxu0 0.0
        %2965 = vmatprep.subr.mxu0 0.0
        %2966 = vmatpush1.msra.mxu0 0.0
        %2967 = vmatprep.subr.mxu0 0.0
        %2968 = vmatpush1.msra.mxu0 0.0
        %2969 = vmatprep.subr.mxu0 0.0
        %2970 = vmatpush1.msra.mxu0 0.0
        %2971 = vmatprep.subr.mxu0 0.0
        %2972 = vmatpush1.msra.mxu0 0.0
        %2973 = vmatprep.subr.mxu0 0.0
        %2974 = vmatpush1.msra.mxu0 0.0
        %2975 = vmatprep.subr.mxu0 0.0
        %2976 = vmatpush1.msra.mxu0 0.0
        %2977 = vmatprep.subr.mxu0 0.0
        %2978 = vmatpush1.msra.mxu0 0.0
        %2979 = vmatprep.subr.mxu0 0.0
        %2980 = vmatpush1.msra.mxu0 0.0
        %2981 = vmatprep.subr.mxu0 0.0
        %2982 = vmatpush1.msra.mxu0 0.0
        %2983 = vmatprep.subr.mxu0 0.0
        %2984 = vmatpush1.msra.mxu0 0.0
        %2985 = vmatprep.subr.mxu0 0.0
        %2986 = vmatpush1.msra.mxu0 0.0
        %2987 = vmatprep.subr.mxu0 0.0
        %2988 = vmatpush1.msra.mxu0 0.0
        %2989 = vmatprep.subr.mxu0 0.0
        %2990 = vmatpush1.msra.mxu0 0.0
        %2991 = vmatprep.mubr.f32.mxu0 0.0
        %v2992 = vand.u32 %v303, 4294901760
        %v2993 = vsub.f32 %v303, %v2992
        %2994 = vmatmul.mubr.f32.gmra.mrb[0].mxu0 %v2993
        %v2995 = vpop.f32.mrb[0].mxu0
        %v2996 = vadd.f32 %v2730, %v2995
        %v2997 = vpop.f32.mrb[0].mxu0
        %2998 = vmatprep.mubr.f32.mxu0 0.0
        %v2999 = vand.u32 %v306, 4294901760
        %v3000 = vsub.f32 %v306, %v2999
        %3001 = vmatmul.mubr.f32.gmra.mrb[0].mxu0 %v3000
        %v3002 = vpop.f32.mrb[0].mxu0
        %v3003 = vadd.f32 %v2736, %v3002
        %v3004 = vpop.f32.mrb[0].mxu0
        %3005 = vmatprep.mubr.f32.mxu0 0.0
        %v3006 = vand.u32 %v309, 4294901760
        %v3007 = vsub.f32 %v309, %v3006
        %3008 = vmatmul.mubr.f32.gmra.mrb[0].mxu0 %v3007
        %v3009 = vpop.f32.mrb[0].mxu0
        %v3010 = vadd.f32 %v2742, %v3009
        %v3011 = vpop.f32.mrb[0].mxu0
        %3012 = vmatprep.mubr.f32.mxu0 0.0
        %v3013 = vand.u32 %v312, 4294901760
        %v3014 = vsub.f32 %v312, %v3013
        %3015 = vmatmul.mubr.f32.gmra.mrb[0].mxu0 %v3014
        %v3016 = vpop.f32.mrb[0].mxu0
        %v3017 = vadd.f32 %v2748, %v3016
        %v3018 = vpop.f32.mrb[0].mxu0
        %3019 = vmatprep.mubr.f32.mxu0 0.0
        %v3020 = vand.u32 %v315, 4294901760
        %v3021 = vsub.f32 %v315, %v3020
        %3022 = vmatmul.mubr.f32.gmra.mrb[0].mxu0 %v3021
        %v3023 = vpop.f32.mrb[0].mxu0
        %v3024 = vadd.f32 %v2754, %v3023
        %v3025 = vpop.f32.mrb[0].mxu0
        %3026 = vmatprep.mubr.f32.mxu0 0.0
        %v3027 = vand.u32 %v318, 4294901760
        %v3028 = vsub.f32 %v318, %v3027
        %3029 = vmatmul.mubr.f32.gmra.mrb[0].mxu0 %v3028
        %v3030 = vpop.f32.mrb[0].mxu0
        %v3031 = vadd.f32 %v2760, %v3030
        %v3032 = vpop.f32.mrb[0].mxu0
        %3033 = vmatprep.mubr.f32.mxu0 0.0
        %v3034 = vand.u32 %v321, 4294901760
        %v3035 = vsub.f32 %v321, %v3034
        %3036 = vmatmul.mubr.f32.gmra.mrb[0].mxu0 %v3035
        %v3037 = vpop.f32.mrb[0].mxu0
        %v3038 = vadd.f32 %v2766, %v3037
        %v3039 = vpop.f32.mrb[0].mxu0
        %3040 = vmatprep.mubr.f32.mxu0 0.0
        %v3041 = vand.u32 %v324, 4294901760
        %v3042 = vsub.f32 %v324, %v3041
        %3043 = vmatmul.mubr.f32.gmra.mrb[0].mxu0 %v3042
        %v3044 = vpop.f32.mrb[0].mxu0
        %v3045 = vadd.f32 %v2772, %v3044
        %v3046 = vpop.f32.mrb[0].mxu0
        %3047 = vmatprep.mubr.f32.mxu0 0.0
        %v3048 = vand.u32 %v327, 4294901760
        %v3049 = vsub.f32 %v327, %v3048
        %3050 = vmatmul.mubr.f32.gmra.mrb[0].mxu0 %v3049
        %v3051 = vpop.f32.mrb[0].mxu0
        %v3052 = vadd.f32 %v2778, %v3051
        %v3053 = vpop.f32.mrb[0].mxu0
        %3054 = vmatprep.mubr.f32.mxu0 0.0
        %v3055 = vand.u32 %v330, 4294901760
        %v3056 = vsub.f32 %v330, %v3055
        %3057 = vmatmul.mubr.f32.gmra.mrb[0].mxu0 %v3056
        %v3058 = vpop.f32.mrb[0].mxu0
        %v3059 = vadd.f32 %v2784, %v3058
        %v3060 = vpop.f32.mrb[0].mxu0
        %3061 = vmatprep.mubr.f32.mxu0 0.0
        %v3062 = vand.u32 %v333, 4294901760
        %v3063 = vsub.f32 %v333, %v3062
        %3064 = vmatmul.mubr.f32.gmra.mrb[0].mxu0 %v3063
        %v3065 = vpop.f32.mrb[0].mxu0
        %v3066 = vadd.f32 %v2790, %v3065
        %v3067 = vpop.f32.mrb[0].mxu0
        %3068 = vmatprep.mubr.f32.mxu0 0.0
        %v3069 = vand.u32 %v336, 4294901760
        %v3070 = vsub.f32 %v336, %v3069
        %3071 = vmatmul.mubr.f32.gmra.mrb[0].mxu0 %v3070
        %v3072 = vpop.f32.mrb[0].mxu0
        %v3073 = vadd.f32 %v2796, %v3072
        %v3074 = vpop.f32.mrb[0].mxu0
        %3075 = vmatprep.mubr.f32.mxu0 0.0
        %v3076 = vand.u32 %v339, 4294901760
        %v3077 = vsub.f32 %v339, %v3076
        %3078 = vmatmul.mubr.f32.gmra.mrb[0].mxu0 %v3077
        %v3079 = vpop.f32.mrb[0].mxu0
        %v3080 = vadd.f32 %v2802, %v3079
        %v3081 = vpop.f32.mrb[0].mxu0
        %3082 = vmatprep.mubr.f32.mxu0 0.0
        %v3083 = vand.u32 %v342, 4294901760
        %v3084 = vsub.f32 %v342, %v3083
        %3085 = vmatmul.mubr.f32.gmra.mrb[0].mxu0 %v3084
        %v3086 = vpop.f32.mrb[0].mxu0
        %v3087 = vadd.f32 %v2808, %v3086
        %v3088 = vpop.f32.mrb[0].mxu0
        %3089 = vmatprep.mubr.f32.mxu0 0.0
        %v3090 = vand.u32 %v345, 4294901760
        %v3091 = vsub.f32 %v345, %v3090
        %3092 = vmatmul.mubr.f32.gmra.mrb[0].mxu0 %v3091
        %v3093 = vpop.f32.mrb[0].mxu0
        %v3094 = vadd.f32 %v2814, %v3093
        %v3095 = vpop.f32.mrb[0].mxu0
        %3096 = vmatprep.mubr.f32.mxu0 0.0
        %v3097 = vand.u32 %v348, 4294901760
        %v3098 = vsub.f32 %v348, %v3097
        %3099 = vmatmul.mubr.f32.gmra.mrb[0].mxu0 %v3098
        %v3100 = vpop.f32.mrb[0].mxu0
        %v3101 = vadd.f32 %v2820, %v3100
        %v3102 = vpop.f32.mrb[0].mxu0
        %3103 = vmatprep.mubr.f32.mxu0 0.0
        %v3104 = vand.u32 %v351, 4294901760
        %v3105 = vsub.f32 %v351, %v3104
        %3106 = vmatmul.mubr.f32.gmra.mrb[0].mxu0 %v3105
        %v3107 = vpop.f32.mrb[0].mxu0
        %v3108 = vadd.f32 %v2826, %v3107
        %v3109 = vpop.f32.mrb[0].mxu0
        %3110 = vmatprep.mubr.f32.mxu0 0.0
        %v3111 = vand.u32 %v354, 4294901760
        %v3112 = vsub.f32 %v354, %v3111
        %3113 = vmatmul.mubr.f32.gmra.mrb[0].mxu0 %v3112
        %v3114 = vpop.f32.mrb[0].mxu0
        %v3115 = vadd.f32 %v2832, %v3114
        %v3116 = vpop.f32.mrb[0].mxu0
        %3117 = vmatprep.mubr.f32.mxu0 0.0
        %v3118 = vand.u32 %v357, 4294901760
        %v3119 = vsub.f32 %v357, %v3118
        %3120 = vmatmul.mubr.f32.gmra.mrb[0].mxu0 %v3119
        %v3121 = vpop.f32.mrb[0].mxu0
        %v3122 = vadd.f32 %v2838, %v3121
        %v3123 = vpop.f32.mrb[0].mxu0
        %3124 = vmatprep.mubr.f32.mxu0 0.0
        %v3125 = vand.u32 %v360, 4294901760
        %v3126 = vsub.f32 %v360, %v3125
        %3127 = vmatmul.mubr.f32.gmra.mrb[0].mxu0 %v3126
        %v3128 = vpop.f32.mrb[0].mxu0
        %v3129 = vadd.f32 %v2844, %v3128
        %v3130 = vpop.f32.mrb[0].mxu0
        %3131 = vmatprep.mubr.f32.mxu0 0.0
        %v3132 = vand.u32 %v363, 4294901760
        %v3133 = vsub.f32 %v363, %v3132
        %3134 = vmatmul.mubr.f32.gmra.mrb[0].mxu0 %v3133
        %v3135 = vpop.f32.mrb[0].mxu0
        %v3136 = vadd.f32 %v2850, %v3135
        %v3137 = vpop.f32.mrb[0].mxu0
        %3138 = vmatprep.mubr.f32.mxu0 0.0
        %v3139 = vand.u32 %v366, 4294901760
        %v3140 = vsub.f32 %v366, %v3139
        %3141 = vmatmul.mubr.f32.gmra.mrb[0].mxu0 %v3140
        %v3142 = vpop.f32.mrb[0].mxu0
        %v3143 = vadd.f32 %v2856, %v3142
        %v3144 = vpop.f32.mrb[0].mxu0
        %3145 = vmatprep.mubr.f32.mxu0 0.0
        %v3146 = vand.u32 %v369, 4294901760
        %v3147 = vsub.f32 %v369, %v3146
        %3148 = vmatmul.mubr.f32.gmra.mrb[0].mxu0 %v3147
        %v3149 = vpop.f32.mrb[0].mxu0
        %v3150 = vadd.f32 %v2862, %v3149
        %v3151 = vpop.f32.mrb[0].mxu0
        %3152 = vmatprep.mubr.f32.mxu0 0.0
        %v3153 = vand.u32 %v372, 4294901760
        %v3154 = vsub.f32 %v372, %v3153
        %3155 = vmatmul.mubr.f32.gmra.mrb[0].mxu0 %v3154
        %v3156 = vpop.f32.mrb[0].mxu0
        %v3157 = vadd.f32 %v2868, %v3156
        %v3158 = vpop.f32.mrb[0].mxu0
        %3159 = vmatprep.mubr.f32.mxu0 0.0
        %v3160 = vand.u32 %v375, 4294901760
        %v3161 = vsub.f32 %v375, %v3160
        %3162 = vmatmul.mubr.f32.gmra.mrb[0].mxu0 %v3161
        %v3163 = vpop.f32.mrb[0].mxu0
        %v3164 = vadd.f32 %v2874, %v3163
        %v3165 = vpop.f32.mrb[0].mxu0
        %3166 = vmatprep.mubr.f32.mxu0 0.0
        %v3167 = vand.u32 %v378, 4294901760
        %v3168 = vsub.f32 %v378, %v3167
        %3169 = vmatmul.mubr.f32.gmra.mrb[0].mxu0 %v3168
        %v3170 = vpop.f32.mrb[0].mxu0
        %v3171 = vadd.f32 %v2880, %v3170
        %v3172 = vpop.f32.mrb[0].mxu0
        %3173 = vmatprep.mubr.f32.mxu0 0.0
        %v3174 = vand.u32 %v381, 4294901760
        %v3175 = vsub.f32 %v381, %v3174
        %3176 = vmatmul.mubr.f32.gmra.mrb[0].mxu0 %v3175
        %v3177 = vpop.f32.mrb[0].mxu0
        %v3178 = vadd.f32 %v2886, %v3177
        %v3179 = vpop.f32.mrb[0].mxu0
        %3180 = vmatprep.mubr.f32.mxu0 0.0
        %v3181 = vand.u32 %v384, 4294901760
        %v3182 = vsub.f32 %v384, %v3181
        %3183 = vmatmul.mubr.f32.gmra.mrb[0].mxu0 %v3182
        %v3184 = vpop.f32.mrb[0].mxu0
        %v3185 = vadd.f32 %v2892, %v3184
        %v3186 = vpop.f32.mrb[0].mxu0
        %3187 = vmatprep.mubr.f32.mxu0 0.0
        %v3188 = vand.u32 %v387, 4294901760
        %v3189 = vsub.f32 %v387, %v3188
        %3190 = vmatmul.mubr.f32.gmra.mrb[0].mxu0 %v3189
        %v3191 = vpop.f32.mrb[0].mxu0
        %v3192 = vadd.f32 %v2898, %v3191
        %v3193 = vpop.f32.mrb[0].mxu0
        %3194 = vmatprep.mubr.f32.mxu0 0.0
        %v3195 = vand.u32 %v390, 4294901760
        %v3196 = vsub.f32 %v390, %v3195
        %3197 = vmatmul.mubr.f32.gmra.mrb[0].mxu0 %v3196
        %v3198 = vpop.f32.mrb[0].mxu0
        %v3199 = vadd.f32 %v2904, %v3198
        %v3200 = vpop.f32.mrb[0].mxu0
        %3201 = vmatprep.mubr.f32.mxu0 0.0
        %v3202 = vand.u32 %v393, 4294901760
        %v3203 = vsub.f32 %v393, %v3202
        %3204 = vmatmul.mubr.f32.gmra.mrb[0].mxu0 %v3203
        %v3205 = vpop.f32.mrb[0].mxu0
        %v3206 = vadd.f32 %v2910, %v3205
        %v3207 = vpop.f32.mrb[0].mxu0
        %3208 = vmatprep.mubr.f32.mxu0 0.0
        %v3209 = vand.u32 %v396, 4294901760
        %v3210 = vsub.f32 %v396, %v3209
        %3211 = vmatmul.mubr.f32.gmra.mrb[0].mxu0 %v3210
        %v3212 = vpop.f32.mrb[0].mxu0
        %v3213 = vadd.f32 %v2916, %v3212
        %v3214 = vpop.f32.mrb[0].mxu0
        %3215 = vdwg.mxu0
        %3216 = vmatprep.subr.mxu0 0.0
        %v3217 = vand.u32 %v2249, 4294901760
        %3218 = vmatpush1.msra.mxu0 %v3217
        %3219 = vmatprep.subr.mxu0 0.0
        %v3220 = vand.u32 %v2250, 4294901760
        %3221 = vmatpush1.msra.mxu0 %v3220
        %3222 = vmatprep.subr.mxu0 0.0
        %v3223 = vand.u32 %v2251, 4294901760
        %3224 = vmatpush1.msra.mxu0 %v3223
        %3225 = vmatprep.subr.mxu0 0.0
        %v3226 = vand.u32 %v2252, 4294901760
        %3227 = vmatpush1.msra.mxu0 %v3226
        %3228 = vmatprep.subr.mxu0 0.0
        %3229 = vmatpush1.msra.mxu0 0.0
        %3230 = vmatprep.subr.mxu0 0.0
        %3231 = vmatpush1.msra.mxu0 0.0
        %3232 = vmatprep.subr.mxu0 0.0
        %3233 = vmatpush1.msra.mxu0 0.0
        %3234 = vmatprep.subr.mxu0 0.0
        %3235 = vmatpush1.msra.mxu0 0.0
        %3236 = vmatprep.subr.mxu0 0.0
        %3237 = vmatpush1.msra.mxu0 0.0
        %3238 = vmatprep.subr.mxu0 0.0
        %3239 = vmatpush1.msra.mxu0 0.0
        %3240 = vmatprep.subr.mxu0 0.0
        %3241 = vmatpush1.msra.mxu0 0.0
        %3242 = vmatprep.subr.mxu0 0.0
        %3243 = vmatpush1.msra.mxu0 0.0
        %3244 = vmatprep.subr.mxu0 0.0
        %3245 = vmatpush1.msra.mxu0 0.0
        %3246 = vmatprep.subr.mxu0 0.0
        %3247 = vmatpush1.msra.mxu0 0.0
        %3248 = vmatprep.subr.mxu0 0.0
        %3249 = vmatpush1.msra.mxu0 0.0
        %3250 = vmatprep.subr.mxu0 0.0
        %3251 = vmatpush1.msra.mxu0 0.0
        %3252 = vmatprep.subr.mxu0 0.0
        %3253 = vmatpush1.msra.mxu0 0.0
        %3254 = vmatprep.subr.mxu0 0.0
        %3255 = vmatpush1.msra.mxu0 0.0
        %3256 = vmatprep.subr.mxu0 0.0
        %3257 = vmatpush1.msra.mxu0 0.0
        %3258 = vmatprep.subr.mxu0 0.0
        %3259 = vmatpush1.msra.mxu0 0.0
        %3260 = vmatprep.subr.mxu0 0.0
        %3261 = vmatpush1.msra.mxu0 0.0
        %3262 = vmatprep.subr.mxu0 0.0
        %3263 = vmatpush1.msra.mxu0 0.0
        %3264 = vmatprep.subr.mxu0 0.0
        %3265 = vmatpush1.msra.mxu0 0.0
        %3266 = vmatprep.subr.mxu0 0.0
        %3267 = vmatpush1.msra.mxu0 0.0
        %3268 = vmatprep.subr.mxu0 0.0
        %3269 = vmatpush1.msra.mxu0 0.0
        %3270 = vmatprep.subr.mxu0 0.0
        %3271 = vmatpush1.msra.mxu0 0.0
        %3272 = vmatprep.subr.mxu0 0.0
        %3273 = vmatpush1.msra.mxu0 0.0
        %3274 = vmatprep.subr.mxu0 0.0
        %3275 = vmatpush1.msra.mxu0 0.0
        %3276 = vmatprep.subr.mxu0 0.0
        %3277 = vmatpush1.msra.mxu0 0.0
        %3278 = vmatprep.subr.mxu0 0.0
        %3279 = vmatpush1.msra.mxu0 0.0
        %3280 = vmatprep.subr.mxu0 0.0
        %3281 = vmatpush1.msra.mxu0 0.0
        %3282 = vmatprep.subr.mxu0 0.0
        %3283 = vmatpush1.msra.mxu0 0.0
        %3284 = vmatprep.mubr.f32.mxu0 0.0
        %v3285 = vand.u32 %v303, 4294901760
        %v3286 = vsub.f32 %v303, %v3285
        %v3287 = vand.u32 %v3286, 4294901760
        %3288 = vmatmul.mubr.f32.gmra.mrb[0].mxu0 %v3287
        %v3289 = vpop.f32.mrb[0].mxu0
        %v3290 = vadd.f32 %v2996, %v3289
        %v3291 = vpop.f32.mrb[0].mxu0
        %3292 = vmatprep.mubr.f32.mxu0 0.0
        %v3293 = vand.u32 %v306, 4294901760
        %v3294 = vsub.f32 %v306, %v3293
        %v3295 = vand.u32 %v3294, 4294901760
        %3296 = vmatmul.mubr.f32.gmra.mrb[0].mxu0 %v3295
        %v3297 = vpop.f32.mrb[0].mxu0
        %v3298 = vadd.f32 %v3003, %v3297
        %v3299 = vpop.f32.mrb[0].mxu0
        %3300 = vmatprep.mubr.f32.mxu0 0.0
        %v3301 = vand.u32 %v309, 4294901760
        %v3302 = vsub.f32 %v309, %v3301
        %v3303 = vand.u32 %v3302, 4294901760
        %3304 = vmatmul.mubr.f32.gmra.mrb[0].mxu0 %v3303
        %v3305 = vpop.f32.mrb[0].mxu0
        %v3306 = vadd.f32 %v3010, %v3305
        %v3307 = vpop.f32.mrb[0].mxu0
        %3308 = vmatprep.mubr.f32.mxu0 0.0
        %v3309 = vand.u32 %v312, 4294901760
        %v3310 = vsub.f32 %v312, %v3309
        %v3311 = vand.u32 %v3310, 4294901760
        %3312 = vmatmul.mubr.f32.gmra.mrb[0].mxu0 %v3311
        %v3313 = vpop.f32.mrb[0].mxu0
        %v3314 = vadd.f32 %v3017, %v3313
        %v3315 = vpop.f32.mrb[0].mxu0
        %3316 = vmatprep.mubr.f32.mxu0 0.0
        %v3317 = vand.u32 %v315, 4294901760
        %v3318 = vsub.f32 %v315, %v3317
        %v3319 = vand.u32 %v3318, 4294901760
        %3320 = vmatmul.mubr.f32.gmra.mrb[0].mxu0 %v3319
        %v3321 = vpop.f32.mrb[0].mxu0
        %v3322 = vadd.f32 %v3024, %v3321
        %v3323 = vpop.f32.mrb[0].mxu0
        %3324 = vmatprep.mubr.f32.mxu0 0.0
        %v3325 = vand.u32 %v318, 4294901760
        %v3326 = vsub.f32 %v318, %v3325
        %v3327 = vand.u32 %v3326, 4294901760
        %3328 = vmatmul.mubr.f32.gmra.mrb[0].mxu0 %v3327
        %v3329 = vpop.f32.mrb[0].mxu0
        %v3330 = vadd.f32 %v3031, %v3329
        %v3331 = vpop.f32.mrb[0].mxu0
        %3332 = vmatprep.mubr.f32.mxu0 0.0
        %v3333 = vand.u32 %v321, 4294901760
        %v3334 = vsub.f32 %v321, %v3333
        %v3335 = vand.u32 %v3334, 4294901760
        %3336 = vmatmul.mubr.f32.gmra.mrb[0].mxu0 %v3335
        %v3337 = vpop.f32.mrb[0].mxu0
        %v3338 = vadd.f32 %v3038, %v3337
        %v3339 = vpop.f32.mrb[0].mxu0
        %3340 = vmatprep.mubr.f32.mxu0 0.0
        %v3341 = vand.u32 %v324, 4294901760
        %v3342 = vsub.f32 %v324, %v3341
        %v3343 = vand.u32 %v3342, 4294901760
        %3344 = vmatmul.mubr.f32.gmra.mrb[0].mxu0 %v3343
        %v3345 = vpop.f32.mrb[0].mxu0
        %v3346 = vadd.f32 %v3045, %v3345
        %v3347 = vpop.f32.mrb[0].mxu0
        %3348 = vmatprep.mubr.f32.mxu0 0.0
        %v3349 = vand.u32 %v327, 4294901760
        %v3350 = vsub.f32 %v327, %v3349
        %v3351 = vand.u32 %v3350, 4294901760
        %3352 = vmatmul.mubr.f32.gmra.mrb[0].mxu0 %v3351
        %v3353 = vpop.f32.mrb[0].mxu0
        %v3354 = vadd.f32 %v3052, %v3353
        %v3355 = vpop.f32.mrb[0].mxu0
        %3356 = vmatprep.mubr.f32.mxu0 0.0
        %v3357 = vand.u32 %v330, 4294901760
        %v3358 = vsub.f32 %v330, %v3357
        %v3359 = vand.u32 %v3358, 4294901760
        %3360 = vmatmul.mubr.f32.gmra.mrb[0].mxu0 %v3359
        %v3361 = vpop.f32.mrb[0].mxu0
        %v3362 = vadd.f32 %v3059, %v3361
        %v3363 = vpop.f32.mrb[0].mxu0
        %3364 = vmatprep.mubr.f32.mxu0 0.0
        %v3365 = vand.u32 %v333, 4294901760
        %v3366 = vsub.f32 %v333, %v3365
        %v3367 = vand.u32 %v3366, 4294901760
        %3368 = vmatmul.mubr.f32.gmra.mrb[0].mxu0 %v3367
        %v3369 = vpop.f32.mrb[0].mxu0
        %v3370 = vadd.f32 %v3066, %v3369
        %v3371 = vpop.f32.mrb[0].mxu0
        %3372 = vmatprep.mubr.f32.mxu0 0.0
        %v3373 = vand.u32 %v336, 4294901760
        %v3374 = vsub.f32 %v336, %v3373
        %v3375 = vand.u32 %v3374, 4294901760
        %3376 = vmatmul.mubr.f32.gmra.mrb[0].mxu0 %v3375
        %v3377 = vpop.f32.mrb[0].mxu0
        %v3378 = vadd.f32 %v3073, %v3377
        %v3379 = vpop.f32.mrb[0].mxu0
        %3380 = vmatprep.mubr.f32.mxu0 0.0
        %v3381 = vand.u32 %v339, 4294901760
        %v3382 = vsub.f32 %v339, %v3381
        %v3383 = vand.u32 %v3382, 4294901760
        %3384 = vmatmul.mubr.f32.gmra.mrb[0].mxu0 %v3383
        %v3385 = vpop.f32.mrb[0].mxu0
        %v3386 = vadd.f32 %v3080, %v3385
        %v3387 = vpop.f32.mrb[0].mxu0
        %3388 = vmatprep.mubr.f32.mxu0 0.0
        %v3389 = vand.u32 %v342, 4294901760
        %v3390 = vsub.f32 %v342, %v3389
        %v3391 = vand.u32 %v3390, 4294901760
        %3392 = vmatmul.mubr.f32.gmra.mrb[0].mxu0 %v3391
        %v3393 = vpop.f32.mrb[0].mxu0
        %v3394 = vadd.f32 %v3087, %v3393
        %v3395 = vpop.f32.mrb[0].mxu0
        %3396 = vmatprep.mubr.f32.mxu0 0.0
        %v3397 = vand.u32 %v345, 4294901760
        %v3398 = vsub.f32 %v345, %v3397
        %v3399 = vand.u32 %v3398, 4294901760
        %3400 = vmatmul.mubr.f32.gmra.mrb[0].mxu0 %v3399
        %v3401 = vpop.f32.mrb[0].mxu0
        %v3402 = vadd.f32 %v3094, %v3401
        %v3403 = vpop.f32.mrb[0].mxu0
        %3404 = vmatprep.mubr.f32.mxu0 0.0
        %v3405 = vand.u32 %v348, 4294901760
        %v3406 = vsub.f32 %v348, %v3405
        %v3407 = vand.u32 %v3406, 4294901760
        %3408 = vmatmul.mubr.f32.gmra.mrb[0].mxu0 %v3407
        %v3409 = vpop.f32.mrb[0].mxu0
        %v3410 = vadd.f32 %v3101, %v3409
        %v3411 = vpop.f32.mrb[0].mxu0
        %3412 = vmatprep.mubr.f32.mxu0 0.0
        %v3413 = vand.u32 %v351, 4294901760
        %v3414 = vsub.f32 %v351, %v3413
        %v3415 = vand.u32 %v3414, 4294901760
        %3416 = vmatmul.mubr.f32.gmra.mrb[0].mxu0 %v3415
        %v3417 = vpop.f32.mrb[0].mxu0
        %v3418 = vadd.f32 %v3108, %v3417
        %v3419 = vpop.f32.mrb[0].mxu0
        %3420 = vmatprep.mubr.f32.mxu0 0.0
        %v3421 = vand.u32 %v354, 4294901760
        %v3422 = vsub.f32 %v354, %v3421
        %v3423 = vand.u32 %v3422, 4294901760
        %3424 = vmatmul.mubr.f32.gmra.mrb[0].mxu0 %v3423
        %v3425 = vpop.f32.mrb[0].mxu0
        %v3426 = vadd.f32 %v3115, %v3425
        %v3427 = vpop.f32.mrb[0].mxu0
        %3428 = vmatprep.mubr.f32.mxu0 0.0
        %v3429 = vand.u32 %v357, 4294901760
        %v3430 = vsub.f32 %v357, %v3429
        %v3431 = vand.u32 %v3430, 4294901760
        %3432 = vmatmul.mubr.f32.gmra.mrb[0].mxu0 %v3431
        %v3433 = vpop.f32.mrb[0].mxu0
        %v3434 = vadd.f32 %v3122, %v3433
        %v3435 = vpop.f32.mrb[0].mxu0
        %3436 = vmatprep.mubr.f32.mxu0 0.0
        %v3437 = vand.u32 %v360, 4294901760
        %v3438 = vsub.f32 %v360, %v3437
        %v3439 = vand.u32 %v3438, 4294901760
        %3440 = vmatmul.mubr.f32.gmra.mrb[0].mxu0 %v3439
        %v3441 = vpop.f32.mrb[0].mxu0
        %v3442 = vadd.f32 %v3129, %v3441
        %v3443 = vpop.f32.mrb[0].mxu0
        %3444 = vmatprep.mubr.f32.mxu0 0.0
        %v3445 = vand.u32 %v363, 4294901760
        %v3446 = vsub.f32 %v363, %v3445
        %v3447 = vand.u32 %v3446, 4294901760
        %3448 = vmatmul.mubr.f32.gmra.mrb[0].mxu0 %v3447
        %v3449 = vpop.f32.mrb[0].mxu0
        %v3450 = vadd.f32 %v3136, %v3449
        %v3451 = vpop.f32.mrb[0].mxu0
        %3452 = vmatprep.mubr.f32.mxu0 0.0
        %v3453 = vand.u32 %v366, 4294901760
        %v3454 = vsub.f32 %v366, %v3453
        %v3455 = vand.u32 %v3454, 4294901760
        %3456 = vmatmul.mubr.f32.gmra.mrb[0].mxu0 %v3455
        %v3457 = vpop.f32.mrb[0].mxu0
        %v3458 = vadd.f32 %v3143, %v3457
        %v3459 = vpop.f32.mrb[0].mxu0
        %3460 = vmatprep.mubr.f32.mxu0 0.0
        %v3461 = vand.u32 %v369, 4294901760
        %v3462 = vsub.f32 %v369, %v3461
        %v3463 = vand.u32 %v3462, 4294901760
        %3464 = vmatmul.mubr.f32.gmra.mrb[0].mxu0 %v3463
        %v3465 = vpop.f32.mrb[0].mxu0
        %v3466 = vadd.f32 %v3150, %v3465
        %v3467 = vpop.f32.mrb[0].mxu0
        %3468 = vmatprep.mubr.f32.mxu0 0.0
        %v3469 = vand.u32 %v372, 4294901760
        %v3470 = vsub.f32 %v372, %v3469
        %v3471 = vand.u32 %v3470, 4294901760
        %3472 = vmatmul.mubr.f32.gmra.mrb[0].mxu0 %v3471
        %v3473 = vpop.f32.mrb[0].mxu0
        %v3474 = vadd.f32 %v3157, %v3473
        %v3475 = vpop.f32.mrb[0].mxu0
        %3476 = vmatprep.mubr.f32.mxu0 0.0
        %v3477 = vand.u32 %v375, 4294901760
        %v3478 = vsub.f32 %v375, %v3477
        %v3479 = vand.u32 %v3478, 4294901760
        %3480 = vmatmul.mubr.f32.gmra.mrb[0].mxu0 %v3479
        %v3481 = vpop.f32.mrb[0].mxu0
        %v3482 = vadd.f32 %v3164, %v3481
        %v3483 = vpop.f32.mrb[0].mxu0
        %3484 = vmatprep.mubr.f32.mxu0 0.0
        %v3485 = vand.u32 %v378, 4294901760
        %v3486 = vsub.f32 %v378, %v3485
        %v3487 = vand.u32 %v3486, 4294901760
        %3488 = vmatmul.mubr.f32.gmra.mrb[0].mxu0 %v3487
        %v3489 = vpop.f32.mrb[0].mxu0
        %v3490 = vadd.f32 %v3171, %v3489
        %v3491 = vpop.f32.mrb[0].mxu0
        %3492 = vmatprep.mubr.f32.mxu0 0.0
        %v3493 = vand.u32 %v381, 4294901760
        %v3494 = vsub.f32 %v381, %v3493
        %v3495 = vand.u32 %v3494, 4294901760
        %3496 = vmatmul.mubr.f32.gmra.mrb[0].mxu0 %v3495
        %v3497 = vpop.f32.mrb[0].mxu0
        %v3498 = vadd.f32 %v3178, %v3497
        %v3499 = vpop.f32.mrb[0].mxu0
        %3500 = vmatprep.mubr.f32.mxu0 0.0
        %v3501 = vand.u32 %v384, 4294901760
        %v3502 = vsub.f32 %v384, %v3501
        %v3503 = vand.u32 %v3502, 4294901760
        %3504 = vmatmul.mubr.f32.gmra.mrb[0].mxu0 %v3503
        %v3505 = vpop.f32.mrb[0].mxu0
        %v3506 = vadd.f32 %v3185, %v3505
        %v3507 = vpop.f32.mrb[0].mxu0
        %3508 = vmatprep.mubr.f32.mxu0 0.0
        %v3509 = vand.u32 %v387, 4294901760
        %v3510 = vsub.f32 %v387, %v3509
        %v3511 = vand.u32 %v3510, 4294901760
        %3512 = vmatmul.mubr.f32.gmra.mrb[0].mxu0 %v3511
        %v3513 = vpop.f32.mrb[0].mxu0
        %v3514 = vadd.f32 %v3192, %v3513
        %v3515 = vpop.f32.mrb[0].mxu0
        %3516 = vmatprep.mubr.f32.mxu0 0.0
        %v3517 = vand.u32 %v390, 4294901760
        %v3518 = vsub.f32 %v390, %v3517
        %v3519 = vand.u32 %v3518, 4294901760
        %3520 = vmatmul.mubr.f32.gmra.mrb[0].mxu0 %v3519
        %v3521 = vpop.f32.mrb[0].mxu0
        %v3522 = vadd.f32 %v3199, %v3521
        %v3523 = vpop.f32.mrb[0].mxu0
        %3524 = vmatprep.mubr.f32.mxu0 0.0
        %v3525 = vand.u32 %v393, 4294901760
        %v3526 = vsub.f32 %v393, %v3525
        %v3527 = vand.u32 %v3526, 4294901760
        %3528 = vmatmul.mubr.f32.gmra.mrb[0].mxu0 %v3527
        %v3529 = vpop.f32.mrb[0].mxu0
        %v3530 = vadd.f32 %v3206, %v3529
        %v3531 = vpop.f32.mrb[0].mxu0
        %3532 = vmatprep.mubr.f32.mxu0 0.0
        %v3533 = vand.u32 %v396, 4294901760
        %v3534 = vsub.f32 %v396, %v3533
        %v3535 = vand.u32 %v3534, 4294901760
        %3536 = vmatmul.mubr.f32.gmra.mrb[0].mxu0 %v3535
        %v3537 = vpop.f32.mrb[0].mxu0
        %v3538 = vadd.f32 %v3213, %v3537
        %v3539 = vpop.f32.mrb[0].mxu0
        %3540 = vdwg.mxu0
        %3541 = vmatprep.subr.mxu0 0.0
        %v3542 = vand.u32 %v2249, 4294901760
        %v3543 = vsub.f32 %v2249, %v3542
        %v3544 = vand.u32 %v3543, 4294901760
        %3545 = vmatpush1.msra.mxu0 %v3544
        %3546 = vmatprep.subr.mxu0 0.0
        %v3547 = vand.u32 %v2250, 4294901760
        %v3548 = vsub.f32 %v2250, %v3547
        %v3549 = vand.u32 %v3548, 4294901760
        %3550 = vmatpush1.msra.mxu0 %v3549
        %3551 = vmatprep.subr.mxu0 0.0
        %v3552 = vand.u32 %v2251, 4294901760
        %v3553 = vsub.f32 %v2251, %v3552
        %v3554 = vand.u32 %v3553, 4294901760
        %3555 = vmatpush1.msra.mxu0 %v3554
        %3556 = vmatprep.subr.mxu0 0.0
        %v3557 = vand.u32 %v2252, 4294901760
        %v3558 = vsub.f32 %v2252, %v3557
        %v3559 = vand.u32 %v3558, 4294901760
        %3560 = vmatpush1.msra.mxu0 %v3559
        %3561 = vmatprep.subr.mxu0 0.0
        %3562 = vmatpush1.msra.mxu0 0.0
        %3563 = vmatprep.subr.mxu0 0.0
        %3564 = vmatpush1.msra.mxu0 0.0
        %3565 = vmatprep.subr.mxu0 0.0
        %3566 = vmatpush1.msra.mxu0 0.0
        %3567 = vmatprep.subr.mxu0 0.0
        %3568 = vmatpush1.msra.mxu0 0.0
        %3569 = vmatprep.subr.mxu0 0.0
        %3570 = vmatpush1.msra.mxu0 0.0
        %3571 = vmatprep.subr.mxu0 0.0
        %3572 = vmatpush1.msra.mxu0 0.0
        %3573 = vmatprep.subr.mxu0 0.0
        %3574 = vmatpush1.msra.mxu0 0.0
        %3575 = vmatprep.subr.mxu0 0.0
        %3576 = vmatpush1.msra.mxu0 0.0
        %3577 = vmatprep.subr.mxu0 0.0
        %3578 = vmatpush1.msra.mxu0 0.0
        %3579 = vmatprep.subr.mxu0 0.0
        %3580 = vmatpush1.msra.mxu0 0.0
        %3581 = vmatprep.subr.mxu0 0.0
        %3582 = vmatpush1.msra.mxu0 0.0
        %3583 = vmatprep.subr.mxu0 0.0
        %3584 = vmatpush1.msra.mxu0 0.0
        %3585 = vmatprep.subr.mxu0 0.0
        %3586 = vmatpush1.msra.mxu0 0.0
        %3587 = vmatprep.subr.mxu0 0.0
        %3588 = vmatpush1.msra.mxu0 0.0
        %3589 = vmatprep.subr.mxu0 0.0
        %3590 = vmatpush1.msra.mxu0 0.0
        %3591 = vmatprep.subr.mxu0 0.0
        %3592 = vmatpush1.msra.mxu0 0.0
        %3593 = vmatprep.subr.mxu0 0.0
        %3594 = vmatpush1.msra.mxu0 0.0
        %3595 = vmatprep.subr.mxu0 0.0
        %3596 = vmatpush1.msra.mxu0 0.0
        %3597 = vmatprep.subr.mxu0 0.0
        %3598 = vmatpush1.msra.mxu0 0.0
        %3599 = vmatprep.subr.mxu0 0.0
        %3600 = vmatpush1.msra.mxu0 0.0
        %3601 = vmatprep.subr.mxu0 0.0
        %3602 = vmatpush1.msra.mxu0 0.0
        %3603 = vmatprep.subr.mxu0 0.0
        %3604 = vmatpush1.msra.mxu0 0.0
        %3605 = vmatprep.subr.mxu0 0.0
        %3606 = vmatpush1.msra.mxu0 0.0
        %3607 = vmatprep.subr.mxu0 0.0
        %3608 = vmatpush1.msra.mxu0 0.0
        %3609 = vmatprep.subr.mxu0 0.0
        %3610 = vmatpush1.msra.mxu0 0.0
        %3611 = vmatprep.subr.mxu0 0.0
        %3612 = vmatpush1.msra.mxu0 0.0
        %3613 = vmatprep.subr.mxu0 0.0
        %3614 = vmatpush1.msra.mxu0 0.0
        %3615 = vmatprep.subr.mxu0 0.0
        %3616 = vmatpush1.msra.mxu0 0.0
        %3617 = vmatprep.mubr.f32.mxu0 0.0
        %v3618 = vand.u32 %v303, 4294901760
        %3619 = vmatmul.mubr.f32.gmra.mrb[0].mxu0 %v3618
        %v3620 = vpop.f32.mrb[0].mxu0
        %v3621 = vadd.f32 %v3290, %v3620
        %v3622 = vpop.f32.mrb[0].mxu0
        %3623 = vmatprep.mubr.f32.mxu0 0.0
        %v3624 = vand.u32 %v306, 4294901760
        %3625 = vmatmul.mubr.f32.gmra.mrb[0].mxu0 %v3624
        %v3626 = vpop.f32.mrb[0].mxu0
        %v3627 = vadd.f32 %v3298, %v3626
        %v3628 = vpop.f32.mrb[0].mxu0
        %3629 = vmatprep.mubr.f32.mxu0 0.0
        %v3630 = vand.u32 %v309, 4294901760
        %3631 = vmatmul.mubr.f32.gmra.mrb[0].mxu0 %v3630
        %v3632 = vpop.f32.mrb[0].mxu0
        %v3633 = vadd.f32 %v3306, %v3632
        %v3634 = vpop.f32.mrb[0].mxu0
        %3635 = vmatprep.mubr.f32.mxu0 0.0
        %v3636 = vand.u32 %v312, 4294901760
        %3637 = vmatmul.mubr.f32.gmra.mrb[0].mxu0 %v3636
        %v3638 = vpop.f32.mrb[0].mxu0
        %v3639 = vadd.f32 %v3314, %v3638
        %v3640 = vpop.f32.mrb[0].mxu0
        %3641 = vmatprep.mubr.f32.mxu0 0.0
        %v3642 = vand.u32 %v315, 4294901760
        %3643 = vmatmul.mubr.f32.gmra.mrb[0].mxu0 %v3642
        %v3644 = vpop.f32.mrb[0].mxu0
        %v3645 = vadd.f32 %v3322, %v3644
        %v3646 = vpop.f32.mrb[0].mxu0
        %3647 = vmatprep.mubr.f32.mxu0 0.0
        %v3648 = vand.u32 %v318, 4294901760
        %3649 = vmatmul.mubr.f32.gmra.mrb[0].mxu0 %v3648
        %v3650 = vpop.f32.mrb[0].mxu0
        %v3651 = vadd.f32 %v3330, %v3650
        %v3652 = vpop.f32.mrb[0].mxu0
        %3653 = vmatprep.mubr.f32.mxu0 0.0
        %v3654 = vand.u32 %v321, 4294901760
        %3655 = vmatmul.mubr.f32.gmra.mrb[0].mxu0 %v3654
        %v3656 = vpop.f32.mrb[0].mxu0
        %v3657 = vadd.f32 %v3338, %v3656
        %v3658 = vpop.f32.mrb[0].mxu0
        %3659 = vmatprep.mubr.f32.mxu0 0.0
        %v3660 = vand.u32 %v324, 4294901760
        %3661 = vmatmul.mubr.f32.gmra.mrb[0].mxu0 %v3660
        %v3662 = vpop.f32.mrb[0].mxu0
        %v3663 = vadd.f32 %v3346, %v3662
        %v3664 = vpop.f32.mrb[0].mxu0
        %3665 = vmatprep.mubr.f32.mxu0 0.0
        %v3666 = vand.u32 %v327, 4294901760
        %3667 = vmatmul.mubr.f32.gmra.mrb[0].mxu0 %v3666
        %v3668 = vpop.f32.mrb[0].mxu0
        %v3669 = vadd.f32 %v3354, %v3668
        %v3670 = vpop.f32.mrb[0].mxu0
        %3671 = vmatprep.mubr.f32.mxu0 0.0
        %v3672 = vand.u32 %v330, 4294901760
        %3673 = vmatmul.mubr.f32.gmra.mrb[0].mxu0 %v3672
        %v3674 = vpop.f32.mrb[0].mxu0
        %v3675 = vadd.f32 %v3362, %v3674
        %v3676 = vpop.f32.mrb[0].mxu0
        %3677 = vmatprep.mubr.f32.mxu0 0.0
        %v3678 = vand.u32 %v333, 4294901760
        %3679 = vmatmul.mubr.f32.gmra.mrb[0].mxu0 %v3678
        %v3680 = vpop.f32.mrb[0].mxu0
        %v3681 = vadd.f32 %v3370, %v3680
        %v3682 = vpop.f32.mrb[0].mxu0
        %3683 = vmatprep.mubr.f32.mxu0 0.0
        %v3684 = vand.u32 %v336, 4294901760
        %3685 = vmatmul.mubr.f32.gmra.mrb[0].mxu0 %v3684
        %v3686 = vpop.f32.mrb[0].mxu0
        %v3687 = vadd.f32 %v3378, %v3686
        %v3688 = vpop.f32.mrb[0].mxu0
        %3689 = vmatprep.mubr.f32.mxu0 0.0
        %v3690 = vand.u32 %v339, 4294901760
        %3691 = vmatmul.mubr.f32.gmra.mrb[0].mxu0 %v3690
        %v3692 = vpop.f32.mrb[0].mxu0
        %v3693 = vadd.f32 %v3386, %v3692
        %v3694 = vpop.f32.mrb[0].mxu0
        %3695 = vmatprep.mubr.f32.mxu0 0.0
        %v3696 = vand.u32 %v342, 4294901760
        %3697 = vmatmul.mubr.f32.gmra.mrb[0].mxu0 %v3696
        %v3698 = vpop.f32.mrb[0].mxu0
        %v3699 = vadd.f32 %v3394, %v3698
        %v3700 = vpop.f32.mrb[0].mxu0
        %3701 = vmatprep.mubr.f32.mxu0 0.0
        %v3702 = vand.u32 %v345, 4294901760
        %3703 = vmatmul.mubr.f32.gmra.mrb[0].mxu0 %v3702
        %v3704 = vpop.f32.mrb[0].mxu0
        %v3705 = vadd.f32 %v3402, %v3704
        %v3706 = vpop.f32.mrb[0].mxu0
        %3707 = vmatprep.mubr.f32.mxu0 0.0
        %v3708 = vand.u32 %v348, 4294901760
        %3709 = vmatmul.mubr.f32.gmra.mrb[0].mxu0 %v3708
        %v3710 = vpop.f32.mrb[0].mxu0
        %v3711 = vadd.f32 %v3410, %v3710
        %v3712 = vpop.f32.mrb[0].mxu0
        %3713 = vmatprep.mubr.f32.mxu0 0.0
        %v3714 = vand.u32 %v351, 4294901760
        %3715 = vmatmul.mubr.f32.gmra.mrb[0].mxu0 %v3714
        %v3716 = vpop.f32.mrb[0].mxu0
        %v3717 = vadd.f32 %v3418, %v3716
        %v3718 = vpop.f32.mrb[0].mxu0
        %3719 = vmatprep.mubr.f32.mxu0 0.0
        %v3720 = vand.u32 %v354, 4294901760
        %3721 = vmatmul.mubr.f32.gmra.mrb[0].mxu0 %v3720
        %v3722 = vpop.f32.mrb[0].mxu0
        %v3723 = vadd.f32 %v3426, %v3722
        %v3724 = vpop.f32.mrb[0].mxu0
        %3725 = vmatprep.mubr.f32.mxu0 0.0
        %v3726 = vand.u32 %v357, 4294901760
        %3727 = vmatmul.mubr.f32.gmra.mrb[0].mxu0 %v3726
        %v3728 = vpop.f32.mrb[0].mxu0
        %v3729 = vadd.f32 %v3434, %v3728
        %v3730 = vpop.f32.mrb[0].mxu0
        %3731 = vmatprep.mubr.f32.mxu0 0.0
        %v3732 = vand.u32 %v360, 4294901760
        %3733 = vmatmul.mubr.f32.gmra.mrb[0].mxu0 %v3732
        %v3734 = vpop.f32.mrb[0].mxu0
        %v3735 = vadd.f32 %v3442, %v3734
        %v3736 = vpop.f32.mrb[0].mxu0
        %3737 = vmatprep.mubr.f32.mxu0 0.0
        %v3738 = vand.u32 %v363, 4294901760
        %3739 = vmatmul.mubr.f32.gmra.mrb[0].mxu0 %v3738
        %v3740 = vpop.f32.mrb[0].mxu0
        %v3741 = vadd.f32 %v3450, %v3740
        %v3742 = vpop.f32.mrb[0].mxu0
        %3743 = vmatprep.mubr.f32.mxu0 0.0
        %v3744 = vand.u32 %v366, 4294901760
        %3745 = vmatmul.mubr.f32.gmra.mrb[0].mxu0 %v3744
        %v3746 = vpop.f32.mrb[0].mxu0
        %v3747 = vadd.f32 %v3458, %v3746
        %v3748 = vpop.f32.mrb[0].mxu0
        %3749 = vmatprep.mubr.f32.mxu0 0.0
        %v3750 = vand.u32 %v369, 4294901760
        %3751 = vmatmul.mubr.f32.gmra.mrb[0].mxu0 %v3750
        %v3752 = vpop.f32.mrb[0].mxu0
        %v3753 = vadd.f32 %v3466, %v3752
        %v3754 = vpop.f32.mrb[0].mxu0
        %3755 = vmatprep.mubr.f32.mxu0 0.0
        %v3756 = vand.u32 %v372, 4294901760
        %3757 = vmatmul.mubr.f32.gmra.mrb[0].mxu0 %v3756
        %v3758 = vpop.f32.mrb[0].mxu0
        %v3759 = vadd.f32 %v3474, %v3758
        %v3760 = vpop.f32.mrb[0].mxu0
        %3761 = vmatprep.mubr.f32.mxu0 0.0
        %v3762 = vand.u32 %v375, 4294901760
        %3763 = vmatmul.mubr.f32.gmra.mrb[0].mxu0 %v3762
        %v3764 = vpop.f32.mrb[0].mxu0
        %v3765 = vadd.f32 %v3482, %v3764
        %v3766 = vpop.f32.mrb[0].mxu0
        %3767 = vmatprep.mubr.f32.mxu0 0.0
        %v3768 = vand.u32 %v378, 4294901760
        %3769 = vmatmul.mubr.f32.gmra.mrb[0].mxu0 %v3768
        %v3770 = vpop.f32.mrb[0].mxu0
        %v3771 = vadd.f32 %v3490, %v3770
        %v3772 = vpop.f32.mrb[0].mxu0
        %3773 = vmatprep.mubr.f32.mxu0 0.0
        %v3774 = vand.u32 %v381, 4294901760
        %3775 = vmatmul.mubr.f32.gmra.mrb[0].mxu0 %v3774
        %v3776 = vpop.f32.mrb[0].mxu0
        %v3777 = vadd.f32 %v3498, %v3776
        %v3778 = vpop.f32.mrb[0].mxu0
        %3779 = vmatprep.mubr.f32.mxu0 0.0
        %v3780 = vand.u32 %v384, 4294901760
        %3781 = vmatmul.mubr.f32.gmra.mrb[0].mxu0 %v3780
        %v3782 = vpop.f32.mrb[0].mxu0
        %v3783 = vadd.f32 %v3506, %v3782
        %v3784 = vpop.f32.mrb[0].mxu0
        %3785 = vmatprep.mubr.f32.mxu0 0.0
        %v3786 = vand.u32 %v387, 4294901760
        %3787 = vmatmul.mubr.f32.gmra.mrb[0].mxu0 %v3786
        %v3788 = vpop.f32.mrb[0].mxu0
        %v3789 = vadd.f32 %v3514, %v3788
        %v3790 = vpop.f32.mrb[0].mxu0
        %3791 = vmatprep.mubr.f32.mxu0 0.0
        %v3792 = vand.u32 %v390, 4294901760
        %3793 = vmatmul.mubr.f32.gmra.mrb[0].mxu0 %v3792
        %v3794 = vpop.f32.mrb[0].mxu0
        %v3795 = vadd.f32 %v3522, %v3794
        %v3796 = vpop.f32.mrb[0].mxu0
        %3797 = vmatprep.mubr.f32.mxu0 0.0
        %v3798 = vand.u32 %v393, 4294901760
        %3799 = vmatmul.mubr.f32.gmra.mrb[0].mxu0 %v3798
        %v3800 = vpop.f32.mrb[0].mxu0
        %v3801 = vadd.f32 %v3530, %v3800
        %v3802 = vpop.f32.mrb[0].mxu0
        %3803 = vmatprep.mubr.f32.mxu0 0.0
        %v3804 = vand.u32 %v396, 4294901760
        %3805 = vmatmul.mubr.f32.gmra.mrb[0].mxu0 %v3804
        %v3806 = vpop.f32.mrb[0].mxu0
        %v3807 = vadd.f32 %v3538, %v3806
        %v3808 = vpop.f32.mrb[0].mxu0
        %3809 = vdwg.mxu0
        %3810 = vmatprep.subr.mxu0 0.0
        %v3811 = vand.u32 %v2249, 4294901760
        %3812 = vmatpush1.msra.mxu0 %v3811
        %3813 = vmatprep.subr.mxu0 0.0
        %v3814 = vand.u32 %v2250, 4294901760
        %3815 = vmatpush1.msra.mxu0 %v3814
        %3816 = vmatprep.subr.mxu0 0.0
        %v3817 = vand.u32 %v2251, 4294901760
        %3818 = vmatpush1.msra.mxu0 %v3817
        %3819 = vmatprep.subr.mxu0 0.0
        %v3820 = vand.u32 %v2252, 4294901760
        %3821 = vmatpush1.msra.mxu0 %v3820
        %3822 = vmatprep.subr.mxu0 0.0
        %3823 = vmatpush1.msra.mxu0 0.0
        %3824 = vmatprep.subr.mxu0 0.0
        %3825 = vmatpush1.msra.mxu0 0.0
        %3826 = vmatprep.subr.mxu0 0.0
        %3827 = vmatpush1.msra.mxu0 0.0
        %3828 = vmatprep.subr.mxu0 0.0
        %3829 = vmatpush1.msra.mxu0 0.0
        %3830 = vmatprep.subr.mxu0 0.0
        %3831 = vmatpush1.msra.mxu0 0.0
        %3832 = vmatprep.subr.mxu0 0.0
        %3833 = vmatpush1.msra.mxu0 0.0
        %3834 = vmatprep.subr.mxu0 0.0
        %3835 = vmatpush1.msra.mxu0 0.0
        %3836 = vmatprep.subr.mxu0 0.0
        %3837 = vmatpush1.msra.mxu0 0.0
        %3838 = vmatprep.subr.mxu0 0.0
        %3839 = vmatpush1.msra.mxu0 0.0
        %3840 = vmatprep.subr.mxu0 0.0
        %3841 = vmatpush1.msra.mxu0 0.0
        %3842 = vmatprep.subr.mxu0 0.0
        %3843 = vmatpush1.msra.mxu0 0.0
        %3844 = vmatprep.subr.mxu0 0.0
        %3845 = vmatpush1.msra.mxu0 0.0
        %3846 = vmatprep.subr.mxu0 0.0
        %3847 = vmatpush1.msra.mxu0 0.0
        %3848 = vmatprep.subr.mxu0 0.0
        %3849 = vmatpush1.msra.mxu0 0.0
        %3850 = vmatprep.subr.mxu0 0.0
        %3851 = vmatpush1.msra.mxu0 0.0
        %3852 = vmatprep.subr.mxu0 0.0
        %3853 = vmatpush1.msra.mxu0 0.0
        %3854 = vmatprep.subr.mxu0 0.0
        %3855 = vmatpush1.msra.mxu0 0.0
        %3856 = vmatprep.subr.mxu0 0.0
        %3857 = vmatpush1.msra.mxu0 0.0
        %3858 = vmatprep.subr.mxu0 0.0
        %3859 = vmatpush1.msra.mxu0 0.0
        %3860 = vmatprep.subr.mxu0 0.0
        %3861 = vmatpush1.msra.mxu0 0.0
        %3862 = vmatprep.subr.mxu0 0.0
        %3863 = vmatpush1.msra.mxu0 0.0
        %3864 = vmatprep.subr.mxu0 0.0
        %3865 = vmatpush1.msra.mxu0 0.0
        %3866 = vmatprep.subr.mxu0 0.0
        %3867 = vmatpush1.msra.mxu0 0.0
        %3868 = vmatprep.subr.mxu0 0.0
        %3869 = vmatpush1.msra.mxu0 0.0
        %3870 = vmatprep.subr.mxu0 0.0
        %3871 = vmatpush1.msra.mxu0 0.0
        %3872 = vmatprep.subr.mxu0 0.0
        %3873 = vmatpush1.msra.mxu0 0.0
        %3874 = vmatprep.subr.mxu0 0.0
        %3875 = vmatpush1.msra.mxu0 0.0
        %3876 = vmatprep.subr.mxu0 0.0
        %3877 = vmatpush1.msra.mxu0 0.0
        %3878 = vmatprep.mubr.f32.mxu0 0.0
        %v3879 = vand.u32 %v303, 4294901760
        %3880 = vmatmul.mubr.f32.gmra.mrb[0].mxu0 %v3879
        %v3881 = vpop.f32.mrb[0].mxu0
        %v3882 = vadd.f32 %v3621, %v3881
        %v3883 = vpop.f32.mrb[0].mxu0
        %3884 = vmatprep.mubr.f32.mxu0 0.0
        %v3885 = vand.u32 %v306, 4294901760
        %3886 = vmatmul.mubr.f32.gmra.mrb[0].mxu0 %v3885
        %v3887 = vpop.f32.mrb[0].mxu0
        %v3888 = vadd.f32 %v3627, %v3887
        %v3889 = vpop.f32.mrb[0].mxu0
        %3890 = vmatprep.mubr.f32.mxu0 0.0
        %v3891 = vand.u32 %v309, 4294901760
        %3892 = vmatmul.mubr.f32.gmra.mrb[0].mxu0 %v3891
        %v3893 = vpop.f32.mrb[0].mxu0
        %v3894 = vadd.f32 %v3633, %v3893
        %v3895 = vpop.f32.mrb[0].mxu0
        %3896 = vmatprep.mubr.f32.mxu0 0.0
        %v3897 = vand.u32 %v312, 4294901760
        %3898 = vmatmul.mubr.f32.gmra.mrb[0].mxu0 %v3897
        %v3899 = vpop.f32.mrb[0].mxu0
        %v3900 = vadd.f32 %v3639, %v3899
        %v3901 = vpop.f32.mrb[0].mxu0
        %3902 = vmatprep.mubr.f32.mxu0 0.0
        %v3903 = vand.u32 %v315, 4294901760
        %3904 = vmatmul.mubr.f32.gmra.mrb[0].mxu0 %v3903
        %v3905 = vpop.f32.mrb[0].mxu0
        %v3906 = vadd.f32 %v3645, %v3905
        %v3907 = vpop.f32.mrb[0].mxu0
        %3908 = vmatprep.mubr.f32.mxu0 0.0
        %v3909 = vand.u32 %v318, 4294901760
        %3910 = vmatmul.mubr.f32.gmra.mrb[0].mxu0 %v3909
        %v3911 = vpop.f32.mrb[0].mxu0
        %v3912 = vadd.f32 %v3651, %v3911
        %v3913 = vpop.f32.mrb[0].mxu0
        %3914 = vmatprep.mubr.f32.mxu0 0.0
        %v3915 = vand.u32 %v321, 4294901760
        %3916 = vmatmul.mubr.f32.gmra.mrb[0].mxu0 %v3915
        %v3917 = vpop.f32.mrb[0].mxu0
        %v3918 = vadd.f32 %v3657, %v3917
        %v3919 = vpop.f32.mrb[0].mxu0
        %3920 = vmatprep.mubr.f32.mxu0 0.0
        %v3921 = vand.u32 %v324, 4294901760
        %3922 = vmatmul.mubr.f32.gmra.mrb[0].mxu0 %v3921
        %v3923 = vpop.f32.mrb[0].mxu0
        %v3924 = vadd.f32 %v3663, %v3923
        %v3925 = vpop.f32.mrb[0].mxu0
        %3926 = vmatprep.mubr.f32.mxu0 0.0
        %v3927 = vand.u32 %v327, 4294901760
        %3928 = vmatmul.mubr.f32.gmra.mrb[0].mxu0 %v3927
        %v3929 = vpop.f32.mrb[0].mxu0
        %v3930 = vadd.f32 %v3669, %v3929
        %v3931 = vpop.f32.mrb[0].mxu0
        %3932 = vmatprep.mubr.f32.mxu0 0.0
        %v3933 = vand.u32 %v330, 4294901760
        %3934 = vmatmul.mubr.f32.gmra.mrb[0].mxu0 %v3933
        %v3935 = vpop.f32.mrb[0].mxu0
        %v3936 = vadd.f32 %v3675, %v3935
        %v3937 = vpop.f32.mrb[0].mxu0
        %3938 = vmatprep.mubr.f32.mxu0 0.0
        %v3939 = vand.u32 %v333, 4294901760
        %3940 = vmatmul.mubr.f32.gmra.mrb[0].mxu0 %v3939
        %v3941 = vpop.f32.mrb[0].mxu0
        %v3942 = vadd.f32 %v3681, %v3941
        %v3943 = vpop.f32.mrb[0].mxu0
        %3944 = vmatprep.mubr.f32.mxu0 0.0
        %v3945 = vand.u32 %v336, 4294901760
        %3946 = vmatmul.mubr.f32.gmra.mrb[0].mxu0 %v3945
        %v3947 = vpop.f32.mrb[0].mxu0
        %v3948 = vadd.f32 %v3687, %v3947
        %v3949 = vpop.f32.mrb[0].mxu0
        %3950 = vmatprep.mubr.f32.mxu0 0.0
        %v3951 = vand.u32 %v339, 4294901760
        %3952 = vmatmul.mubr.f32.gmra.mrb[0].mxu0 %v3951
        %v3953 = vpop.f32.mrb[0].mxu0
        %v3954 = vadd.f32 %v3693, %v3953
        %v3955 = vpop.f32.mrb[0].mxu0
        %3956 = vmatprep.mubr.f32.mxu0 0.0
        %v3957 = vand.u32 %v342, 4294901760
        %3958 = vmatmul.mubr.f32.gmra.mrb[0].mxu0 %v3957
        %v3959 = vpop.f32.mrb[0].mxu0
        %v3960 = vadd.f32 %v3699, %v3959
        %v3961 = vpop.f32.mrb[0].mxu0
        %3962 = vmatprep.mubr.f32.mxu0 0.0
        %v3963 = vand.u32 %v345, 4294901760
        %3964 = vmatmul.mubr.f32.gmra.mrb[0].mxu0 %v3963
        %v3965 = vpop.f32.mrb[0].mxu0
        %v3966 = vadd.f32 %v3705, %v3965
        %v3967 = vpop.f32.mrb[0].mxu0
        %3968 = vmatprep.mubr.f32.mxu0 0.0
        %v3969 = vand.u32 %v348, 4294901760
        %3970 = vmatmul.mubr.f32.gmra.mrb[0].mxu0 %v3969
        %v3971 = vpop.f32.mrb[0].mxu0
        %v3972 = vadd.f32 %v3711, %v3971
        %v3973 = vpop.f32.mrb[0].mxu0
        %3974 = vmatprep.mubr.f32.mxu0 0.0
        %v3975 = vand.u32 %v351, 4294901760
        %3976 = vmatmul.mubr.f32.gmra.mrb[0].mxu0 %v3975
        %v3977 = vpop.f32.mrb[0].mxu0
        %v3978 = vadd.f32 %v3717, %v3977
        %v3979 = vpop.f32.mrb[0].mxu0
        %3980 = vmatprep.mubr.f32.mxu0 0.0
        %v3981 = vand.u32 %v354, 4294901760
        %3982 = vmatmul.mubr.f32.gmra.mrb[0].mxu0 %v3981
        %v3983 = vpop.f32.mrb[0].mxu0
        %v3984 = vadd.f32 %v3723, %v3983
        %v3985 = vpop.f32.mrb[0].mxu0
        %3986 = vmatprep.mubr.f32.mxu0 0.0
        %v3987 = vand.u32 %v357, 4294901760
        %3988 = vmatmul.mubr.f32.gmra.mrb[0].mxu0 %v3987
        %v3989 = vpop.f32.mrb[0].mxu0
        %v3990 = vadd.f32 %v3729, %v3989
        %v3991 = vpop.f32.mrb[0].mxu0
        %3992 = vmatprep.mubr.f32.mxu0 0.0
        %v3993 = vand.u32 %v360, 4294901760
        %3994 = vmatmul.mubr.f32.gmra.mrb[0].mxu0 %v3993
        %v3995 = vpop.f32.mrb[0].mxu0
        %v3996 = vadd.f32 %v3735, %v3995
        %v3997 = vpop.f32.mrb[0].mxu0
        %3998 = vmatprep.mubr.f32.mxu0 0.0
        %v3999 = vand.u32 %v363, 4294901760
        %4000 = vmatmul.mubr.f32.gmra.mrb[0].mxu0 %v3999
        %v4001 = vpop.f32.mrb[0].mxu0
        %v4002 = vadd.f32 %v3741, %v4001
        %v4003 = vpop.f32.mrb[0].mxu0
        %4004 = vmatprep.mubr.f32.mxu0 0.0
        %v4005 = vand.u32 %v366, 4294901760
        %4006 = vmatmul.mubr.f32.gmra.mrb[0].mxu0 %v4005
        %v4007 = vpop.f32.mrb[0].mxu0
        %v4008 = vadd.f32 %v3747, %v4007
        %v4009 = vpop.f32.mrb[0].mxu0
        %4010 = vmatprep.mubr.f32.mxu0 0.0
        %v4011 = vand.u32 %v369, 4294901760
        %4012 = vmatmul.mubr.f32.gmra.mrb[0].mxu0 %v4011
        %v4013 = vpop.f32.mrb[0].mxu0
        %v4014 = vadd.f32 %v3753, %v4013
        %v4015 = vpop.f32.mrb[0].mxu0
        %4016 = vmatprep.mubr.f32.mxu0 0.0
        %v4017 = vand.u32 %v372, 4294901760
        %4018 = vmatmul.mubr.f32.gmra.mrb[0].mxu0 %v4017
        %v4019 = vpop.f32.mrb[0].mxu0
        %v4020 = vadd.f32 %v3759, %v4019
        %v4021 = vpop.f32.mrb[0].mxu0
        %4022 = vmatprep.mubr.f32.mxu0 0.0
        %v4023 = vand.u32 %v375, 4294901760
        %4024 = vmatmul.mubr.f32.gmra.mrb[0].mxu0 %v4023
        %v4025 = vpop.f32.mrb[0].mxu0
        %v4026 = vadd.f32 %v3765, %v4025
        %v4027 = vpop.f32.mrb[0].mxu0
        %4028 = vmatprep.mubr.f32.mxu0 0.0
        %v4029 = vand.u32 %v378, 4294901760
        %4030 = vmatmul.mubr.f32.gmra.mrb[0].mxu0 %v4029
        %v4031 = vpop.f32.mrb[0].mxu0
        %v4032 = vadd.f32 %v3771, %v4031
        %v4033 = vpop.f32.mrb[0].mxu0
        %4034 = vmatprep.mubr.f32.mxu0 0.0
        %v4035 = vand.u32 %v381, 4294901760
        %4036 = vmatmul.mubr.f32.gmra.mrb[0].mxu0 %v4035
        %v4037 = vpop.f32.mrb[0].mxu0
        %v4038 = vadd.f32 %v3777, %v4037
        %v4039 = vpop.f32.mrb[0].mxu0
        %4040 = vmatprep.mubr.f32.mxu0 0.0
        %v4041 = vand.u32 %v384, 4294901760
        %4042 = vmatmul.mubr.f32.gmra.mrb[0].mxu0 %v4041
        %v4043 = vpop.f32.mrb[0].mxu0
        %v4044 = vadd.f32 %v3783, %v4043
        %v4045 = vpop.f32.mrb[0].mxu0
        %4046 = vmatprep.mubr.f32.mxu0 0.0
        %v4047 = vand.u32 %v387, 4294901760
        %4048 = vmatmul.mubr.f32.gmra.mrb[0].mxu0 %v4047
        %v4049 = vpop.f32.mrb[0].mxu0
        %v4050 = vadd.f32 %v3789, %v4049
        %v4051 = vpop.f32.mrb[0].mxu0
        %4052 = vmatprep.mubr.f32.mxu0 0.0
        %v4053 = vand.u32 %v390, 4294901760
        %4054 = vmatmul.mubr.f32.gmra.mrb[0].mxu0 %v4053
        %v4055 = vpop.f32.mrb[0].mxu0
        %v4056 = vadd.f32 %v3795, %v4055
        %v4057 = vpop.f32.mrb[0].mxu0
        %4058 = vmatprep.mubr.f32.mxu0 0.0
        %v4059 = vand.u32 %v393, 4294901760
        %4060 = vmatmul.mubr.f32.gmra.mrb[0].mxu0 %v4059
        %v4061 = vpop.f32.mrb[0].mxu0
        %v4062 = vadd.f32 %v3801, %v4061
        %v4063 = vpop.f32.mrb[0].mxu0
        %4064 = vmatprep.mubr.f32.mxu0 0.0
        %v4065 = vand.u32 %v396, 4294901760
        %4066 = vmatmul.mubr.f32.gmra.mrb[0].mxu0 %v4065
        %v4067 = vpop.f32.mrb[0].mxu0
        %v4068 = vadd.f32 %v3807, %v4067
        %v4069 = vpop.f32.mrb[0].mxu0
        %4070 = vdwg.mxu0
        %s4071 = scalar_lea.vmem %s192, 256 [#allocation7]
        %4072 = vst [vmem:[%s4071] sm:$0xff] %v3882
        %4073 = vst [vmem:[%s4071 + $0x8] sm:$0xff] %v3888
        %4074 = vst [vmem:[%s4071 + $0x10] sm:$0xff] %v3894
        %4075 = vst [vmem:[%s4071 + $0x18] sm:$0xff] %v3900
        %4076 = vst [vmem:[%s4071 + $0x20] sm:$0xff] %v3906
        %4077 = vst [vmem:[%s4071 + $0x28] sm:$0xff] %v3912
        %4078 = vst [vmem:[%s4071 + $0x30] sm:$0xff] %v3918
        %4079 = vst [vmem:[%s4071 + $0x38] sm:$0xff] %v3924
        %4080 = vst [vmem:[%s4071 + $0x40] sm:$0xff] %v3930
        %4081 = vst [vmem:[%s4071 + $0x48] sm:$0xff] %v3936
        %4082 = vst [vmem:[%s4071 + $0x50] sm:$0xff] %v3942
        %4083 = vst [vmem:[%s4071 + $0x58] sm:$0xff] %v3948
        %4084 = vst [vmem:[%s4071 + $0x60] sm:$0xff] %v3954
        %4085 = vst [vmem:[%s4071 + $0x68] sm:$0xff] %v3960
        %4086 = vst [vmem:[%s4071 + $0x70] sm:$0xff] %v3966
        %4087 = vst [vmem:[%s4071 + $0x78] sm:$0xff] %v3972
        %4088 = vst [vmem:[%s4071 + $0x80] sm:$0xff] %v3978
        %4089 = vst [vmem:[%s4071 + $0x88] sm:$0xff] %v3984
        %4090 = vst [vmem:[%s4071 + $0x90] sm:$0xff] %v3990
        %4091 = vst [vmem:[%s4071 + $0x98] sm:$0xff] %v3996
        %4092 = vst [vmem:[%s4071 + $0xa0] sm:$0xff] %v4002
        %4093 = vst [vmem:[%s4071 + $0xa8] sm:$0xff] %v4008
        %4094 = vst [vmem:[%s4071 + $0xb0] sm:$0xff] %v4014
        %4095 = vst [vmem:[%s4071 + $0xb8] sm:$0xff] %v4020
        %4096 = vst [vmem:[%s4071 + $0xc0] sm:$0xff] %v4026
        %4097 = vst [vmem:[%s4071 + $0xc8] sm:$0xff] %v4032
        %4098 = vst [vmem:[%s4071 + $0xd0] sm:$0xff] %v4038
        %4099 = vst [vmem:[%s4071 + $0xd8] sm:$0xff] %v4044
        %4100 = vst [vmem:[%s4071 + $0xe0] sm:$0xff] %v4050
        %4101 = vst [vmem:[%s4071 + $0xe8] sm:$0xff] %v4056
        %4102 = vst [vmem:[%s4071 + $0xf0] sm:$0xff] %v4062
        %4103 = vst [vmem:[%s4071 + $0xf8] sm:$0xff] %v4068
        %s4104 = sand.u32 %s91, 1
        %s4105 = scalar_lea.sflag [#allocation4], %s4104
        %s4106 = sand.u32 %s91, 1
        %s4107 = smul.addr %s4106, 512
        %s4108 = scalar_lea.vmem [#allocation7], %s4107
        // Predicated region
        $region37: #{tpu_custom_call.1} parent=27 // pred_check
          %p4109 = pneg %p101
        $region38: #{tpu_custom_call.1} parent=27 // pred_check_branch
          %4111 = sbr.rel (%p4109) target = $region40
        $region39: #{tpu_custom_call.1} parent=27 // pred_region
          %s4112 = smul.u32 32, %s25
          %s4114 = ssub.s32 8192, 8192
          %4115 = vsyncadd %s4105, %s4114
          %s4116 = smul.addr %s24, 64
          %s4117 = sadd.s32 %s4112, %s4116
          %s4118 = smul.addr %s4117, 128
          %s4119 = scalar_lea.hbm %s2, %s4118
          %s4120 = sshll.u32 %s4108, 4
          %s4121 = int_to_ptr.vmem [resolvable:$true] %s4120
          %4126 = dma.vmem_to_hbm [thread:$0]  %s4121, 8192, %s4119, %s4105, 128, 128, 8
        $region40: #{tpu_custom_call.1} parent=27 // pred_fallthru
          _
      $region28: #{tpu_custom_call.1} parent=5 // pred_fallthru
        _
      %p4127 = scmp.le.s32.totalorder 2, %s15
      // Predicated region
      $region41: #{tpu_custom_call.1} parent=5 // pred_check
        %p4128 = pneg %p4127
      $region42: #{tpu_custom_call.1} parent=5 // pred_check_branch
        %4130 = sbr.rel (%p4128) target = $region44
      $region43: #{tpu_custom_call.1} parent=5 // pred_region
        %s4131 = ssub.s32 %s15, 2
        // Predicated region
        $region45: #{tpu_custom_call.1} parent=43 // pred_check
          %p4132 = pneg %p107
        $region46: #{tpu_custom_call.1} parent=43 // pred_check_branch
          %4134 = sbr.rel (%p4132) target = $region48
        $region47: #{tpu_custom_call.1} parent=43 // pred_region
          %s4135 = sand.u32 %s92, 1
          %s4136 = scalar_lea.sflag [#allocation4], %s4135
          %s4137 = sand.u32 %s92, 1
          %s4138 = smul.addr %s4137, 512
          %s4139 = scalar_lea.vmem [#allocation7], %s4138
          %4140 = dma.done %s4136, 8192
        $region48: #{tpu_custom_call.1} parent=43 // pred_fallthru
          _
      $region44: #{tpu_custom_call.1} parent=5 // pred_fallthru
        _
    $region6: #{tpu_custom_call.1} parent=1 // loop_footer
      %s19 = sadd.s32 1, %s15
    $region7: #{tpu_custom_call.1} parent=1 // loop_footer_branch
      %14 = sbr.rel target = $region3
    $region8: #{tpu_custom_call.1} parent=1 // loop_exit
      _
    %4141 = vsyncpa [#allocation3], 1
    %s4142 = scalar_lea.sflag [#allocation3], 1
    %4143 = vsyncpa %s4142, 1
    %4144 = vsyncpa [#allocation6], 1
    %4145 = vsyncpa [#allocation4], 1
    %s4146 = scalar_lea.sflag [#allocation4], 1
    %4147 = vsyncpa %s4146, 1

</llo_original>
